<compile_context>
chip_gen: v7x
topology: tpu7x:2x2x1
jax: 0.10.0
libtpu: 0.0.40
codegen_flags: <defaults>
</compile_context>

<pallas_src>
import functools

import jax
import jax.numpy as jnp
from jax import lax
from jax.experimental import pallas as pl
from jax.experimental.pallas import tpu as pltpu
import numpy as np


def _round_up(x, m):
    return ((x + m - 1) // m) * m


def _vmem_capacity_bytes():
    try:
        return int(pltpu.get_tpu_info().vmem_capacity_bytes)
    except Exception:
        try:
            kind = jax.devices()[0].device_kind.lower()
        except Exception:
            kind = ""
        if "v7" in kind or "7x" in kind:
            return 64 * 1024 * 1024
        return 128 * 1024 * 1024


def _default_num_batch_blocks(batch_size):
    # v7x has 2 TensorCores per chip: shard the batch across them via the
    # leading "parallel" grid axis when there is enough batch for two >=8-row
    # blocks.  v5e/v6e have a single TC, where splitting only shrinks the
    # matmul M dim and adds per-grid-step overhead.
    try:
        kind = jax.devices()[0].device_kind.lower()
    except Exception:
        kind = ""
    if ("v7" in kind or "7x" in kind) and batch_size >= 16:
        return 2
    return 1


def _estimate_vmem_bytes(T_blk, B_blk, D, H_pad, mm_bytes):
    f32 = 4
    # Pipelined operands (conservatively assume double-buffered).
    pipelined = 2 * (T_blk * B_blk * D * mm_bytes      # x block
                     + B_blk * H_pad * f32             # h0 block
                     + T_blk * B_blk * H_pad * f32     # output block
                     + 128 * f32)                      # ponder block
    # Grid-invariant weights (requested single-buffered; assume 2x worst case).
    weights = 2 * ((D + H_pad) * H_pad * mm_bytes + (4 * H_pad + 1) * f32)
    scratch = (B_blk * H_pad + T_blk * B_blk * H_pad + B_blk * 128) * f32
    return pipelined + weights + scratch


# ----------------------------------------------------------------------------
# Pallas kernel: one AdaptiveCellWrapper layer over a block of timesteps.
# Grid = (num_batch_blocks, num_time_blocks); time is the inner, sequential axis.
# ----------------------------------------------------------------------------
def _adaptive_layer_kernel(
    x_ref,       # (T_BLK, B_BLK, D)     inputs for this timestep block (matmul dtype)
    h0_ref,      # (B_BLK, H)            initial hidden for this batch block
    wx_ref,      # (D, H)                input->hidden weights (flag column split off)
    wflag_ref,   # (1, H)                weights for the "first ponder step" flag
    whh_ref,     # (H, H)                hidden->hidden weights (matmul dtype)
    bih_ref,     # (1, H)
    bhh_ref,     # (1, H)
    whalt_ref,   # (1, H)                halting unit weight (lane-major)
    bhalt_ref,   # (1, 1)                halting unit bias
    out_ref,     # (T_BLK, B_BLK, H)     ACT-weighted hidden per timestep
    ponder_ref,  # (1, 1, 128)           ponder cost for this batch block (lane-dense)
    h_carry,     # VMEM (B_BLK, H)       hidden carried across timestep blocks
    xw_buf,      # VMEM (T_BLK*B_BLK, H) batched input projection
    rem_accum,   # VMEM (B_BLK, 1)       per-batch remainder accumulator
    *,
    time_penalty: float,
    ponder_eps: float,
    time_limit: int,
    seq_len: int,        # real (unpadded) sequence length
    batch_size: int,     # real (unpadded) batch size
    matmul_dtype,
    ponder_unroll,
):
    b_idx = pl.program_id(0)
    t_idx = pl.program_id(1)
    T_blk, B_blk, D = x_ref.shape
    H = h_carry.shape[1]

    @pl.when(t_idx == 0)
    def _():
        h_carry[...] = h0_ref[...]
        rem_accum[...] = jnp.zeros(rem_accum.shape, rem_accum.dtype)

    wflag = wflag_ref[...]                 # (1, H) f32
    whh = whh_ref[...]                     # (H, H) already in matmul dtype (host cast)
    bias = bih_ref[...] + bhh_ref[...]     # (1, H) f32
    whalt = whalt_ref[...]                 # (1, H) f32
    bhalt = bhalt_ref[0, 0]
    budget = jnp.float32(1.0 - ponder_eps)

    # Batched input projection for all T_BLK timesteps at once: one MXU matmul
    # with M = T_BLK*B_BLK instead of T_BLK tiny ones.
    x2d = x_ref[...].reshape(T_blk * B_blk, D)
    xw_buf[...] = (
        jnp.dot(x2d, wx_ref[...], preferred_element_type=jnp.float32) + bias)

    def halting_update(hidden, th, tr, ha, cont):
        # Halting unit off the MXU: elementwise multiply (VPU) + lane reduce
        # (XLU) instead of an N=1 matmul.
        # TODO(synk): on v6e/v7x the halting logit could ride the recurrent
        # matmul as an extra 128-lane column block of whh (free N growth up to
        # the 256-wide MXU tile); on v5e's 128-wide MXU keep this VPU/XLU path.
        step_halt = jax.nn.sigmoid(
            jnp.sum(hidden * whalt, axis=-1, keepdims=True) + bhalt)  # (B, 1)
        masked_halt = cont * step_halt
        ha = ha + masked_halt
        ending = cont * (ha + step_halt > budget).astype(jnp.float32)
        cont = cont * (1.0 - ending)
        masked_remainder = ending * (1.0 - ha)
        th = th + (masked_halt + masked_remainder) * hidden
        tr = tr + masked_halt
        return th, tr, ha, cont

    def timestep_body(tl, carry):
        # Hidden state and remainder accumulator are carried in vregs across
        # timesteps; VMEM scratch is touched only once per block (see below).
        h_prev, rem = carry
        row = pl.multiple_of(tl * B_blk, B_blk)
        xw = xw_buf[pl.ds(row, B_blk), :]           # (B_BLK, H)

        # Ponder step 0 (first-step flag == 1), peeled out of the unrolled loop.
        hidden = jnp.tanh(
            xw + wflag
            + jnp.dot(h_prev.astype(matmul_dtype), whh,
                      preferred_element_type=jnp.float32))
        zeros_b1 = jnp.zeros((B_blk, 1), jnp.float32)
        th, tr, ha, cont = halting_update(
            hidden, jnp.zeros((B_blk, H), jnp.float32), zeros_b1, zeros_b1,
            jnp.ones((B_blk, 1), jnp.float32))

        def ponder_body(step, c):
            hidden, th, tr, ha, cont = c
            hidden = jnp.tanh(
                xw + jnp.dot(hidden.astype(matmul_dtype), whh,
                             preferred_element_type=jnp.float32))
            th, tr, ha, cont = halting_update(hidden, th, tr, ha, cont)
            return hidden, th, tr, ha, cont

        hidden, th, tr, ha, cont = lax.fori_loop(
            1, time_limit - 1, ponder_body, (hidden, th, tr, ha, cont),
            unroll=ponder_unroll)

        # PyTorch for-else branch (elements still continuing at the limit).
        # When all elements halted early this adds zeros (matches early break).
        th = th + cont * (1.0 - ha) * hidden

        out_ref[tl] = th
        # Padded timesteps must not contribute to the ponder cost.
        valid = ((t_idx * T_blk + tl) < seq_len).astype(jnp.float32)
        return th, rem + valid * tr

    h_final, rem_block = lax.fori_loop(
        0, T_blk, timestep_body,
        (h_carry[...], jnp.zeros((B_blk, 1), jnp.float32)))
    h_carry[...] = h_final
    rem_accum[...] = rem_accum[...] + rem_block

    # Deferred ponder reduction: one cross-lane reduce + one lane-dense store
    # per batch block (value broadcast across 128 lanes => unmasked vst).
    # Padded batch rows are masked out.
    @pl.when(t_idx == pl.num_programs(1) - 1)
    def _():
        rows = lax.broadcasted_iota(jnp.int32, (B_blk, 1), 0) + b_idx * B_blk
        bmask = (rows < batch_size).astype(jnp.float32)
        val = ((-time_penalty / float(batch_size))
               * jnp.sum(rem_accum[...] * bmask))
        ponder_ref[...] = jnp.broadcast_to(val, ponder_ref.shape)


def adaptive_layer_pallas(x_seq, h0, params, *, time_penalty, ponder_eps,
                          time_limit, t_block=32, num_batch_blocks=None,
                          matmul_dtype=jnp.float32):
    """Run one AdaptiveCellWrapper layer over a full (S, B, D) sequence."""
    assert time_limit >= 2
    S, B, D = x_seq.shape
    H = params["whh"].shape[0]
    mm_dtype = jnp.dtype(matmul_dtype)
    mm_bytes = mm_dtype.itemsize
    sublane = 8 if mm_bytes >= 4 else 16

    if num_batch_blocks is None:
        num_batch_blocks = _default_num_batch_blocks(B)
    num_batch_blocks = max(1, min(int(num_batch_blocks), -(-B // sublane)))

    # Pad batch to a sublane multiple (per batch block) and hidden to a lane
    # multiple (128).  Zero-padded weight rows/columns contribute exactly zero,
    # so results are unchanged; padded batch rows / timesteps are masked out of
    # the ponder cost inside the kernel.
    B_blk = _round_up(max(1, -(-B // num_batch_blocks)), sublane)
    B_pad = B_blk * num_batch_blocks
    H_pad = _round_up(H, 128)

    vmem_cap = _vmem_capacity_bytes()
    # Time-block size: M = T_blk*B_blk of the batched input projection should
    # fill the MXU M dim (>=256 on v6e/v7x); shrink if VMEM would not fit.
    T_blk = max(1, min(int(t_block), S))
    while (T_blk > 8 and
           _estimate_vmem_bytes(T_blk, B_blk, D, H_pad, mm_bytes)
           > vmem_cap - (16 << 20)):
        T_blk = max(8, T_blk // 2)
    S_pad = _round_up(S, T_blk)

    x_p = jnp.pad(x_seq.astype(jnp.float32),
                  ((0, S_pad - S), (0, B_pad - B), (0, 0))).astype(mm_dtype)
    h0_p = jnp.pad(h0.astype(jnp.float32), ((0, B_pad - B), (0, H_pad - H)))
    wx_p = jnp.pad(params["wx"], ((0, 0), (0, H_pad - H))).astype(mm_dtype)
    wflag_p = jnp.pad(params["wflag"], ((0, 0), (0, H_pad - H)))
    whh_p = jnp.pad(params["whh"],
                    ((0, H_pad - H), (0, H_pad - H))).astype(mm_dtype)
    bih_p = jnp.pad(params["bih"], ((0, 0), (0, H_pad - H)))
    bhh_p = jnp.pad(params["bhh"], ((0, 0), (0, H_pad - H)))
    whalt_p = jnp.pad(params["whalt"], ((0, 0), (0, H_pad - H)))
    bhalt = params["bhalt"]

    # Fully unrolling the ponder loop is a large win at small H / short
    # time_limit; at large H x long time_limit it spills vregs, so back off to
    # a partial unroll.
    ponder_unroll = True if (time_limit < 16 or H_pad < 512) else 2

    kernel = functools.partial(
        _adaptive_layer_kernel,
        time_penalty=float(time_penalty),
        ponder_eps=float(ponder_eps),
        time_limit=int(time_limit),
        seq_len=int(S),
        batch_size=int(B),
        matmul_dtype=mm_dtype,
        ponder_unroll=ponder_unroll,
    )

    est = _estimate_vmem_bytes(T_blk, B_blk, D, H_pad, mm_bytes)
    vmem_limit = None
    if est > 12 * 1024 * 1024:   # v5e's default scoped VMEM limit is only 16 MiB
        vmem_limit = int(min(est * 5 // 4 + (4 << 20), vmem_cap - (8 << 20)))
    # TODO(synk): for H so large that whh alone approaches the VMEM cap (v7x,
    # 64 MiB), K-tile the hidden@whh contraction instead of keeping whh resident.

    def build(single_buffer_weights):
        def wspec(shape):
            # Grid-invariant weights: constant index map, so double-buffering
            # is pure VMEM waste -> request single buffering.
            if single_buffer_weights:
                return pl.BlockSpec(shape, lambda b, t: (0,) * len(shape),
                                    pipeline_mode=pl.Buffered(1))
            return pl.BlockSpec(shape, lambda b, t: (0,) * len(shape))

        return pl.pallas_call(
            kernel,
            out_shape=(
                jax.ShapeDtypeStruct((S_pad, B_pad, H_pad), jnp.float32),
                jax.ShapeDtypeStruct((num_batch_blocks, 1, 128), jnp.float32),
            ),
            grid=(num_batch_blocks, S_pad // T_blk),
            in_specs=[
                pl.BlockSpec((T_blk, B_blk, D), lambda b, t: (t, b, 0)),  # x
                pl.BlockSpec((B_blk, H_pad), lambda b, t: (b, 0)),        # h0
                wspec((D, H_pad)),       # wx
                wspec((1, H_pad)),       # wflag
                wspec((H_pad, H_pad)),   # whh
                wspec((1, H_pad)),       # bih
                wspec((1, H_pad)),       # bhh
                wspec((1, H_pad)),       # whalt
                wspec((1, 1)),           # bhalt
            ],
            out_specs=[
                pl.BlockSpec((T_blk, B_blk, H_pad), lambda b, t: (t, b, 0)),
                pl.BlockSpec((1, 1, 128), lambda b, t: (b, 0, 0)),
            ],
            scratch_shapes=[
                pltpu.VMEM((B_blk, H_pad), jnp.float32),          # hidden carry
                pltpu.VMEM((T_blk * B_blk, H_pad), jnp.float32),  # batched x proj
                pltpu.VMEM((B_blk, 1), jnp.float32),              # remainder accum
            ],
            compiler_params=pltpu.CompilerParams(
                dimension_semantics=("parallel", "arbitrary"),
                vmem_limit_bytes=vmem_limit,
            ),
        )

    args = (x_p, h0_p, wx_p, wflag_p, whh_p, bih_p, bhh_p, whalt_p, bhalt)
    try:
        out_pad, ponder_rows = build(True)(*args)
    except Exception:
        # Fallback if this jax/Mosaic version rejects pl.Buffered(1) on a
        # top-level pallas_call BlockSpec: accept double-buffered weights.
        out_pad, ponder_rows = build(False)(*args)

    return out_pad[:S, :B, :H], jnp.sum(ponder_rows[:, 0, 0])


# ----------------------------------------------------------------------------
# _CellUnrollWrapper.forward equivalent (layer stacking is plain JAX glue).
# ----------------------------------------------------------------------------
def cell_unroll_forward(inputs, hidden, layer_params, *, time_penalty,
                        ponder_eps, time_limit, batch_first=False,
                        t_block=32, num_batch_blocks=None,
                        matmul_dtype=jnp.float32):
    # TODO(synk): inter-layer dropout not implemented (dropout=0.0 path only).
    # TODO(synk): layers run as separate pallas_calls (no cross-layer fusion).
    if batch_first:
        inputs = jnp.transpose(inputs, (1, 0, 2))
    S, B, _ = inputs.shape
    num_layers = len(layer_params)

    if hidden is None:
        layer_hiddens = [
            jnp.zeros((B, p["whh"].shape[0]), jnp.float32) for p in layer_params
        ]
    else:
        layer_hiddens = [hidden[i] for i in range(num_layers)]

    total_ponder = jnp.zeros((), jnp.float32)
    x = inputs
    finals = []
    for i, p in enumerate(layer_params):
        x, ponder = adaptive_layer_pallas(
            x, layer_hiddens[i], p,
            time_penalty=time_penalty, ponder_eps=ponder_eps,
            time_limit=time_limit, t_block=t_block,
            num_batch_blocks=num_batch_blocks, matmul_dtype=matmul_dtype,
        )
        total_ponder = total_ponder + ponder
        finals.append(x[-1])

    all_outputs = x
    all_hiddens = jnp.stack(finals)
    if batch_first:
        all_outputs = jnp.transpose(all_outputs, (1, 0, 2))
    return all_outputs, all_hiddens, total_ponder


# ----------------------------------------------------------------------------
# Pure-JAX reference (mirrors the PyTorch semantics) for a correctness check.
# ----------------------------------------------------------------------------
def _ref_layer(x_seq, h0, p, time_penalty, ponder_eps, time_limit):
    S, B, _ = x_seq.shape
    H = p["whh"].shape[0]
    budget = 1.0 - ponder_eps
    outs = []
    h_prev = h0
    ponder_total = 0.0
    for t in range(S):
        xw = x_seq[t] @ p["wx"] + p["bih"] + p["bhh"]
        hidden = h_prev
        total_hidden = jnp.zeros((B, H), jnp.float32)
        total_remainder = jnp.zeros((B, 1), jnp.float32)
        halt_accum = jnp.zeros((B, 1), jnp.float32)
        cont = jnp.ones((B, 1), jnp.float32)
        for step in range(time_limit - 1):
            flag = 1.0 if step == 0 else 0.0
            hidden = jnp.tanh(xw + flag * p["wflag"] + hidden @ p["whh"])
            step_halt = jax.nn.sigmoid(hidden @ p["whalt"].T + p["bhalt"][0, 0])
            masked_halt = cont * step_halt
            halt_accum = halt_accum + masked_halt
            ending = cont * (halt_accum + step_halt > budget).astype(jnp.float32)
            cont = cont * (1.0 - ending)
            masked_remainder = ending * (1.0 - halt_accum)
            total_hidden = total_hidden + (masked_halt + masked_remainder) * hidden
            total_remainder = total_remainder + masked_halt
        total_hidden = total_hidden + cont * (1.0 - halt_accum) * hidden
        ponder_total = ponder_total + (-time_penalty * jnp.mean(total_remainder))
        h_prev = total_hidden
        outs.append(total_hidden)
    return jnp.stack(outs), ponder_total


def _ref_forward(inputs, layer_params, *, time_penalty, ponder_eps, time_limit):
    x = inputs
    total = 0.0
    finals = []
    for p in layer_params:
        B = x.shape[1]
        h0 = jnp.zeros((B, p["whh"].shape[0]), jnp.float32)
        x, ponder = _ref_layer(x, h0, p, time_penalty, ponder_eps, time_limit)
        total = total + ponder
        finals.append(x[-1])
    return x, jnp.stack(finals), total


# ----------------------------------------------------------------------------
# Deterministic parameter init (shapes per AdaptiveCellWrapper / RNNCell).
# ----------------------------------------------------------------------------
def init_layer_params(key, in_size, hidden_size, initial_halting_bias=-1.0):
    # Wrapped cell is an RNNCell(input_size=in_size+1, hidden_size).
    k = jax.random.split(key, 6)
    bound = 1.0 / np.sqrt(hidden_size)
    u = lambda kk, shape: jax.random.uniform(
        kk, shape, jnp.float32, minval=-bound, maxval=bound)
    w_ih_t = u(k[0], (in_size + 1, hidden_size))   # (D+1, H) = W_ih^T
    return {
        "wx": w_ih_t[:in_size],                           # (D, H)
        "wflag": w_ih_t[in_size:in_size + 1],             # (1, H) flag column
        "whh": u(k[1], (hidden_size, hidden_size)),       # (H, H) = W_hh^T
        "bih": u(k[2], (1, hidden_size)),
        "bhh": u(k[3], (1, hidden_size)),
        "whalt": u(k[4], (1, hidden_size)),               # Linear(H,1).weight
        "bhalt": jnp.full((1, 1), initial_halting_bias, jnp.float32),
    }


if __name__ == "__main__":
    SEQ, BATCH, IN_SIZE, HIDDEN = 6, 4, 16, 32
    NUM_LAYERS = 2
    TIME_PENALTY = 0.01
    PONDER_EPS = 0.01
    TIME_LIMIT = 8

    root = jax.random.PRNGKey(0)
    kx, *kl = jax.random.split(root, 1 + NUM_LAYERS)
    x = jax.random.normal(kx, (SEQ, BATCH, IN_SIZE), jnp.float32)

    layer_params = []
    in_size = IN_SIZE
    for i in range(NUM_LAYERS):
        layer_params.append(init_layer_params(kl[i], in_size, HIDDEN))
        in_size = HIDDEN

    outputs, hiddens, ponder = cell_unroll_forward(
        x, None, layer_params,
        time_penalty=TIME_PENALTY, ponder_eps=PONDER_EPS,
        time_limit=TIME_LIMIT, batch_first=False,
    )
    jax.block_until_ready((outputs, hiddens, ponder))

    ref_out, ref_hid, ref_ponder = _ref_forward(
        x, layer_params,
        time_penalty=TIME_PENALTY, ponder_eps=PONDER_EPS, time_limit=TIME_LIMIT,
    )
    np.testing.assert_allclose(np.asarray(outputs), np.asarray(ref_out),
                               rtol=1e-4, atol=1e-4)
    np.testing.assert_allclose(np.asarray(hiddens), np.asarray(ref_hid),
                               rtol=1e-4, atol=1e-4)
    np.testing.assert_allclose(np.asarray(ponder), np.asarray(ref_ponder),
                               rtol=1e-4, atol=1e-4)
    assert outputs.shape == (SEQ, BATCH, HIDDEN)
    assert hiddens.shape == (NUM_LAYERS, BATCH, HIDDEN)
    assert ponder.shape == ()

    print("KERNEL_OK")
</pallas_src>

<mosaic_0001>
module attributes {stable_mosaic.version = 11 : i64} {
  func.func @_adaptive_layer_kernel(%arg0: i32, %arg1: i32, %arg2: memref<6x8x16xf32, #tpu.memory_space<vmem>>, %arg3: memref<8x128xf32, #tpu.memory_space<vmem>>, %arg4: memref<16x128xf32, #tpu.memory_space<vmem>>, %arg5: memref<1x128xf32, #tpu.memory_space<vmem>>, %arg6: memref<128x128xf32, #tpu.memory_space<vmem>>, %arg7: memref<1x128xf32, #tpu.memory_space<vmem>>, %arg8: memref<1x128xf32, #tpu.memory_space<vmem>>, %arg9: memref<1x128xf32, #tpu.memory_space<vmem>>, %arg10: memref<1x1xf32, #tpu.memory_space<vmem>>, %arg11: memref<6x8x128xf32, #tpu.memory_space<vmem>>, %arg12: memref<1x1x128xf32, #tpu.memory_space<vmem>>, %arg13: memref<8x128xf32, #tpu.memory_space<vmem>>, %arg14: memref<48x128xf32, #tpu.memory_space<vmem>>, %arg15: memref<8x1xf32, #tpu.memory_space<vmem>>) attributes {dimension_semantics = [#tpu.dimension_semantics<parallel>, #tpu.dimension_semantics<arbitrary>], iteration_bounds = array<i64: 1, 1>, scalar_prefetch = 0 : i64, scratch_operands = 3 : i64, tpu.core_type = #tpu.core_type<tc>, window_params = [{transform_indices = @transform_0, window_bounds = array<i64: 6, 8, 16>}, {transform_indices = @transform_1, window_bounds = array<i64: 8, 128>}, {pipeline_mode = #tpu.pipeline_mode<synchronous>, transform_indices = @transform_2, window_bounds = array<i64: 16, 128>}, {pipeline_mode = #tpu.pipeline_mode<synchronous>, transform_indices = @transform_3, window_bounds = array<i64: 1, 128>}, {pipeline_mode = #tpu.pipeline_mode<synchronous>, transform_indices = @transform_4, window_bounds = array<i64: 128, 128>}, {pipeline_mode = #tpu.pipeline_mode<synchronous>, transform_indices = @transform_5, window_bounds = array<i64: 1, 128>}, {pipeline_mode = #tpu.pipeline_mode<synchronous>, transform_indices = @transform_6, window_bounds = array<i64: 1, 128>}, {pipeline_mode = #tpu.pipeline_mode<synchronous>, transform_indices = @transform_7, window_bounds = array<i64: 1, 128>}, {pipeline_mode = #tpu.pipeline_mode<synchronous>, transform_indices = @transform_8, window_bounds = array<i64: 1, 1>}, {transform_indices = @transform_9, window_bounds = array<i64: 6, 8, 128>}, {transform_indices = @transform_10, window_bounds = array<i64: 1, 1, 128>}]} {
    %c0_i32 = arith.constant 0 : i32
    %0 = arith.cmpi eq, %arg1, %c0_i32 : i32
    %1 = arith.extui %0 : i1 to i32
    %c0_i32_0 = arith.constant 0 : i32
    %2 = arith.cmpi ne, %1, %c0_i32_0 : i32
    scf.if %2 {
      %c0_33 = arith.constant 0 : index
      %c0_34 = arith.constant 0 : index
      %29 = vector.load %arg3[%c0_33, %c0_34] : memref<8x128xf32, #tpu.memory_space<vmem>>, vector<8x128xf32>
      %c0_35 = arith.constant 0 : index
      %c0_36 = arith.constant 0 : index
      %30 = vector.load %arg13[%c0_35, %c0_36] : memref<8x128xf32, #tpu.memory_space<vmem>>, vector<8x128xf32>
      tpu.vector_store %arg13[%c0_35, %c0_36], %29 {strides = array<i32>} : memref<8x128xf32, #tpu.memory_space<vmem>>, vector<8x128xf32>,
      %cst_37 = arith.constant 0.000000e+00 : f32
      %31 = vector.broadcast %cst_37 : f32 to vector<8x1xf32>
      %c0_38 = arith.constant 0 : index
      %c0_39 = arith.constant 0 : index
      %32 = vector.load %arg15[%c0_38, %c0_39] : memref<8x1xf32, #tpu.memory_space<vmem>>, vector<8x1xf32>
      tpu.vector_store %arg15[%c0_38, %c0_39], %31 {strides = array<i32>} : memref<8x1xf32, #tpu.memory_space<vmem>>, vector<8x1xf32>,
    } else {
    }
    %c0 = arith.constant 0 : index
    %c0_1 = arith.constant 0 : index
    %3 = vector.load %arg5[%c0, %c0_1] : memref<1x128xf32, #tpu.memory_space<vmem>>, vector<1x128xf32>
    %c0_2 = arith.constant 0 : index
    %c0_3 = arith.constant 0 : index
    %4 = vector.load %arg6[%c0_2, %c0_3] : memref<128x128xf32, #tpu.memory_space<vmem>>, vector<128x128xf32>
    %c0_4 = arith.constant 0 : index
    %c0_5 = arith.constant 0 : index
    %5 = vector.load %arg7[%c0_4, %c0_5] : memref<1x128xf32, #tpu.memory_space<vmem>>, vector<1x128xf32>
    %c0_6 = arith.constant 0 : index
    %c0_7 = arith.constant 0 : index
    %6 = vector.load %arg8[%c0_6, %c0_7] : memref<1x128xf32, #tpu.memory_space<vmem>>, vector<1x128xf32>
    %7 = arith.addf %5, %6 : vector<1x128xf32>
    %c0_8 = arith.constant 0 : index
    %c0_9 = arith.constant 0 : index
    %8 = vector.load %arg9[%c0_8, %c0_9] : memref<1x128xf32, #tpu.memory_space<vmem>>, vector<1x128xf32>
    %c0_10 = arith.constant 0 : index
    %c0_11 = arith.constant 0 : index
    %9 = vector.load %arg10[%c0_10, %c0_11] : memref<1x1xf32, #tpu.memory_space<vmem>>, vector<1x1xf32>
    %10 = vector.extract %9[0, 0] : f32 from vector<1x1xf32>
    %c0_12 = arith.constant 0 : index
    %c0_13 = arith.constant 0 : index
    %c0_14 = arith.constant 0 : index
    %11 = vector.load %arg2[%c0_12, %c0_13, %c0_14] : memref<6x8x16xf32, #tpu.memory_space<vmem>>, vector<6x8x16xf32>
    %12 = vector.shape_cast %11 : vector<6x8x16xf32> to vector<48x16xf32>
    %c0_15 = arith.constant 0 : index
    %c0_16 = arith.constant 0 : index
    %13 = vector.load %arg4[%c0_15, %c0_16] : memref<16x128xf32, #tpu.memory_space<vmem>>, vector<16x128xf32>
    %cst = arith.constant dense<0.000000e+00> : vector<48x128xf32>
    %14 = tpu.matmul %12, %13, %cst {dimension_numbers = #tpu.dot_dimension_numbers<[1], [0], [0], [1], [0, 0, 1, 1], [], []>} : vector<48x16xf32>, vector<16x128xf32>, vector<48x128xf32> -> vector<48x128xf32>
    %15 = vector.broadcast %7 : vector<1x128xf32> to vector<48x128xf32>
    %16 = arith.addf %14, %15 : vector<48x128xf32>
    %c0_17 = arith.constant 0 : index
    %c0_18 = arith.constant 0 : index
    %17 = vector.load %arg14[%c0_17, %c0_18] : memref<48x128xf32, #tpu.memory_space<vmem>>, vector<48x128xf32>
    tpu.vector_store %arg14[%c0_17, %c0_18], %16 {strides = array<i32>} : memref<48x128xf32, #tpu.memory_space<vmem>>, vector<48x128xf32>,
    %c0_19 = arith.constant 0 : index
    %c0_20 = arith.constant 0 : index
    %18 = vector.load %arg13[%c0_19, %c0_20] : memref<8x128xf32, #tpu.memory_space<vmem>>, vector<8x128xf32>
    %cst_21 = arith.constant 0.000000e+00 : f32
    %19 = vector.broadcast %cst_21 : f32 to vector<8x1xf32>
    %cst_22 = arith.constant 9.900000e-01 : f32
    %c0_i32_23 = arith.constant 0 : i32
    %c6_i32 = arith.constant 6 : i32
    %20 = arith.addi %c0_i32_23, %c6_i32 : i32
    %c1_i32 = arith.constant 1 : i32
    %21:2 = scf.for %arg16 = %c0_i32_23 to %20 step %c1_i32 iter_args(%arg17 = %18, %arg18 = %19) -> (vector<8x128xf32>, vector<8x1xf32>)  : i32 {
      %c8_i32 = arith.constant 8 : i32
      %29 = arith.muli %arg16, %c8_i32 : i32
      %30 = tpu.assume_multiple %29, 8 : i32
      %31 = arith.index_cast %30 : i32 to index
      %c0_33 = arith.constant 0 : index
      %32 = vector.load %arg14[%31, %c0_33] : memref<48x128xf32, #tpu.memory_space<vmem>>, vector<8x128xf32>
      %33 = vector.broadcast %3 : vector<1x128xf32> to vector<8x128xf32>
      %34 = arith.addf %32, %33 : vector<8x128xf32>
      %cst_34 = arith.constant dense<0.000000e+00> : vector<8x128xf32>
      %35 = tpu.matmul %arg17, %4, %cst_34 {dimension_numbers = #tpu.dot_dimension_numbers<[1], [0], [0], [1], [0, 0, 1, 1], [], []>} : vector<8x128xf32>, vector<128x128xf32>, vector<8x128xf32> -> vector<8x128xf32>
      %36 = arith.addf %34, %35 : vector<8x128xf32>
      %37 = math.tanh %36 : vector<8x128xf32>
      %cst_35 = arith.constant 0.000000e+00 : f32
      %38 = vector.broadcast %cst_35 : f32 to vector<8x1xf32>
      %cst_36 = arith.constant 0.000000e+00 : f32
      %39 = vector.broadcast %cst_36 : f32 to vector<8x128xf32>
      %cst_37 = arith.constant 1.000000e+00 : f32
      %40 = vector.broadcast %cst_37 : f32 to vector<8x1xf32>
      %41 = vector.broadcast %8 : vector<1x128xf32> to vector<8x128xf32>
      %42 = arith.mulf %37, %41 : vector<8x128xf32>
      %cst_38 = arith.constant dense<0.000000e+00> : vector<8xf32>
      %43 = vector.multi_reduction <add>, %42, %cst_38 [1] : vector<8x128xf32> to vector<8xf32>
      %44 = vector.shape_cast %43 : vector<8xf32> to vector<8x1xf32>
      %45 = vector.broadcast %10 : f32 to vector<8x1xf32>
      %46 = arith.addf %44, %45 : vector<8x1xf32>
      %47 = arith.negf %46 : vector<8x1xf32>
      %48 = math.exp %47 : vector<8x1xf32>
      %cst_39 = arith.constant 1.000000e+00 : f32
      %49 = vector.broadcast %cst_39 : f32 to vector<8x1xf32>
      %50 = arith.addf %49, %48 : vector<8x1xf32>
      %51 = arith.divf %49, %50 : vector<8x1xf32>
      %52 = arith.mulf %40, %51 : vector<8x1xf32>
      %53 = arith.addf %38, %52 : vector<8x1xf32>
      %54 = arith.addf %53, %51 : vector<8x1xf32>
      %55 = vector.broadcast %cst_22 : f32 to vector<8x1xf32>
      %56 = arith.cmpf ogt, %54, %55 : vector<8x1xf32>
      %57 = arith.extui %56 : vector<8x1xi1> to vector<8x1xi32>
      %58 = arith.sitofp %57 : vector<8x1xi32> to vector<8x1xf32>
      %59 = arith.mulf %40, %58 : vector<8x1xf32>
      %cst_40 = arith.constant 1.000000e+00 : f32
      %60 = vector.broadcast %cst_40 : f32 to vector<8x1xf32>
      %61 = arith.subf %60, %59 : vector<8x1xf32>
      %62 = arith.mulf %40, %61 : vector<8x1xf32>
      %cst_41 = arith.constant 1.000000e+00 : f32
      %63 = vector.broadcast %cst_41 : f32 to vector<8x1xf32>
      %64 = arith.subf %63, %53 : vector<8x1xf32>
      %65 = arith.mulf %59, %64 : vector<8x1xf32>
      %66 = arith.addf %52, %65 : vector<8x1xf32>
      %67 = vector.broadcast %66 : vector<8x1xf32> to vector<8x128xf32>
      %68 = arith.mulf %67, %37 : vector<8x128xf32>
      %69 = arith.addf %39, %68 : vector<8x128xf32>
      %70 = arith.addf %38, %52 : vector<8x1xf32>
      %c0_i32_42 = arith.constant 0 : i32
      %cst_43 = arith.constant dense<0.000000e+00> : vector<8x128xf32>
      %71 = tpu.matmul %37, %4, %cst_43 {dimension_numbers = #tpu.dot_dimension_numbers<[1], [0], [0], [1], [0, 0, 1, 1], [], []>} : vector<8x128xf32>, vector<128x128xf32>, vector<8x128xf32> -> vector<8x128xf32>
      %72 = arith.addf %32, %71 : vector<8x128xf32>
      %73 = math.tanh %72 : vector<8x128xf32>
      %74 = vector.broadcast %8 : vector<1x128xf32> to vector<8x128xf32>
      %75 = arith.mulf %73, %74 : vector<8x128xf32>
      %cst_44 = arith.constant dense<0.000000e+00> : vector<8xf32>
      %76 = vector.multi_reduction <add>, %75, %cst_44 [1] : vector<8x128xf32> to vector<8xf32>
      %77 = vector.shape_cast %76 : vector<8xf32> to vector<8x1xf32>
      %78 = vector.broadcast %10 : f32 to vector<8x1xf32>
      %79 = arith.addf %77, %78 : vector<8x1xf32>
      %80 = arith.negf %79 : vector<8x1xf32>
      %81 = math.exp %80 : vector<8x1xf32>
      %cst_45 = arith.constant 1.000000e+00 : f32
      %82 = vector.broadcast %cst_45 : f32 to vector<8x1xf32>
      %83 = arith.addf %82, %81 : vector<8x1xf32>
      %84 = arith.divf %82, %83 : vector<8x1xf32>
      %85 = arith.mulf %62, %84 : vector<8x1xf32>
      %86 = arith.addf %53, %85 : vector<8x1xf32>
      %87 = arith.addf %86, %84 : vector<8x1xf32>
      %88 = vector.broadcast %cst_22 : f32 to vector<8x1xf32>
      %89 = arith.cmpf ogt, %87, %88 : vector<8x1xf32>
      %90 = arith.extui %89 : vector<8x1xi1> to vector<8x1xi32>
      %91 = arith.sitofp %90 : vector<8x1xi32> to vector<8x1xf32>
      %92 = arith.mulf %62, %91 : vector<8x1xf32>
      %cst_46 = arith.constant 1.000000e+00 : f32
      %93 = vector.broadcast %cst_46 : f32 to vector<8x1xf32>
      %94 = arith.subf %93, %92 : vector<8x1xf32>
      %95 = arith.mulf %62, %94 : vector<8x1xf32>
      %cst_47 = arith.constant 1.000000e+00 : f32
      %96 = vector.broadcast %cst_47 : f32 to vector<8x1xf32>
      %97 = arith.subf %96, %86 : vector<8x1xf32>
      %98 = arith.mulf %92, %97 : vector<8x1xf32>
      %99 = arith.addf %85, %98 : vector<8x1xf32>
      %100 = vector.broadcast %99 : vector<8x1xf32> to vector<8x128xf32>
      %101 = arith.mulf %100, %73 : vector<8x128xf32>
      %102 = arith.addf %69, %101 : vector<8x128xf32>
      %103 = arith.addf %70, %85 : vector<8x1xf32>
      %c1_i32_48 = arith.constant 1 : i32
      %cst_49 = arith.constant dense<0.000000e+00> : vector<8x128xf32>
      %104 = tpu.matmul %73, %4, %cst_49 {dimension_numbers = #tpu.dot_dimension_numbers<[1], [0], [0], [1], [0, 0, 1, 1], [], []>} : vector<8x128xf32>, vector<128x128xf32>, vector<8x128xf32> -> vector<8x128xf32>
      %105 = arith.addf %32, %104 : vector<8x128xf32>
      %106 = math.tanh %105 : vector<8x128xf32>
      %107 = vector.broadcast %8 : vector<1x128xf32> to vector<8x128xf32>
      %108 = arith.mulf %106, %107 : vector<8x128xf32>
      %cst_50 = arith.constant dense<0.000000e+00> : vector<8xf32>
      %109 = vector.multi_reduction <add>, %108, %cst_50 [1] : vector<8x128xf32> to vector<8xf32>
      %110 = vector.shape_cast %109 : vector<8xf32> to vector<8x1xf32>
      %111 = vector.broadcast %10 : f32 to vector<8x1xf32>
      %112 = arith.addf %110, %111 : vector<8x1xf32>
      %113 = arith.negf %112 : vector<8x1xf32>
      %114 = math.exp %113 : vector<8x1xf32>
      %cst_51 = arith.constant 1.000000e+00 : f32
      %115 = vector.broadcast %cst_51 : f32 to vector<8x1xf32>
      %116 = arith.addf %115, %114 : vector<8x1xf32>
      %117 = arith.divf %115, %116 : vector<8x1xf32>
      %118 = arith.mulf %95, %117 : vector<8x1xf32>
      %119 = arith.addf %86, %118 : vector<8x1xf32>
      %120 = arith.addf %119, %117 : vector<8x1xf32>
      %121 = vector.broadcast %cst_22 : f32 to vector<8x1xf32>
      %122 = arith.cmpf ogt, %120, %121 : vector<8x1xf32>
      %123 = arith.extui %122 : vector<8x1xi1> to vector<8x1xi32>
      %124 = arith.sitofp %123 : vector<8x1xi32> to vector<8x1xf32>
      %125 = arith.mulf %95, %124 : vector<8x1xf32>
      %cst_52 = arith.constant 1.000000e+00 : f32
      %126 = vector.broadcast %cst_52 : f32 to vector<8x1xf32>
      %127 = arith.subf %126, %125 : vector<8x1xf32>
      %128 = arith.mulf %95, %127 : vector<8x1xf32>
      %cst_53 = arith.constant 1.000000e+00 : f32
      %129 = vector.broadcast %cst_53 : f32 to vector<8x1xf32>
      %130 = arith.subf %129, %119 : vector<8x1xf32>
      %131 = arith.mulf %125, %130 : vector<8x1xf32>
      %132 = arith.addf %118, %131 : vector<8x1xf32>
      %133 = vector.broadcast %132 : vector<8x1xf32> to vector<8x128xf32>
      %134 = arith.mulf %133, %106 : vector<8x128xf32>
      %135 = arith.addf %102, %134 : vector<8x128xf32>
      %136 = arith.addf %103, %118 : vector<8x1xf32>
      %c2_i32 = arith.constant 2 : i32
      %cst_54 = arith.constant dense<0.000000e+00> : vector<8x128xf32>
      %137 = tpu.matmul %106, %4, %cst_54 {dimension_numbers = #tpu.dot_dimension_numbers<[1], [0], [0], [1], [0, 0, 1, 1], [], []>} : vector<8x128xf32>, vector<128x128xf32>, vector<8x128xf32> -> vector<8x128xf32>
      %138 = arith.addf %32, %137 : vector<8x128xf32>
      %139 = math.tanh %138 : vector<8x128xf32>
      %140 = vector.broadcast %8 : vector<1x128xf32> to vector<8x128xf32>
      %141 = arith.mulf %139, %140 : vector<8x128xf32>
      %cst_55 = arith.constant dense<0.000000e+00> : vector<8xf32>
      %142 = vector.multi_reduction <add>, %141, %cst_55 [1] : vector<8x128xf32> to vector<8xf32>
      %143 = vector.shape_cast %142 : vector<8xf32> to vector<8x1xf32>
      %144 = vector.broadcast %10 : f32 to vector<8x1xf32>
      %145 = arith.addf %143, %144 : vector<8x1xf32>
      %146 = arith.negf %145 : vector<8x1xf32>
      %147 = math.exp %146 : vector<8x1xf32>
      %cst_56 = arith.constant 1.000000e+00 : f32
      %148 = vector.broadcast %cst_56 : f32 to vector<8x1xf32>
      %149 = arith.addf %148, %147 : vector<8x1xf32>
      %150 = arith.divf %148, %149 : vector<8x1xf32>
      %151 = arith.mulf %128, %150 : vector<8x1xf32>
      %152 = arith.addf %119, %151 : vector<8x1xf32>
      %153 = arith.addf %152, %150 : vector<8x1xf32>
      %154 = vector.broadcast %cst_22 : f32 to vector<8x1xf32>
      %155 = arith.cmpf ogt, %153, %154 : vector<8x1xf32>
      %156 = arith.extui %155 : vector<8x1xi1> to vector<8x1xi32>
      %157 = arith.sitofp %156 : vector<8x1xi32> to vector<8x1xf32>
      %158 = arith.mulf %128, %157 : vector<8x1xf32>
      %cst_57 = arith.constant 1.000000e+00 : f32
      %159 = vector.broadcast %cst_57 : f32 to vector<8x1xf32>
      %160 = arith.subf %159, %158 : vector<8x1xf32>
      %161 = arith.mulf %128, %160 : vector<8x1xf32>
      %cst_58 = arith.constant 1.000000e+00 : f32
      %162 = vector.broadcast %cst_58 : f32 to vector<8x1xf32>
      %163 = arith.subf %162, %152 : vector<8x1xf32>
      %164 = arith.mulf %158, %163 : vector<8x1xf32>
      %165 = arith.addf %151, %164 : vector<8x1xf32>
      %166 = vector.broadcast %165 : vector<8x1xf32> to vector<8x128xf32>
      %167 = arith.mulf %166, %139 : vector<8x128xf32>
      %168 = arith.addf %135, %167 : vector<8x128xf32>
      %169 = arith.addf %136, %151 : vector<8x1xf32>
      %c3_i32 = arith.constant 3 : i32
      %cst_59 = arith.constant dense<0.000000e+00> : vector<8x128xf32>
      %170 = tpu.matmul %139, %4, %cst_59 {dimension_numbers = #tpu.dot_dimension_numbers<[1], [0], [0], [1], [0, 0, 1, 1], [], []>} : vector<8x128xf32>, vector<128x128xf32>, vector<8x128xf32> -> vector<8x128xf32>
      %171 = arith.addf %32, %170 : vector<8x128xf32>
      %172 = math.tanh %171 : vector<8x128xf32>
      %173 = vector.broadcast %8 : vector<1x128xf32> to vector<8x128xf32>
      %174 = arith.mulf %172, %173 : vector<8x128xf32>
      %cst_60 = arith.constant dense<0.000000e+00> : vector<8xf32>
      %175 = vector.multi_reduction <add>, %174, %cst_60 [1] : vector<8x128xf32> to vector<8xf32>
      %176 = vector.shape_cast %175 : vector<8xf32> to vector<8x1xf32>
      %177 = vector.broadcast %10 : f32 to vector<8x1xf32>
      %178 = arith.addf %176, %177 : vector<8x1xf32>
      %179 = arith.negf %178 : vector<8x1xf32>
      %180 = math.exp %179 : vector<8x1xf32>
      %cst_61 = arith.constant 1.000000e+00 : f32
      %181 = vector.broadcast %cst_61 : f32 to vector<8x1xf32>
      %182 = arith.addf %181, %180 : vector<8x1xf32>
      %183 = arith.divf %181, %182 : vector<8x1xf32>
      %184 = arith.mulf %161, %183 : vector<8x1xf32>
      %185 = arith.addf %152, %184 : vector<8x1xf32>
      %186 = arith.addf %185, %183 : vector<8x1xf32>
      %187 = vector.broadcast %cst_22 : f32 to vector<8x1xf32>
      %188 = arith.cmpf ogt, %186, %187 : vector<8x1xf32>
      %189 = arith.extui %188 : vector<8x1xi1> to vector<8x1xi32>
      %190 = arith.sitofp %189 : vector<8x1xi32> to vector<8x1xf32>
      %191 = arith.mulf %161, %190 : vector<8x1xf32>
      %cst_62 = arith.constant 1.000000e+00 : f32
      %192 = vector.broadcast %cst_62 : f32 to vector<8x1xf32>
      %193 = arith.subf %192, %191 : vector<8x1xf32>
      %194 = arith.mulf %161, %193 : vector<8x1xf32>
      %cst_63 = arith.constant 1.000000e+00 : f32
      %195 = vector.broadcast %cst_63 : f32 to vector<8x1xf32>
      %196 = arith.subf %195, %185 : vector<8x1xf32>
      %197 = arith.mulf %191, %196 : vector<8x1xf32>
      %198 = arith.addf %184, %197 : vector<8x1xf32>
      %199 = vector.broadcast %198 : vector<8x1xf32> to vector<8x128xf32>
      %200 = arith.mulf %199, %172 : vector<8x128xf32>
      %201 = arith.addf %168, %200 : vector<8x128xf32>
      %202 = arith.addf %169, %184 : vector<8x1xf32>
      %c4_i32 = arith.constant 4 : i32
      %cst_64 = arith.constant dense<0.000000e+00> : vector<8x128xf32>
      %203 = tpu.matmul %172, %4, %cst_64 {dimension_numbers = #tpu.dot_dimension_numbers<[1], [0], [0], [1], [0, 0, 1, 1], [], []>} : vector<8x128xf32>, vector<128x128xf32>, vector<8x128xf32> -> vector<8x128xf32>
      %204 = arith.addf %32, %203 : vector<8x128xf32>
      %205 = math.tanh %204 : vector<8x128xf32>
      %206 = vector.broadcast %8 : vector<1x128xf32> to vector<8x128xf32>
      %207 = arith.mulf %205, %206 : vector<8x128xf32>
      %cst_65 = arith.constant dense<0.000000e+00> : vector<8xf32>
      %208 = vector.multi_reduction <add>, %207, %cst_65 [1] : vector<8x128xf32> to vector<8xf32>
      %209 = vector.shape_cast %208 : vector<8xf32> to vector<8x1xf32>
      %210 = vector.broadcast %10 : f32 to vector<8x1xf32>
      %211 = arith.addf %209, %210 : vector<8x1xf32>
      %212 = arith.negf %211 : vector<8x1xf32>
      %213 = math.exp %212 : vector<8x1xf32>
      %cst_66 = arith.constant 1.000000e+00 : f32
      %214 = vector.broadcast %cst_66 : f32 to vector<8x1xf32>
      %215 = arith.addf %214, %213 : vector<8x1xf32>
      %216 = arith.divf %214, %215 : vector<8x1xf32>
      %217 = arith.mulf %194, %216 : vector<8x1xf32>
      %218 = arith.addf %185, %217 : vector<8x1xf32>
      %219 = arith.addf %218, %216 : vector<8x1xf32>
      %220 = vector.broadcast %cst_22 : f32 to vector<8x1xf32>
      %221 = arith.cmpf ogt, %219, %220 : vector<8x1xf32>
      %222 = arith.extui %221 : vector<8x1xi1> to vector<8x1xi32>
      %223 = arith.sitofp %222 : vector<8x1xi32> to vector<8x1xf32>
      %224 = arith.mulf %194, %223 : vector<8x1xf32>
      %cst_67 = arith.constant 1.000000e+00 : f32
      %225 = vector.broadcast %cst_67 : f32 to vector<8x1xf32>
      %226 = arith.subf %225, %224 : vector<8x1xf32>
      %227 = arith.mulf %194, %226 : vector<8x1xf32>
      %cst_68 = arith.constant 1.000000e+00 : f32
      %228 = vector.broadcast %cst_68 : f32 to vector<8x1xf32>
      %229 = arith.subf %228, %218 : vector<8x1xf32>
      %230 = arith.mulf %224, %229 : vector<8x1xf32>
      %231 = arith.addf %217, %230 : vector<8x1xf32>
      %232 = vector.broadcast %231 : vector<8x1xf32> to vector<8x128xf32>
      %233 = arith.mulf %232, %205 : vector<8x128xf32>
      %234 = arith.addf %201, %233 : vector<8x128xf32>
      %235 = arith.addf %202, %217 : vector<8x1xf32>
      %c5_i32 = arith.constant 5 : i32
      %cst_69 = arith.constant dense<0.000000e+00> : vector<8x128xf32>
      %236 = tpu.matmul %205, %4, %cst_69 {dimension_numbers = #tpu.dot_dimension_numbers<[1], [0], [0], [1], [0, 0, 1, 1], [], []>} : vector<8x128xf32>, vector<128x128xf32>, vector<8x128xf32> -> vector<8x128xf32>
      %237 = arith.addf %32, %236 : vector<8x128xf32>
      %238 = math.tanh %237 : vector<8x128xf32>
      %239 = vector.broadcast %8 : vector<1x128xf32> to vector<8x128xf32>
      %240 = arith.mulf %238, %239 : vector<8x128xf32>
      %cst_70 = arith.constant dense<0.000000e+00> : vector<8xf32>
      %241 = vector.multi_reduction <add>, %240, %cst_70 [1] : vector<8x128xf32> to vector<8xf32>
      %242 = vector.shape_cast %241 : vector<8xf32> to vector<8x1xf32>
      %243 = vector.broadcast %10 : f32 to vector<8x1xf32>
      %244 = arith.addf %242, %243 : vector<8x1xf32>
      %245 = arith.negf %244 : vector<8x1xf32>
      %246 = math.exp %245 : vector<8x1xf32>
      %cst_71 = arith.constant 1.000000e+00 : f32
      %247 = vector.broadcast %cst_71 : f32 to vector<8x1xf32>
      %248 = arith.addf %247, %246 : vector<8x1xf32>
      %249 = arith.divf %247, %248 : vector<8x1xf32>
      %250 = arith.mulf %227, %249 : vector<8x1xf32>
      %251 = arith.addf %218, %250 : vector<8x1xf32>
      %252 = arith.addf %251, %249 : vector<8x1xf32>
      %253 = vector.broadcast %cst_22 : f32 to vector<8x1xf32>
      %254 = arith.cmpf ogt, %252, %253 : vector<8x1xf32>
      %255 = arith.extui %254 : vector<8x1xi1> to vector<8x1xi32>
      %256 = arith.sitofp %255 : vector<8x1xi32> to vector<8x1xf32>
      %257 = arith.mulf %227, %256 : vector<8x1xf32>
      %cst_72 = arith.constant 1.000000e+00 : f32
      %258 = vector.broadcast %cst_72 : f32 to vector<8x1xf32>
      %259 = arith.subf %258, %257 : vector<8x1xf32>
      %260 = arith.mulf %227, %259 : vector<8x1xf32>
      %cst_73 = arith.constant 1.000000e+00 : f32
      %261 = vector.broadcast %cst_73 : f32 to vector<8x1xf32>
      %262 = arith.subf %261, %251 : vector<8x1xf32>
      %263 = arith.mulf %257, %262 : vector<8x1xf32>
      %264 = arith.addf %250, %263 : vector<8x1xf32>
      %265 = vector.broadcast %264 : vector<8x1xf32> to vector<8x128xf32>
      %266 = arith.mulf %265, %238 : vector<8x128xf32>
      %267 = arith.addf %234, %266 : vector<8x128xf32>
      %268 = arith.addf %235, %250 : vector<8x1xf32>
      %cst_74 = arith.constant 1.000000e+00 : f32
      %269 = vector.broadcast %cst_74 : f32 to vector<8x1xf32>
      %270 = arith.subf %269, %251 : vector<8x1xf32>
      %271 = arith.mulf %260, %270 : vector<8x1xf32>
      %272 = vector.broadcast %271 : vector<8x1xf32> to vector<8x128xf32>
      %273 = arith.mulf %272, %238 : vector<8x128xf32>
      %274 = arith.addf %267, %273 : vector<8x128xf32>
      %275 = arith.index_cast %arg16 : i32 to index
      %c0_75 = arith.constant 0 : index
      %c0_76 = arith.constant 0 : index
      %276 = vector.load %arg11[%275, %c0_75, %c0_76] : memref<6x8x128xf32, #tpu.memory_space<vmem>>, vector<1x8x128xf32>
      %277 = vector.shape_cast %276 : vector<1x8x128xf32> to vector<8x128xf32>
      %278 = vector.shape_cast %274 : vector<8x128xf32> to vector<1x8x128xf32>
      tpu.vector_store %arg11[%275, %c0_75, %c0_76], %278 {strides = array<i32>} : memref<6x8x128xf32, #tpu.memory_space<vmem>>, vector<1x8x128xf32>,
      %c6_i32_77 = arith.constant 6 : i32
      %279 = arith.muli %arg1, %c6_i32_77 : i32
      %280 = arith.addi %279, %arg16 : i32
      %c6_i32_78 = arith.constant 6 : i32
      %281 = arith.cmpi slt, %280, %c6_i32_78 : i32
      %282 = arith.extui %281 : i1 to i32
      %283 = arith.sitofp %282 : i32 to f32
      %284 = vector.broadcast %283 : f32 to vector<8x1xf32>
      %285 = arith.mulf %284, %268 : vector<8x1xf32>
      %286 = arith.addf %arg18, %285 : vector<8x1xf32>
      scf.yield %274, %286 : vector<8x128xf32>, vector<8x1xf32>
    }
    %c6_i32_24 = arith.constant 6 : i32
    %c0_25 = arith.constant 0 : index
    %c0_26 = arith.constant 0 : index
    %22 = vector.load %arg13[%c0_25, %c0_26] : memref<8x128xf32, #tpu.memory_space<vmem>>, vector<8x128xf32>
    tpu.vector_store %arg13[%c0_25, %c0_26], %21#0 {strides = array<i32>} : memref<8x128xf32, #tpu.memory_space<vmem>>, vector<8x128xf32>,
    %c0_27 = arith.constant 0 : index
    %c0_28 = arith.constant 0 : index
    %23 = vector.load %arg15[%c0_27, %c0_28] : memref<8x1xf32, #tpu.memory_space<vmem>>, vector<8x1xf32>
    %24 = arith.addf %23, %21#1 : vector<8x1xf32>
    %c0_29 = arith.constant 0 : index
    %c0_30 = arith.constant 0 : index
    %25 = vector.load %arg15[%c0_29, %c0_30] : memref<8x1xf32, #tpu.memory_space<vmem>>, vector<8x1xf32>
    tpu.vector_store %arg15[%c0_29, %c0_30], %24 {strides = array<i32>} : memref<8x1xf32, #tpu.memory_space<vmem>>, vector<8x1xf32>,
    %c0_i32_31 = arith.constant 0 : i32
    %26 = arith.cmpi eq, %arg1, %c0_i32_31 : i32
    %27 = arith.extui %26 : i1 to i32
    %c0_i32_32 = arith.constant 0 : i32
    %28 = arith.cmpi ne, %27, %c0_i32_32 : i32
    scf.if %28 {
      %29 = tpu.iota {dimensions = array<i32: 0>} : vector<8x1xi32>
      %c8_i32 = arith.constant 8 : i32
      %30 = arith.muli %arg0, %c8_i32 : i32
      %31 = vector.broadcast %30 : i32 to vector<8x1xi32>
      %32 = arith.addi %29, %31 : vector<8x1xi32>
      %c4_i32 = arith.constant 4 : i32
      %33 = vector.broadcast %c4_i32 : i32 to vector<8x1xi32>
      %34 = arith.cmpi slt, %32, %33 : vector<8x1xi32>
      %35 = arith.extui %34 : vector<8x1xi1> to vector<8x1xi32>
      %36 = arith.sitofp %35 : vector<8x1xi32> to vector<8x1xf32>
      %c0_33 = arith.constant 0 : index
      %c0_34 = arith.constant 0 : index
      %37 = vector.load %arg15[%c0_33, %c0_34] : memref<8x1xf32, #tpu.memory_space<vmem>>, vector<8x1xf32>
      %38 = arith.mulf %37, %36 : vector<8x1xf32>
      %39 = vector.shape_cast %38 : vector<8x1xf32> to vector<1x8x1xf32>
      %cst_35 = arith.constant dense<0.000000e+00> : vector<1xf32>
      %40 = vector.multi_reduction <add>, %39, %cst_35 [1, 2] : vector<1x8x1xf32> to vector<1xf32>
      %41 = vector.shape_cast %40 : vector<1xf32> to vector<1x1x1xf32>
      %42 = vector.extract %41[0, 0, 0] : f32 from vector<1x1x1xf32>
      %cst_36 = arith.constant -2.500000e-03 : f32
      %43 = arith.mulf %cst_36, %42 : f32
      %44 = vector.broadcast %43 : f32 to vector<1x1x128xf32>
      %c0_37 = arith.constant 0 : index
      %c0_38 = arith.constant 0 : index
      %c0_39 = arith.constant 0 : index
      %45 = vector.load %arg12[%c0_37, %c0_38, %c0_39] : memref<1x1x128xf32, #tpu.memory_space<vmem>>, vector<1x1x128xf32>
      tpu.vector_store %arg12[%c0_37, %c0_38, %c0_39], %44 {strides = array<i32>} : memref<1x1x128xf32, #tpu.memory_space<vmem>>, vector<1x1x128xf32>,
    } else {
    }
    return
  }
  func.func @transform_0(%arg0: i32, %arg1: i32) -> (i32, i32, i32) {
    %c0_i32 = arith.constant 0 : i32
    %c0_i32_0 = arith.constant 0 : i32
    return %arg1, %arg0, %c0_i32 : i32, i32, i32
  }
  func.func @transform_1(%arg0: i32, %arg1: i32) -> (i32, i32) {
    %c0_i32 = arith.constant 0 : i32
    %c0_i32_0 = arith.constant 0 : i32
    return %arg0, %c0_i32 : i32, i32
  }
  func.func @transform_2(%arg0: i32, %arg1: i32) -> (i32, i32) {
    %c0_i32 = arith.constant 0 : i32
    %c0_i32_0 = arith.constant 0 : i32
    %c0_i32_1 = arith.constant 0 : i32
    return %c0_i32, %c0_i32_0 : i32, i32
  }
  func.func @transform_3(%arg0: i32, %arg1: i32) -> (i32, i32) {
    %c0_i32 = arith.constant 0 : i32
    %c0_i32_0 = arith.constant 0 : i32
    %c0_i32_1 = arith.constant 0 : i32
    return %c0_i32, %c0_i32_0 : i32, i32
  }
  func.func @transform_4(%arg0: i32, %arg1: i32) -> (i32, i32) {
    %c0_i32 = arith.constant 0 : i32
    %c0_i32_0 = arith.constant 0 : i32
    %c0_i32_1 = arith.constant 0 : i32
    return %c0_i32, %c0_i32_0 : i32, i32
  }
  func.func @transform_5(%arg0: i32, %arg1: i32) -> (i32, i32) {
    %c0_i32 = arith.constant 0 : i32
    %c0_i32_0 = arith.constant 0 : i32
    %c0_i32_1 = arith.constant 0 : i32
    return %c0_i32, %c0_i32_0 : i32, i32
  }
  func.func @transform_6(%arg0: i32, %arg1: i32) -> (i32, i32) {
    %c0_i32 = arith.constant 0 : i32
    %c0_i32_0 = arith.constant 0 : i32
    %c0_i32_1 = arith.constant 0 : i32
    return %c0_i32, %c0_i32_0 : i32, i32
  }
  func.func @transform_7(%arg0: i32, %arg1: i32) -> (i32, i32) {
    %c0_i32 = arith.constant 0 : i32
    %c0_i32_0 = arith.constant 0 : i32
    %c0_i32_1 = arith.constant 0 : i32
    return %c0_i32, %c0_i32_0 : i32, i32
  }
  func.func @transform_8(%arg0: i32, %arg1: i32) -> (i32, i32) {
    %c0_i32 = arith.constant 0 : i32
    %c0_i32_0 = arith.constant 0 : i32
    %c0_i32_1 = arith.constant 0 : i32
    return %c0_i32, %c0_i32_0 : i32, i32
  }
  func.func @transform_9(%arg0: i32, %arg1: i32) -> (i32, i32, i32) {
    %c0_i32 = arith.constant 0 : i32
    %c0_i32_0 = arith.constant 0 : i32
    return %arg1, %arg0, %c0_i32 : i32, i32, i32
  }
  func.func @transform_10(%arg0: i32, %arg1: i32) -> (i32, i32, i32) {
    %c0_i32 = arith.constant 0 : i32
    %c0_i32_0 = arith.constant 0 : i32
    %c0_i32_1 = arith.constant 0 : i32
    return %arg0, %c0_i32, %c0_i32_0 : i32, i32, i32
  }
}

module attributes {stable_mosaic.version = 11 : i64} {
  func.func @_adaptive_layer_kernel(%arg0: i32, %arg1: i32, %arg2: memref<6x8x16xf32, #tpu.memory_space<vmem>>, %arg3: memref<8x128xf32, #tpu.memory_space<vmem>>, %arg4: memref<16x128xf32, #tpu.memory_space<vmem>>, %arg5: memref<1x128xf32, #tpu.memory_space<vmem>>, %arg6: memref<128x128xf32, #tpu.memory_space<vmem>>, %arg7: memref<1x128xf32, #tpu.memory_space<vmem>>, %arg8: memref<1x128xf32, #tpu.memory_space<vmem>>, %arg9: memref<1x128xf32, #tpu.memory_space<vmem>>, %arg10: memref<1x1xf32, #tpu.memory_space<vmem>>, %arg11: memref<6x8x128xf32, #tpu.memory_space<vmem>>, %arg12: memref<1x1x128xf32, #tpu.memory_space<vmem>>, %arg13: memref<8x128xf32, #tpu.memory_space<vmem>>, %arg14: memref<48x128xf32, #tpu.memory_space<vmem>>, %arg15: memref<8x1xf32, #tpu.memory_space<vmem>>) attributes {dimension_semantics = [#tpu.dimension_semantics<parallel>, #tpu.dimension_semantics<arbitrary>], iteration_bounds = array<i64: 1, 1>, scalar_prefetch = 0 : i64, scratch_operands = 3 : i64, tpu.core_type = #tpu.core_type<tc>, window_params = [{transform_indices = @transform_0, window_bounds = array<i64: 6, 8, 16>}, {transform_indices = @transform_1, window_bounds = array<i64: 8, 128>}, {pipeline_mode = #tpu.pipeline_mode<synchronous>, transform_indices = @transform_2, window_bounds = array<i64: 16, 128>}, {pipeline_mode = #tpu.pipeline_mode<synchronous>, transform_indices = @transform_3, window_bounds = array<i64: 1, 128>}, {pipeline_mode = #tpu.pipeline_mode<synchronous>, transform_indices = @transform_4, window_bounds = array<i64: 128, 128>}, {pipeline_mode = #tpu.pipeline_mode<synchronous>, transform_indices = @transform_5, window_bounds = array<i64: 1, 128>}, {pipeline_mode = #tpu.pipeline_mode<synchronous>, transform_indices = @transform_6, window_bounds = array<i64: 1, 128>}, {pipeline_mode = #tpu.pipeline_mode<synchronous>, transform_indices = @transform_7, window_bounds = array<i64: 1, 128>}, {pipeline_mode = #tpu.pipeline_mode<synchronous>, transform_indices = @transform_8, window_bounds = array<i64: 1, 1>}, {transform_indices = @transform_9, window_bounds = array<i64: 6, 8, 128>}, {transform_indices = @transform_10, window_bounds = array<i64: 1, 1, 128>}]} {
    %c0_i32 = arith.constant 0 : i32
    %0 = arith.cmpi eq, %arg1, %c0_i32 : i32
    %1 = arith.extui %0 : i1 to i32
    %c0_i32_0 = arith.constant 0 : i32
    %2 = arith.cmpi ne, %1, %c0_i32_0 : i32
    scf.if %2 {
      %c0_33 = arith.constant 0 : index
      %c0_34 = arith.constant 0 : index
      %29 = vector.load %arg3[%c0_33, %c0_34] : memref<8x128xf32, #tpu.memory_space<vmem>>, vector<8x128xf32>
      %c0_35 = arith.constant 0 : index
      %c0_36 = arith.constant 0 : index
      %30 = vector.load %arg13[%c0_35, %c0_36] : memref<8x128xf32, #tpu.memory_space<vmem>>, vector<8x128xf32>
      tpu.vector_store %arg13[%c0_35, %c0_36], %29 {strides = array<i32>} : memref<8x128xf32, #tpu.memory_space<vmem>>, vector<8x128xf32>,
      %cst_37 = arith.constant 0.000000e+00 : f32
      %31 = vector.broadcast %cst_37 : f32 to vector<8x1xf32>
      %c0_38 = arith.constant 0 : index
      %c0_39 = arith.constant 0 : index
      %32 = vector.load %arg15[%c0_38, %c0_39] : memref<8x1xf32, #tpu.memory_space<vmem>>, vector<8x1xf32>
      tpu.vector_store %arg15[%c0_38, %c0_39], %31 {strides = array<i32>} : memref<8x1xf32, #tpu.memory_space<vmem>>, vector<8x1xf32>,
    } else {
    }
    %c0 = arith.constant 0 : index
    %c0_1 = arith.constant 0 : index
    %3 = vector.load %arg5[%c0, %c0_1] : memref<1x128xf32, #tpu.memory_space<vmem>>, vector<1x128xf32>
    %c0_2 = arith.constant 0 : index
    %c0_3 = arith.constant 0 : index
    %4 = vector.load %arg6[%c0_2, %c0_3] : memref<128x128xf32, #tpu.memory_space<vmem>>, vector<128x128xf32>
    %c0_4 = arith.constant 0 : index
    %c0_5 = arith.constant 0 : index
    %5 = vector.load %arg7[%c0_4, %c0_5] : memref<1x128xf32, #tpu.memory_space<vmem>>, vector<1x128xf32>
    %c0_6 = arith.constant 0 : index
    %c0_7 = arith.constant 0 : index
    %6 = vector.load %arg8[%c0_6, %c0_7] : memref<1x128xf32, #tpu.memory_space<vmem>>, vector<1x128xf32>
    %7 = arith.addf %5, %6 : vector<1x128xf32>
    %c0_8 = arith.constant 0 : index
    %c0_9 = arith.constant 0 : index
    %8 = vector.load %arg9[%c0_8, %c0_9] : memref<1x128xf32, #tpu.memory_space<vmem>>, vector<1x128xf32>
    %c0_10 = arith.constant 0 : index
    %c0_11 = arith.constant 0 : index
    %9 = vector.load %arg10[%c0_10, %c0_11] : memref<1x1xf32, #tpu.memory_space<vmem>>, vector<1x1xf32>
    %10 = vector.extract %9[0, 0] : f32 from vector<1x1xf32>
    %c0_12 = arith.constant 0 : index
    %c0_13 = arith.constant 0 : index
    %c0_14 = arith.constant 0 : index
    %11 = vector.load %arg2[%c0_12, %c0_13, %c0_14] : memref<6x8x16xf32, #tpu.memory_space<vmem>>, vector<6x8x16xf32>
    %12 = vector.shape_cast %11 : vector<6x8x16xf32> to vector<48x16xf32>
    %c0_15 = arith.constant 0 : index
    %c0_16 = arith.constant 0 : index
    %13 = vector.load %arg4[%c0_15, %c0_16] : memref<16x128xf32, #tpu.memory_space<vmem>>, vector<16x128xf32>
    %cst = arith.constant dense<0.000000e+00> : vector<48x128xf32>
    %14 = tpu.matmul %12, %13, %cst {dimension_numbers = #tpu.dot_dimension_numbers<[1], [0], [0], [1], [0, 0, 1, 1], [], []>} : vector<48x16xf32>, vector<16x128xf32>, vector<48x128xf32> -> vector<48x128xf32>
    %15 = vector.broadcast %7 : vector<1x128xf32> to vector<48x128xf32>
    %16 = arith.addf %14, %15 : vector<48x128xf32>
    %c0_17 = arith.constant 0 : index
    %c0_18 = arith.constant 0 : index
    %17 = vector.load %arg14[%c0_17, %c0_18] : memref<48x128xf32, #tpu.memory_space<vmem>>, vector<48x128xf32>
    tpu.vector_store %arg14[%c0_17, %c0_18], %16 {strides = array<i32>} : memref<48x128xf32, #tpu.memory_space<vmem>>, vector<48x128xf32>,
    %c0_19 = arith.constant 0 : index
    %c0_20 = arith.constant 0 : index
    %18 = vector.load %arg13[%c0_19, %c0_20] : memref<8x128xf32, #tpu.memory_space<vmem>>, vector<8x128xf32>
    %cst_21 = arith.constant 0.000000e+00 : f32
    %19 = vector.broadcast %cst_21 : f32 to vector<8x1xf32>
    %cst_22 = arith.constant 9.900000e-01 : f32
    %c0_i32_23 = arith.constant 0 : i32
    %c6_i32 = arith.constant 6 : i32
    %20 = arith.addi %c0_i32_23, %c6_i32 : i32
    %c1_i32 = arith.constant 1 : i32
    %21:2 = scf.for %arg16 = %c0_i32_23 to %20 step %c1_i32 iter_args(%arg17 = %18, %arg18 = %19) -> (vector<8x128xf32>, vector<8x1xf32>)  : i32 {
      %c8_i32 = arith.constant 8 : i32
      %29 = arith.muli %arg16, %c8_i32 : i32
      %30 = tpu.assume_multiple %29, 8 : i32
      %31 = arith.index_cast %30 : i32 to index
      %c0_33 = arith.constant 0 : index
      %32 = vector.load %arg14[%31, %c0_33] : memref<48x128xf32, #tpu.memory_space<vmem>>, vector<8x128xf32>
      %33 = vector.broadcast %3 : vector<1x128xf32> to vector<8x128xf32>
      %34 = arith.addf %32, %33 : vector<8x128xf32>
      %cst_34 = arith.constant dense<0.000000e+00> : vector<8x128xf32>
      %35 = tpu.matmul %arg17, %4, %cst_34 {dimension_numbers = #tpu.dot_dimension_numbers<[1], [0], [0], [1], [0, 0, 1, 1], [], []>} : vector<8x128xf32>, vector<128x128xf32>, vector<8x128xf32> -> vector<8x128xf32>
      %36 = arith.addf %34, %35 : vector<8x128xf32>
      %37 = math.tanh %36 : vector<8x128xf32>
      %cst_35 = arith.constant 0.000000e+00 : f32
      %38 = vector.broadcast %cst_35 : f32 to vector<8x1xf32>
      %cst_36 = arith.constant 0.000000e+00 : f32
      %39 = vector.broadcast %cst_36 : f32 to vector<8x128xf32>
      %cst_37 = arith.constant 1.000000e+00 : f32
      %40 = vector.broadcast %cst_37 : f32 to vector<8x1xf32>
      %41 = vector.broadcast %8 : vector<1x128xf32> to vector<8x128xf32>
      %42 = arith.mulf %37, %41 : vector<8x128xf32>
      %cst_38 = arith.constant dense<0.000000e+00> : vector<8xf32>
      %43 = vector.multi_reduction <add>, %42, %cst_38 [1] : vector<8x128xf32> to vector<8xf32>
      %44 = vector.shape_cast %43 : vector<8xf32> to vector<8x1xf32>
      %45 = vector.broadcast %10 : f32 to vector<8x1xf32>
      %46 = arith.addf %44, %45 : vector<8x1xf32>
      %47 = arith.negf %46 : vector<8x1xf32>
      %48 = math.exp %47 : vector<8x1xf32>
      %cst_39 = arith.constant 1.000000e+00 : f32
      %49 = vector.broadcast %cst_39 : f32 to vector<8x1xf32>
      %50 = arith.addf %49, %48 : vector<8x1xf32>
      %51 = arith.divf %49, %50 : vector<8x1xf32>
      %52 = arith.mulf %40, %51 : vector<8x1xf32>
      %53 = arith.addf %38, %52 : vector<8x1xf32>
      %54 = arith.addf %53, %51 : vector<8x1xf32>
      %55 = vector.broadcast %cst_22 : f32 to vector<8x1xf32>
      %56 = arith.cmpf ogt, %54, %55 : vector<8x1xf32>
      %57 = arith.extui %56 : vector<8x1xi1> to vector<8x1xi32>
      %58 = arith.sitofp %57 : vector<8x1xi32> to vector<8x1xf32>
      %59 = arith.mulf %40, %58 : vector<8x1xf32>
      %cst_40 = arith.constant 1.000000e+00 : f32
      %60 = vector.broadcast %cst_40 : f32 to vector<8x1xf32>
      %61 = arith.subf %60, %59 : vector<8x1xf32>
      %62 = arith.mulf %40, %61 : vector<8x1xf32>
      %cst_41 = arith.constant 1.000000e+00 : f32
      %63 = vector.broadcast %cst_41 : f32 to vector<8x1xf32>
      %64 = arith.subf %63, %53 : vector<8x1xf32>
      %65 = arith.mulf %59, %64 : vector<8x1xf32>
      %66 = arith.addf %52, %65 : vector<8x1xf32>
      %67 = vector.broadcast %66 : vector<8x1xf32> to vector<8x128xf32>
      %68 = arith.mulf %67, %37 : vector<8x128xf32>
      %69 = arith.addf %39, %68 : vector<8x128xf32>
      %70 = arith.addf %38, %52 : vector<8x1xf32>
      %c0_i32_42 = arith.constant 0 : i32
      %cst_43 = arith.constant dense<0.000000e+00> : vector<8x128xf32>
      %71 = tpu.matmul %37, %4, %cst_43 {dimension_numbers = #tpu.dot_dimension_numbers<[1], [0], [0], [1], [0, 0, 1, 1], [], []>} : vector<8x128xf32>, vector<128x128xf32>, vector<8x128xf32> -> vector<8x128xf32>
      %72 = arith.addf %32, %71 : vector<8x128xf32>
      %73 = math.tanh %72 : vector<8x128xf32>
      %74 = vector.broadcast %8 : vector<1x128xf32> to vector<8x128xf32>
      %75 = arith.mulf %73, %74 : vector<8x128xf32>
      %cst_44 = arith.constant dense<0.000000e+00> : vector<8xf32>
      %76 = vector.multi_reduction <add>, %75, %cst_44 [1] : vector<8x128xf32> to vector<8xf32>
      %77 = vector.shape_cast %76 : vector<8xf32> to vector<8x1xf32>
      %78 = vector.broadcast %10 : f32 to vector<8x1xf32>
      %79 = arith.addf %77, %78 : vector<8x1xf32>
      %80 = arith.negf %79 : vector<8x1xf32>
      %81 = math.exp %80 : vector<8x1xf32>
      %cst_45 = arith.constant 1.000000e+00 : f32
      %82 = vector.broadcast %cst_45 : f32 to vector<8x1xf32>
      %83 = arith.addf %82, %81 : vector<8x1xf32>
      %84 = arith.divf %82, %83 : vector<8x1xf32>
      %85 = arith.mulf %62, %84 : vector<8x1xf32>
      %86 = arith.addf %53, %85 : vector<8x1xf32>
      %87 = arith.addf %86, %84 : vector<8x1xf32>
      %88 = vector.broadcast %cst_22 : f32 to vector<8x1xf32>
      %89 = arith.cmpf ogt, %87, %88 : vector<8x1xf32>
      %90 = arith.extui %89 : vector<8x1xi1> to vector<8x1xi32>
      %91 = arith.sitofp %90 : vector<8x1xi32> to vector<8x1xf32>
      %92 = arith.mulf %62, %91 : vector<8x1xf32>
      %cst_46 = arith.constant 1.000000e+00 : f32
      %93 = vector.broadcast %cst_46 : f32 to vector<8x1xf32>
      %94 = arith.subf %93, %92 : vector<8x1xf32>
      %95 = arith.mulf %62, %94 : vector<8x1xf32>
      %cst_47 = arith.constant 1.000000e+00 : f32
      %96 = vector.broadcast %cst_47 : f32 to vector<8x1xf32>
      %97 = arith.subf %96, %86 : vector<8x1xf32>
      %98 = arith.mulf %92, %97 : vector<8x1xf32>
      %99 = arith.addf %85, %98 : vector<8x1xf32>
      %100 = vector.broadcast %99 : vector<8x1xf32> to vector<8x128xf32>
      %101 = arith.mulf %100, %73 : vector<8x128xf32>
      %102 = arith.addf %69, %101 : vector<8x128xf32>
      %103 = arith.addf %70, %85 : vector<8x1xf32>
      %c1_i32_48 = arith.constant 1 : i32
      %cst_49 = arith.constant dense<0.000000e+00> : vector<8x128xf32>
      %104 = tpu.matmul %73, %4, %cst_49 {dimension_numbers = #tpu.dot_dimension_numbers<[1], [0], [0], [1], [0, 0, 1, 1], [], []>} : vector<8x128xf32>, vector<128x128xf32>, vector<8x128xf32> -> vector<8x128xf32>
      %105 = arith.addf %32, %104 : vector<8x128xf32>
      %106 = math.tanh %105 : vector<8x128xf32>
      %107 = vector.broadcast %8 : vector<1x128xf32> to vector<8x128xf32>
      %108 = arith.mulf %106, %107 : vector<8x128xf32>
      %cst_50 = arith.constant dense<0.000000e+00> : vector<8xf32>
      %109 = vector.multi_reduction <add>, %108, %cst_50 [1] : vector<8x128xf32> to vector<8xf32>
      %110 = vector.shape_cast %109 : vector<8xf32> to vector<8x1xf32>
      %111 = vector.broadcast %10 : f32 to vector<8x1xf32>
      %112 = arith.addf %110, %111 : vector<8x1xf32>
      %113 = arith.negf %112 : vector<8x1xf32>
      %114 = math.exp %113 : vector<8x1xf32>
      %cst_51 = arith.constant 1.000000e+00 : f32
      %115 = vector.broadcast %cst_51 : f32 to vector<8x1xf32>
      %116 = arith.addf %115, %114 : vector<8x1xf32>
      %117 = arith.divf %115, %116 : vector<8x1xf32>
      %118 = arith.mulf %95, %117 : vector<8x1xf32>
      %119 = arith.addf %86, %118 : vector<8x1xf32>
      %120 = arith.addf %119, %117 : vector<8x1xf32>
      %121 = vector.broadcast %cst_22 : f32 to vector<8x1xf32>
      %122 = arith.cmpf ogt, %120, %121 : vector<8x1xf32>
      %123 = arith.extui %122 : vector<8x1xi1> to vector<8x1xi32>
      %124 = arith.sitofp %123 : vector<8x1xi32> to vector<8x1xf32>
      %125 = arith.mulf %95, %124 : vector<8x1xf32>
      %cst_52 = arith.constant 1.000000e+00 : f32
      %126 = vector.broadcast %cst_52 : f32 to vector<8x1xf32>
      %127 = arith.subf %126, %125 : vector<8x1xf32>
      %128 = arith.mulf %95, %127 : vector<8x1xf32>
      %cst_53 = arith.constant 1.000000e+00 : f32
      %129 = vector.broadcast %cst_53 : f32 to vector<8x1xf32>
      %130 = arith.subf %129, %119 : vector<8x1xf32>
      %131 = arith.mulf %125, %130 : vector<8x1xf32>
      %132 = arith.addf %118, %131 : vector<8x1xf32>
      %133 = vector.broadcast %132 : vector<8x1xf32> to vector<8x128xf32>
      %134 = arith.mulf %133, %106 : vector<8x128xf32>
      %135 = arith.addf %102, %134 : vector<8x128xf32>
      %136 = arith.addf %103, %118 : vector<8x1xf32>
      %c2_i32 = arith.constant 2 : i32
      %cst_54 = arith.constant dense<0.000000e+00> : vector<8x128xf32>
      %137 = tpu.matmul %106, %4, %cst_54 {dimension_numbers = #tpu.dot_dimension_numbers<[1], [0], [0], [1], [0, 0, 1, 1], [], []>} : vector<8x128xf32>, vector<128x128xf32>, vector<8x128xf32> -> vector<8x128xf32>
      %138 = arith.addf %32, %137 : vector<8x128xf32>
      %139 = math.tanh %138 : vector<8x128xf32>
      %140 = vector.broadcast %8 : vector<1x128xf32> to vector<8x128xf32>
      %141 = arith.mulf %139, %140 : vector<8x128xf32>
      %cst_55 = arith.constant dense<0.000000e+00> : vector<8xf32>
      %142 = vector.multi_reduction <add>, %141, %cst_55 [1] : vector<8x128xf32> to vector<8xf32>
      %143 = vector.shape_cast %142 : vector<8xf32> to vector<8x1xf32>
      %144 = vector.broadcast %10 : f32 to vector<8x1xf32>
      %145 = arith.addf %143, %144 : vector<8x1xf32>
      %146 = arith.negf %145 : vector<8x1xf32>
      %147 = math.exp %146 : vector<8x1xf32>
      %cst_56 = arith.constant 1.000000e+00 : f32
      %148 = vector.broadcast %cst_56 : f32 to vector<8x1xf32>
      %149 = arith.addf %148, %147 : vector<8x1xf32>
      %150 = arith.divf %148, %149 : vector<8x1xf32>
      %151 = arith.mulf %128, %150 : vector<8x1xf32>
      %152 = arith.addf %119, %151 : vector<8x1xf32>
      %153 = arith.addf %152, %150 : vector<8x1xf32>
      %154 = vector.broadcast %cst_22 : f32 to vector<8x1xf32>
      %155 = arith.cmpf ogt, %153, %154 : vector<8x1xf32>
      %156 = arith.extui %155 : vector<8x1xi1> to vector<8x1xi32>
      %157 = arith.sitofp %156 : vector<8x1xi32> to vector<8x1xf32>
      %158 = arith.mulf %128, %157 : vector<8x1xf32>
      %cst_57 = arith.constant 1.000000e+00 : f32
      %159 = vector.broadcast %cst_57 : f32 to vector<8x1xf32>
      %160 = arith.subf %159, %158 : vector<8x1xf32>
      %161 = arith.mulf %128, %160 : vector<8x1xf32>
      %cst_58 = arith.constant 1.000000e+00 : f32
      %162 = vector.broadcast %cst_58 : f32 to vector<8x1xf32>
      %163 = arith.subf %162, %152 : vector<8x1xf32>
      %164 = arith.mulf %158, %163 : vector<8x1xf32>
      %165 = arith.addf %151, %164 : vector<8x1xf32>
      %166 = vector.broadcast %165 : vector<8x1xf32> to vector<8x128xf32>
      %167 = arith.mulf %166, %139 : vector<8x128xf32>
      %168 = arith.addf %135, %167 : vector<8x128xf32>
      %169 = arith.addf %136, %151 : vector<8x1xf32>
      %c3_i32 = arith.constant 3 : i32
      %cst_59 = arith.constant dense<0.000000e+00> : vector<8x128xf32>
      %170 = tpu.matmul %139, %4, %cst_59 {dimension_numbers = #tpu.dot_dimension_numbers<[1], [0], [0], [1], [0, 0, 1, 1], [], []>} : vector<8x128xf32>, vector<128x128xf32>, vector<8x128xf32> -> vector<8x128xf32>
      %171 = arith.addf %32, %170 : vector<8x128xf32>
      %172 = math.tanh %171 : vector<8x128xf32>
      %173 = vector.broadcast %8 : vector<1x128xf32> to vector<8x128xf32>
      %174 = arith.mulf %172, %173 : vector<8x128xf32>
      %cst_60 = arith.constant dense<0.000000e+00> : vector<8xf32>
      %175 = vector.multi_reduction <add>, %174, %cst_60 [1] : vector<8x128xf32> to vector<8xf32>
      %176 = vector.shape_cast %175 : vector<8xf32> to vector<8x1xf32>
      %177 = vector.broadcast %10 : f32 to vector<8x1xf32>
      %178 = arith.addf %176, %177 : vector<8x1xf32>
      %179 = arith.negf %178 : vector<8x1xf32>
      %180 = math.exp %179 : vector<8x1xf32>
      %cst_61 = arith.constant 1.000000e+00 : f32
      %181 = vector.broadcast %cst_61 : f32 to vector<8x1xf32>
      %182 = arith.addf %181, %180 : vector<8x1xf32>
      %183 = arith.divf %181, %182 : vector<8x1xf32>
      %184 = arith.mulf %161, %183 : vector<8x1xf32>
      %185 = arith.addf %152, %184 : vector<8x1xf32>
      %186 = arith.addf %185, %183 : vector<8x1xf32>
      %187 = vector.broadcast %cst_22 : f32 to vector<8x1xf32>
      %188 = arith.cmpf ogt, %186, %187 : vector<8x1xf32>
      %189 = arith.extui %188 : vector<8x1xi1> to vector<8x1xi32>
      %190 = arith.sitofp %189 : vector<8x1xi32> to vector<8x1xf32>
      %191 = arith.mulf %161, %190 : vector<8x1xf32>
      %cst_62 = arith.constant 1.000000e+00 : f32
      %192 = vector.broadcast %cst_62 : f32 to vector<8x1xf32>
      %193 = arith.subf %192, %191 : vector<8x1xf32>
      %194 = arith.mulf %161, %193 : vector<8x1xf32>
      %cst_63 = arith.constant 1.000000e+00 : f32
      %195 = vector.broadcast %cst_63 : f32 to vector<8x1xf32>
      %196 = arith.subf %195, %185 : vector<8x1xf32>
      %197 = arith.mulf %191, %196 : vector<8x1xf32>
      %198 = arith.addf %184, %197 : vector<8x1xf32>
      %199 = vector.broadcast %198 : vector<8x1xf32> to vector<8x128xf32>
      %200 = arith.mulf %199, %172 : vector<8x128xf32>
      %201 = arith.addf %168, %200 : vector<8x128xf32>
      %202 = arith.addf %169, %184 : vector<8x1xf32>
      %c4_i32 = arith.constant 4 : i32
      %cst_64 = arith.constant dense<0.000000e+00> : vector<8x128xf32>
      %203 = tpu.matmul %172, %4, %cst_64 {dimension_numbers = #tpu.dot_dimension_numbers<[1], [0], [0], [1], [0, 0, 1, 1], [], []>} : vector<8x128xf32>, vector<128x128xf32>, vector<8x128xf32> -> vector<8x128xf32>
      %204 = arith.addf %32, %203 : vector<8x128xf32>
      %205 = math.tanh %204 : vector<8x128xf32>
      %206 = vector.broadcast %8 : vector<1x128xf32> to vector<8x128xf32>
      %207 = arith.mulf %205, %206 : vector<8x128xf32>
      %cst_65 = arith.constant dense<0.000000e+00> : vector<8xf32>
      %208 = vector.multi_reduction <add>, %207, %cst_65 [1] : vector<8x128xf32> to vector<8xf32>
      %209 = vector.shape_cast %208 : vector<8xf32> to vector<8x1xf32>
      %210 = vector.broadcast %10 : f32 to vector<8x1xf32>
      %211 = arith.addf %209, %210 : vector<8x1xf32>
      %212 = arith.negf %211 : vector<8x1xf32>
      %213 = math.exp %212 : vector<8x1xf32>
      %cst_66 = arith.constant 1.000000e+00 : f32
      %214 = vector.broadcast %cst_66 : f32 to vector<8x1xf32>
      %215 = arith.addf %214, %213 : vector<8x1xf32>
      %216 = arith.divf %214, %215 : vector<8x1xf32>
      %217 = arith.mulf %194, %216 : vector<8x1xf32>
      %218 = arith.addf %185, %217 : vector<8x1xf32>
      %219 = arith.addf %218, %216 : vector<8x1xf32>
      %220 = vector.broadcast %cst_22 : f32 to vector<8x1xf32>
      %221 = arith.cmpf ogt, %219, %220 : vector<8x1xf32>
      %222 = arith.extui %221 : vector<8x1xi1> to vector<8x1xi32>
      %223 = arith.sitofp %222 : vector<8x1xi32> to vector<8x1xf32>
      %224 = arith.mulf %194, %223 : vector<8x1xf32>
      %cst_67 = arith.constant 1.000000e+00 : f32
      %225 = vector.broadcast %cst_67 : f32 to vector<8x1xf32>
      %226 = arith.subf %225, %224 : vector<8x1xf32>
      %227 = arith.mulf %194, %226 : vector<8x1xf32>
      %cst_68 = arith.constant 1.000000e+00 : f32
      %228 = vector.broadcast %cst_68 : f32 to vector<8x1xf32>
      %229 = arith.subf %228, %218 : vector<8x1xf32>
      %230 = arith.mulf %224, %229 : vector<8x1xf32>
      %231 = arith.addf %217, %230 : vector<8x1xf32>
      %232 = vector.broadcast %231 : vector<8x1xf32> to vector<8x128xf32>
      %233 = arith.mulf %232, %205 : vector<8x128xf32>
      %234 = arith.addf %201, %233 : vector<8x128xf32>
      %235 = arith.addf %202, %217 : vector<8x1xf32>
      %c5_i32 = arith.constant 5 : i32
      %cst_69 = arith.constant dense<0.000000e+00> : vector<8x128xf32>
      %236 = tpu.matmul %205, %4, %cst_69 {dimension_numbers = #tpu.dot_dimension_numbers<[1], [0], [0], [1], [0, 0, 1, 1], [], []>} : vector<8x128xf32>, vector<128x128xf32>, vector<8x128xf32> -> vector<8x128xf32>
      %237 = arith.addf %32, %236 : vector<8x128xf32>
      %238 = math.tanh %237 : vector<8x128xf32>
      %239 = vector.broadcast %8 : vector<1x128xf32> to vector<8x128xf32>
      %240 = arith.mulf %238, %239 : vector<8x128xf32>
      %cst_70 = arith.constant dense<0.000000e+00> : vector<8xf32>
      %241 = vector.multi_reduction <add>, %240, %cst_70 [1] : vector<8x128xf32> to vector<8xf32>
      %242 = vector.shape_cast %241 : vector<8xf32> to vector<8x1xf32>
      %243 = vector.broadcast %10 : f32 to vector<8x1xf32>
      %244 = arith.addf %242, %243 : vector<8x1xf32>
      %245 = arith.negf %244 : vector<8x1xf32>
      %246 = math.exp %245 : vector<8x1xf32>
      %cst_71 = arith.constant 1.000000e+00 : f32
      %247 = vector.broadcast %cst_71 : f32 to vector<8x1xf32>
      %248 = arith.addf %247, %246 : vector<8x1xf32>
      %249 = arith.divf %247, %248 : vector<8x1xf32>
      %250 = arith.mulf %227, %249 : vector<8x1xf32>
      %251 = arith.addf %218, %250 : vector<8x1xf32>
      %252 = arith.addf %251, %249 : vector<8x1xf32>
      %253 = vector.broadcast %cst_22 : f32 to vector<8x1xf32>
      %254 = arith.cmpf ogt, %252, %253 : vector<8x1xf32>
      %255 = arith.extui %254 : vector<8x1xi1> to vector<8x1xi32>
      %256 = arith.sitofp %255 : vector<8x1xi32> to vector<8x1xf32>
      %257 = arith.mulf %227, %256 : vector<8x1xf32>
      %cst_72 = arith.constant 1.000000e+00 : f32
      %258 = vector.broadcast %cst_72 : f32 to vector<8x1xf32>
      %259 = arith.subf %258, %257 : vector<8x1xf32>
      %260 = arith.mulf %227, %259 : vector<8x1xf32>
      %cst_73 = arith.constant 1.000000e+00 : f32
      %261 = vector.broadcast %cst_73 : f32 to vector<8x1xf32>
      %262 = arith.subf %261, %251 : vector<8x1xf32>
      %263 = arith.mulf %257, %262 : vector<8x1xf32>
      %264 = arith.addf %250, %263 : vector<8x1xf32>
      %265 = vector.broadcast %264 : vector<8x1xf32> to vector<8x128xf32>
      %266 = arith.mulf %265, %238 : vector<8x128xf32>
      %267 = arith.addf %234, %266 : vector<8x128xf32>
      %268 = arith.addf %235, %250 : vector<8x1xf32>
      %cst_74 = arith.constant 1.000000e+00 : f32
      %269 = vector.broadcast %cst_74 : f32 to vector<8x1xf32>
      %270 = arith.subf %269, %251 : vector<8x1xf32>
      %271 = arith.mulf %260, %270 : vector<8x1xf32>
      %272 = vector.broadcast %271 : vector<8x1xf32> to vector<8x128xf32>
      %273 = arith.mulf %272, %238 : vector<8x128xf32>
      %274 = arith.addf %267, %273 : vector<8x128xf32>
      %275 = arith.index_cast %arg16 : i32 to index
      %c0_75 = arith.constant 0 : index
      %c0_76 = arith.constant 0 : index
      %276 = vector.load %arg11[%275, %c0_75, %c0_76] : memref<6x8x128xf32, #tpu.memory_space<vmem>>, vector<1x8x128xf32>
      %277 = vector.shape_cast %276 : vector<1x8x128xf32> to vector<8x128xf32>
      %278 = vector.shape_cast %274 : vector<8x128xf32> to vector<1x8x128xf32>
      tpu.vector_store %arg11[%275, %c0_75, %c0_76], %278 {strides = array<i32>} : memref<6x8x128xf32, #tpu.memory_space<vmem>>, vector<1x8x128xf32>,
      %c6_i32_77 = arith.constant 6 : i32
      %279 = arith.muli %arg1, %c6_i32_77 : i32
      %280 = arith.addi %279, %arg16 : i32
      %c6_i32_78 = arith.constant 6 : i32
      %281 = arith.cmpi slt, %280, %c6_i32_78 : i32
      %282 = arith.extui %281 : i1 to i32
      %283 = arith.sitofp %282 : i32 to f32
      %284 = vector.broadcast %283 : f32 to vector<8x1xf32>
      %285 = arith.mulf %284, %268 : vector<8x1xf32>
      %286 = arith.addf %arg18, %285 : vector<8x1xf32>
      scf.yield %274, %286 : vector<8x128xf32>, vector<8x1xf32>
    }
    %c6_i32_24 = arith.constant 6 : i32
    %c0_25 = arith.constant 0 : index
    %c0_26 = arith.constant 0 : index
    %22 = vector.load %arg13[%c0_25, %c0_26] : memref<8x128xf32, #tpu.memory_space<vmem>>, vector<8x128xf32>
    tpu.vector_store %arg13[%c0_25, %c0_26], %21#0 {strides = array<i32>} : memref<8x128xf32, #tpu.memory_space<vmem>>, vector<8x128xf32>,
    %c0_27 = arith.constant 0 : index
    %c0_28 = arith.constant 0 : index
    %23 = vector.load %arg15[%c0_27, %c0_28] : memref<8x1xf32, #tpu.memory_space<vmem>>, vector<8x1xf32>
    %24 = arith.addf %23, %21#1 : vector<8x1xf32>
    %c0_29 = arith.constant 0 : index
    %c0_30 = arith.constant 0 : index
    %25 = vector.load %arg15[%c0_29, %c0_30] : memref<8x1xf32, #tpu.memory_space<vmem>>, vector<8x1xf32>
    tpu.vector_store %arg15[%c0_29, %c0_30], %24 {strides = array<i32>} : memref<8x1xf32, #tpu.memory_space<vmem>>, vector<8x1xf32>,
    %c0_i32_31 = arith.constant 0 : i32
    %26 = arith.cmpi eq, %arg1, %c0_i32_31 : i32
    %27 = arith.extui %26 : i1 to i32
    %c0_i32_32 = arith.constant 0 : i32
    %28 = arith.cmpi ne, %27, %c0_i32_32 : i32
    scf.if %28 {
      %29 = tpu.iota {dimensions = array<i32: 0>} : vector<8x1xi32>
      %c8_i32 = arith.constant 8 : i32
      %30 = arith.muli %arg0, %c8_i32 : i32
      %31 = vector.broadcast %30 : i32 to vector<8x1xi32>
      %32 = arith.addi %29, %31 : vector<8x1xi32>
      %c4_i32 = arith.constant 4 : i32
      %33 = vector.broadcast %c4_i32 : i32 to vector<8x1xi32>
      %34 = arith.cmpi slt, %32, %33 : vector<8x1xi32>
      %35 = arith.extui %34 : vector<8x1xi1> to vector<8x1xi32>
      %36 = arith.sitofp %35 : vector<8x1xi32> to vector<8x1xf32>
      %c0_33 = arith.constant 0 : index
      %c0_34 = arith.constant 0 : index
      %37 = vector.load %arg15[%c0_33, %c0_34] : memref<8x1xf32, #tpu.memory_space<vmem>>, vector<8x1xf32>
      %38 = arith.mulf %37, %36 : vector<8x1xf32>
      %39 = vector.shape_cast %38 : vector<8x1xf32> to vector<1x8x1xf32>
      %cst_35 = arith.constant dense<0.000000e+00> : vector<1xf32>
      %40 = vector.multi_reduction <add>, %39, %cst_35 [1, 2] : vector<1x8x1xf32> to vector<1xf32>
      %41 = vector.shape_cast %40 : vector<1xf32> to vector<1x1x1xf32>
      %42 = vector.extract %41[0, 0, 0] : f32 from vector<1x1x1xf32>
      %cst_36 = arith.constant -2.500000e-03 : f32
      %43 = arith.mulf %cst_36, %42 : f32
      %44 = vector.broadcast %43 : f32 to vector<1x1x128xf32>
      %c0_37 = arith.constant 0 : index
      %c0_38 = arith.constant 0 : index
      %c0_39 = arith.constant 0 : index
      %45 = vector.load %arg12[%c0_37, %c0_38, %c0_39] : memref<1x1x128xf32, #tpu.memory_space<vmem>>, vector<1x1x128xf32>
      tpu.vector_store %arg12[%c0_37, %c0_38, %c0_39], %44 {strides = array<i32>} : memref<1x1x128xf32, #tpu.memory_space<vmem>>, vector<1x1x128xf32>,
    } else {
    }
    return
  }
  func.func @transform_0(%arg0: i32, %arg1: i32) -> (i32, i32, i32) {
    %c0_i32 = arith.constant 0 : i32
    %c0_i32_0 = arith.constant 0 : i32
    return %arg1, %arg0, %c0_i32 : i32, i32, i32
  }
  func.func @transform_1(%arg0: i32, %arg1: i32) -> (i32, i32) {
    %c0_i32 = arith.constant 0 : i32
    %c0_i32_0 = arith.constant 0 : i32
    return %arg0, %c0_i32 : i32, i32
  }
  func.func @transform_2(%arg0: i32, %arg1: i32) -> (i32, i32) {
    %c0_i32 = arith.constant 0 : i32
    %c0_i32_0 = arith.constant 0 : i32
    %c0_i32_1 = arith.constant 0 : i32
    return %c0_i32, %c0_i32_0 : i32, i32
  }
  func.func @transform_3(%arg0: i32, %arg1: i32) -> (i32, i32) {
    %c0_i32 = arith.constant 0 : i32
    %c0_i32_0 = arith.constant 0 : i32
    %c0_i32_1 = arith.constant 0 : i32
    return %c0_i32, %c0_i32_0 : i32, i32
  }
  func.func @transform_4(%arg0: i32, %arg1: i32) -> (i32, i32) {
    %c0_i32 = arith.constant 0 : i32
    %c0_i32_0 = arith.constant 0 : i32
    %c0_i32_1 = arith.constant 0 : i32
    return %c0_i32, %c0_i32_0 : i32, i32
  }
  func.func @transform_5(%arg0: i32, %arg1: i32) -> (i32, i32) {
    %c0_i32 = arith.constant 0 : i32
    %c0_i32_0 = arith.constant 0 : i32
    %c0_i32_1 = arith.constant 0 : i32
    return %c0_i32, %c0_i32_0 : i32, i32
  }
  func.func @transform_6(%arg0: i32, %arg1: i32) -> (i32, i32) {
    %c0_i32 = arith.constant 0 : i32
    %c0_i32_0 = arith.constant 0 : i32
    %c0_i32_1 = arith.constant 0 : i32
    return %c0_i32, %c0_i32_0 : i32, i32
  }
  func.func @transform_7(%arg0: i32, %arg1: i32) -> (i32, i32) {
    %c0_i32 = arith.constant 0 : i32
    %c0_i32_0 = arith.constant 0 : i32
    %c0_i32_1 = arith.constant 0 : i32
    return %c0_i32, %c0_i32_0 : i32, i32
  }
  func.func @transform_8(%arg0: i32, %arg1: i32) -> (i32, i32) {
    %c0_i32 = arith.constant 0 : i32
    %c0_i32_0 = arith.constant 0 : i32
    %c0_i32_1 = arith.constant 0 : i32
    return %c0_i32, %c0_i32_0 : i32, i32
  }
  func.func @transform_9(%arg0: i32, %arg1: i32) -> (i32, i32, i32) {
    %c0_i32 = arith.constant 0 : i32
    %c0_i32_0 = arith.constant 0 : i32
    return %arg1, %arg0, %c0_i32 : i32, i32, i32
  }
  func.func @transform_10(%arg0: i32, %arg1: i32) -> (i32, i32, i32) {
    %c0_i32 = arith.constant 0 : i32
    %c0_i32_0 = arith.constant 0 : i32
    %c0_i32_1 = arith.constant 0 : i32
    return %arg0, %c0_i32, %c0_i32_0 : i32, i32, i32
  }
}

</mosaic_0001>

<llo_original>
// kernel: tpu_custom_call.1
$region0: #{tpu_custom_call.1}
  #allocation0 [shape = 'u32[]', space=smem, size = 0x4, offset = 0x4, fixed_abs, tag = 'smem constant byte address 0x4 - core index']
  #allocation1 [shape = 'u32[144,128]{1,0:T(1,128)}', space=vmem, size = 0x12000, scoped, tag = 'internal scratch']
  #allocation2 [shape = 'f32[8,128]{1,0:T(8,128)}', space=vmem, size = 0x1000, scoped, tag = 'scratch operand']
  #allocation3 [shape = 'f32[48,128]{1,0:T(8,128)}', space=vmem, size = 0x6000, scoped, tag = 'scratch operand']
  #allocation4 [shape = 'f32[8,1]{1,0:T(8,128)}', space=vmem, size = 0x1000, scoped, tag = 'scratch operand']
  #allocation5 [shape = 'f32[1,1]{1,0:T(1,128)S(1)}', space=vmem, size = 0x200, scoped, tag = 'scoped memory for tpu_custom_call.1']
  %s0 = inlined_call_operand.hbm [shape: f32[6,8,16], index: 0, kind: input, shape index: {}]
  %s1 = inlined_call_operand.hbm [shape: f32[8,128], index: 1, kind: input, shape index: {}]
  %s2 = inlined_call_operand.hbm [shape: f32[16,128], index: 2, kind: input, shape index: {}]
  %s3 = inlined_call_operand.vmem [shape: f32[1,128], index: 3, kind: input, shape index: {}]
  %s4 = inlined_call_operand.hbm [shape: f32[128,128], index: 4, kind: input, shape index: {}]
  %s5 = inlined_call_operand.vmem [shape: f32[1,128], index: 5, kind: input, shape index: {}]
  %s6 = inlined_call_operand.vmem [shape: f32[1,128], index: 6, kind: input, shape index: {}]
  %s7 = inlined_call_operand.vmem [shape: f32[1,128], index: 7, kind: input, shape index: {}]
  %s8 = inlined_call_operand.<no memory space> [shape: f32[1,1], index: 8, kind: input, shape index: {}]
  %s9 = inlined_call_operand.hbm [shape: f32[6,8,128], index: 9, kind: output, shape index: {0}]
  %s10 = inlined_call_operand.hbm [shape: f32[1,1,128], index: 10, kind: output, shape index: {1}]
  %11 = xla_tuple %s9, %s10
  %s12 = sld [smem:[#allocation0]]
  $region85: #{tpu_custom_call.1} parent=0
    _
  %s14 = ssub.s32 1, %s12
  %s15 = scalar_select 0, %s14, %s12
  %v16 = vstv %s8
  %17 = vst [vmem:[#allocation5] sm:$0x1] %v16
  $region1: #{tpu_custom_call.1} parent=0
    #allocation6 [shape = 'u8[24576]{0}', space=vmem, size = 0x6000, scoped, tag = 'input window, operand 0, single buffered']
    #allocation7 [shape = 's32[1]{0}', space=sflag, size = 0x4, scoped, tag = 'scoped memory for tpu_custom_call.1']
    #allocation8 [shape = 's32[1]{0}', space=sflag, size = 0x4, scoped, tag = 'scoped memory for tpu_custom_call.1']
    #allocation9 [shape = 'u8[4096]{0}', space=vmem, size = 0x1000, scoped, tag = 'input window, operand 1, single buffered']
    #allocation10 [shape = 's32[1]{0}', space=sflag, size = 0x4, scoped, tag = 'scoped memory for tpu_custom_call.1']
    #allocation11 [shape = 'u8[8192]{0}', space=vmem, size = 0x2000, scoped, tag = 'input window, operand 2, single buffered']
    #allocation12 [shape = 'u8[65536]{0}', space=vmem, size = 0x10000, scoped, tag = 'input window, operand 4, single buffered']
    #allocation13 [shape = 's32[1]{0}', space=sflag, size = 0x4, scoped, tag = 'scoped memory for tpu_custom_call.1']
    #allocation14 [shape = 'u8[24576]{0}', space=vmem, size = 0x6000, scoped, tag = 'output window, operand 0, single buffered']
    #allocation15 [shape = 'u8[512]{0}', space=vmem, size = 0x400, scoped, tag = 'output window, operand 1, single buffered']
    #allocation16 [shape = 's32[1]{0}', space=sflag, size = 0x4, scoped, tag = 'scoped memory for tpu_custom_call.1']
    %18 = vsyncpa [#allocation7], 0
    %19 = vsyncpa [#allocation10], 0
    %20 = vsyncpa [#allocation13], 0
    %21 = vsyncpa [#allocation8], 0
    %22 = vsyncpa [#allocation16], 0
    // Predicated region
    $region2: #{tpu_custom_call.1} parent=1 // pred_check
      _
    $region3: #{tpu_custom_call.1} parent=1 // pred_check_branch
      %24 = sbr.rel (0) target = $region5
    $region4: #{tpu_custom_call.1} parent=1 // pred_region
      %s26 = ssub.s32 768, 768
      %27 = vsyncadd [#allocation7], %s26
      %s28 = sshll.u32 [#allocation6], 4
      %s29 = int_to_ptr.vmem [resolvable:$true] %s28
      %34 = dma.hbm_to_vmem [thread:$0]  %s0, 768, %s29, [#allocation7], 128, 128, 8
    $region5: #{tpu_custom_call.1} parent=1 // pred_fallthru
      _
    // Predicated region
    $region6: #{tpu_custom_call.1} parent=1 // pred_check
      _
    $region7: #{tpu_custom_call.1} parent=1 // pred_check_branch
      %36 = sbr.rel (0) target = $region9
    $region8: #{tpu_custom_call.1} parent=1 // pred_region
      %s38 = ssub.s32 128, 128
      %39 = vsyncadd [#allocation10], %s38
      %s41 = sshll.u32 [#allocation9], 4
      %s42 = int_to_ptr.vmem [resolvable:$true] %s41
      %44 = dma.hbm_to_vmem [thread:$0]  %s1, 128, %s42, [#allocation10]
    $region9: #{tpu_custom_call.1} parent=1 // pred_fallthru
      _
    // Predicated region
    $region10: #{tpu_custom_call.1} parent=1 // pred_check
      _
    $region11: #{tpu_custom_call.1} parent=1 // pred_check_branch
      %46 = sbr.rel (0) target = $region13
    $region12: #{tpu_custom_call.1} parent=1 // pred_region
      %s48 = ssub.s32 256, 256
      %49 = vsyncadd [#allocation10], %s48
      %s50 = sshll.u32 [#allocation11], 4
      %s51 = int_to_ptr.vmem [resolvable:$true] %s50
      %56 = dma.hbm_to_vmem [thread:$0]  %s2, 256, %s51, [#allocation10], 128, 128, 8
    $region13: #{tpu_custom_call.1} parent=1 // pred_fallthru
      _
    // Predicated region
    $region14: #{tpu_custom_call.1} parent=1 // pred_check
      _
    $region15: #{tpu_custom_call.1} parent=1 // pred_check_branch
      %58 = sbr.rel (0) target = $region17
    $region16: #{tpu_custom_call.1} parent=1 // pred_region
      _
    $region17: #{tpu_custom_call.1} parent=1 // pred_fallthru
      _
    // Predicated region
    $region18: #{tpu_custom_call.1} parent=1 // pred_check
      _
    $region19: #{tpu_custom_call.1} parent=1 // pred_check_branch
      %60 = sbr.rel (0) target = $region21
    $region20: #{tpu_custom_call.1} parent=1 // pred_region
      %s62 = ssub.s32 2048, 2048
      %63 = vsyncadd [#allocation13], %s62
      %s64 = sshll.u32 [#allocation12], 4
      %s65 = int_to_ptr.vmem [resolvable:$true] %s64
      %70 = dma.hbm_to_vmem [thread:$0]  %s4, 2048, %s65, [#allocation13], 128, 128, 8
    $region21: #{tpu_custom_call.1} parent=1 // pred_fallthru
      _
    // Predicated region
    $region22: #{tpu_custom_call.1} parent=1 // pred_check
      _
    $region23: #{tpu_custom_call.1} parent=1 // pred_check_branch
      %72 = sbr.rel (0) target = $region25
    $region24: #{tpu_custom_call.1} parent=1 // pred_region
      _
    $region25: #{tpu_custom_call.1} parent=1 // pred_fallthru
      _
    // Predicated region
    $region26: #{tpu_custom_call.1} parent=1 // pred_check
      _
    $region27: #{tpu_custom_call.1} parent=1 // pred_check_branch
      %74 = sbr.rel (0) target = $region29
    $region28: #{tpu_custom_call.1} parent=1 // pred_region
      _
    $region29: #{tpu_custom_call.1} parent=1 // pred_fallthru
      _
    // Predicated region
    $region30: #{tpu_custom_call.1} parent=1 // pred_check
      _
    $region31: #{tpu_custom_call.1} parent=1 // pred_check_branch
      %76 = sbr.rel (0) target = $region33
    $region32: #{tpu_custom_call.1} parent=1 // pred_region
      _
    $region33: #{tpu_custom_call.1} parent=1 // pred_fallthru
      _
    // Predicated region
    $region34: #{tpu_custom_call.1} parent=1 // pred_check
      _
    $region35: #{tpu_custom_call.1} parent=1 // pred_check_branch
      %78 = sbr.rel (0) target = $region37
    $region36: #{tpu_custom_call.1} parent=1 // pred_region
      _
    $region37: #{tpu_custom_call.1} parent=1 // pred_fallthru
      _
    // Predicated region
    $region38: #{tpu_custom_call.1} parent=1 // pred_check
      _
    $region39: #{tpu_custom_call.1} parent=1 // pred_check_branch
      %80 = sbr.rel (0) target = $region41
    $region40: #{tpu_custom_call.1} parent=1 // pred_region
      %81 = dma.done [#allocation7], 768
    $region41: #{tpu_custom_call.1} parent=1 // pred_fallthru
      _
    // Predicated region
    $region42: #{tpu_custom_call.1} parent=1 // pred_check
      _
    $region43: #{tpu_custom_call.1} parent=1 // pred_check_branch
      %83 = sbr.rel (0) target = $region45
    $region44: #{tpu_custom_call.1} parent=1 // pred_region
      %84 = dma.done [#allocation10], 128
    $region45: #{tpu_custom_call.1} parent=1 // pred_fallthru
      _
    // Predicated region
    $region46: #{tpu_custom_call.1} parent=1 // pred_check
      _
    $region47: #{tpu_custom_call.1} parent=1 // pred_check_branch
      %86 = sbr.rel (0) target = $region49
    $region48: #{tpu_custom_call.1} parent=1 // pred_region
      %87 = dma.done [#allocation10], 256
    $region49: #{tpu_custom_call.1} parent=1 // pred_fallthru
      _
    // Predicated region
    $region50: #{tpu_custom_call.1} parent=1 // pred_check
      _
    $region51: #{tpu_custom_call.1} parent=1 // pred_check_branch
      %89 = sbr.rel (0) target = $region53
    $region52: #{tpu_custom_call.1} parent=1 // pred_region
      %90 = dma.done [#allocation13], 2048
    $region53: #{tpu_custom_call.1} parent=1 // pred_fallthru
      _
    %p91 = scmp.eq.s32.totalorder 0, 0
    // Predicated region
    $region54: #{tpu_custom_call.1} parent=1 // pred_check
      %p92 = pneg %p91
    $region55: #{tpu_custom_call.1} parent=1 // pred_check_branch
      %94 = sbr.rel (%p92) target = $region57
    $region56: #{tpu_custom_call.1} parent=1 // pred_region
      %v95 = vld [vmem:[#allocation9] sm:$0xff]
      %96 = vst [vmem:[#allocation2] sm:$0xff] %v95
      %vm97 = vcmask 7168
      %98 = vst.msk [vmem:[#allocation4] sm:$0xff] %vm97, 0.0
    $region57: #{tpu_custom_call.1} parent=1 // pred_fallthru
      _
    %v99 = vld [vmem:[%s3] sm:$0x1]
    %v100 = vld [vmem:[#allocation12] sm:$0xff]
    %v101 = vld [vmem:[#allocation12 + $0x8] sm:$0xff]
    %v102 = vld [vmem:[#allocation12 + $0x10] sm:$0xff]
    %v103 = vld [vmem:[#allocation12 + $0x18] sm:$0xff]
    %v104 = vld [vmem:[#allocation12 + $0x20] sm:$0xff]
    %v105 = vld [vmem:[#allocation12 + $0x28] sm:$0xff]
    %v106 = vld [vmem:[#allocation12 + $0x30] sm:$0xff]
    %v107 = vld [vmem:[#allocation12 + $0x38] sm:$0xff]
    %v108 = vld [vmem:[#allocation12 + $0x40] sm:$0xff]
    %v109 = vld [vmem:[#allocation12 + $0x48] sm:$0xff]
    %v110 = vld [vmem:[#allocation12 + $0x50] sm:$0xff]
    %v111 = vld [vmem:[#allocation12 + $0x58] sm:$0xff]
    %v112 = vld [vmem:[#allocation12 + $0x60] sm:$0xff]
    %v113 = vld [vmem:[#allocation12 + $0x68] sm:$0xff]
    %v114 = vld [vmem:[#allocation12 + $0x70] sm:$0xff]
    %v115 = vld [vmem:[#allocation12 + $0x78] sm:$0xff]
    %v116 = vld [vmem:[%s5] sm:$0x1]
    %v117 = vld [vmem:[%s6] sm:$0x1]
    %v118 = vadd.f32 %v116, %v117
    %v119 = vld [vmem:[%s7] sm:$0x1]
    %v120 = vld [vmem:[#allocation5] sm:$0x1]
    %s121 = vtos %v120
    %v122 = vld [vmem:[#allocation6] sm:$0xff]
    %v123 = vld [vmem:[#allocation6 + $0x8] sm:$0xff]
    %v124 = vld [vmem:[#allocation6 + $0x10] sm:$0xff]
    %v125 = vld [vmem:[#allocation6 + $0x18] sm:$0xff]
    %v126 = vld [vmem:[#allocation6 + $0x20] sm:$0xff]
    %v127 = vld [vmem:[#allocation6 + $0x28] sm:$0xff]
    %v128 = vld [vmem:[#allocation11] sm:$0xff]
    %v129 = vld [vmem:[#allocation11 + $0x8] sm:$0xff]
    %v131 = vlaneseq
    %v132 = vshrl.u32 %v131, 7
    %v133 = vsub.s32 0, %v132
    %v134 = vrot.slane %v118, %v133
    %vm136 = vcmask 130048
    %v138 = vsel %vm136, %v122, 0
    %v141 = vsel %vm136, %v123, 0
    %v144 = vsel %vm136, %v124, 0
    %v147 = vsel %vm136, %v125, 0
    %v150 = vsel %vm136, %v126, 0
    %v153 = vsel %vm136, %v127, 0
    %155 = vmatprep.subr.mxu0 0.0
    %156 = vmatpush1.msra.mxu0 %v128
    %157 = vmatprep.subr.mxu0 0.0
    %158 = vmatpush1.msra.mxu0 %v129
    %159 = vmatprep.subr.mxu0 0.0
    %160 = vmatpush1.msra.mxu0 0.0
    %161 = vmatprep.subr.mxu0 0.0
    %162 = vmatpush1.msra.mxu0 0.0
    %163 = vmatprep.subr.mxu0 0.0
    %164 = vmatpush1.msra.mxu0 0.0
    %165 = vmatprep.subr.mxu0 0.0
    %166 = vmatpush1.msra.mxu0 0.0
    %167 = vmatprep.subr.mxu0 0.0
    %168 = vmatpush1.msra.mxu0 0.0
    %169 = vmatprep.subr.mxu0 0.0
    %170 = vmatpush1.msra.mxu0 0.0
    %171 = vmatprep.subr.mxu0 0.0
    %172 = vmatpush1.msra.mxu0 0.0
    %173 = vmatprep.subr.mxu0 0.0
    %174 = vmatpush1.msra.mxu0 0.0
    %175 = vmatprep.subr.mxu0 0.0
    %176 = vmatpush1.msra.mxu0 0.0
    %177 = vmatprep.subr.mxu0 0.0
    %178 = vmatpush1.msra.mxu0 0.0
    %179 = vmatprep.subr.mxu0 0.0
    %180 = vmatpush1.msra.mxu0 0.0
    %181 = vmatprep.subr.mxu0 0.0
    %182 = vmatpush1.msra.mxu0 0.0
    %183 = vmatprep.subr.mxu0 0.0
    %184 = vmatpush1.msra.mxu0 0.0
    %185 = vmatprep.subr.mxu0 0.0
    %186 = vmatpush1.msra.mxu0 0.0
    %187 = vmatprep.subr.mxu0 0.0
    %188 = vmatpush1.msra.mxu0 0.0
    %189 = vmatprep.subr.mxu0 0.0
    %190 = vmatpush1.msra.mxu0 0.0
    %191 = vmatprep.subr.mxu0 0.0
    %192 = vmatpush1.msra.mxu0 0.0
    %193 = vmatprep.subr.mxu0 0.0
    %194 = vmatpush1.msra.mxu0 0.0
    %195 = vmatprep.subr.mxu0 0.0
    %196 = vmatpush1.msra.mxu0 0.0
    %197 = vmatprep.subr.mxu0 0.0
    %198 = vmatpush1.msra.mxu0 0.0
    %199 = vmatprep.subr.mxu0 0.0
    %200 = vmatpush1.msra.mxu0 0.0
    %201 = vmatprep.subr.mxu0 0.0
    %202 = vmatpush1.msra.mxu0 0.0
    %203 = vmatprep.subr.mxu0 0.0
    %204 = vmatpush1.msra.mxu0 0.0
    %205 = vmatprep.subr.mxu0 0.0
    %206 = vmatpush1.msra.mxu0 0.0
    %207 = vmatprep.subr.mxu0 0.0
    %208 = vmatpush1.msra.mxu0 0.0
    %209 = vmatprep.subr.mxu0 0.0
    %210 = vmatpush1.msra.mxu0 0.0
    %211 = vmatprep.subr.mxu0 0.0
    %212 = vmatpush1.msra.mxu0 0.0
    %213 = vmatprep.subr.mxu0 0.0
    %214 = vmatpush1.msra.mxu0 0.0
    %215 = vmatprep.subr.mxu0 0.0
    %216 = vmatpush1.msra.mxu0 0.0
    %217 = vmatprep.subr.mxu0 0.0
    %218 = vmatpush1.msra.mxu0 0.0
    %219 = vmatprep.mubr.f32.mxu0 0.0
    %220 = vmatmul.mubr.f32.gmra.mrb[0].mxu0 %v138
    %v221 = vpop.f32.mrb[0].mxu0
    %v222 = vadd.f32 %v134, %v221
    %v223 = vpop.f32.mrb[0].mxu0
    %224 = vmatprep.mubr.f32.mxu0 0.0
    %225 = vmatmul.mubr.f32.gmra.mrb[0].mxu0 %v141
    %v226 = vpop.f32.mrb[0].mxu0
    %v227 = vadd.f32 %v134, %v226
    %v228 = vpop.f32.mrb[0].mxu0
    %229 = vmatprep.mubr.f32.mxu0 0.0
    %230 = vmatmul.mubr.f32.gmra.mrb[0].mxu0 %v144
    %v231 = vpop.f32.mrb[0].mxu0
    %v232 = vadd.f32 %v134, %v231
    %v233 = vpop.f32.mrb[0].mxu0
    %234 = vmatprep.mubr.f32.mxu0 0.0
    %235 = vmatmul.mubr.f32.gmra.mrb[0].mxu0 %v147
    %v236 = vpop.f32.mrb[0].mxu0
    %v237 = vadd.f32 %v134, %v236
    %v238 = vpop.f32.mrb[0].mxu0
    %239 = vmatprep.mubr.f32.mxu0 0.0
    %240 = vmatmul.mubr.f32.gmra.mrb[0].mxu0 %v150
    %v241 = vpop.f32.mrb[0].mxu0
    %v242 = vadd.f32 %v134, %v241
    %v243 = vpop.f32.mrb[0].mxu0
    %244 = vmatprep.mubr.f32.mxu0 0.0
    %245 = vmatmul.mubr.f32.gmra.mrb[0].mxu0 %v153
    %v246 = vpop.f32.mrb[0].mxu0
    %v247 = vadd.f32 %v134, %v246
    %v248 = vpop.f32.mrb[0].mxu0
    %249 = vdwg.mxu0
    %250 = vst [vmem:[#allocation3] sm:$0xff] %v222
    %251 = vst [vmem:[#allocation3 + $0x8] sm:$0xff] %v227
    %252 = vst [vmem:[#allocation3 + $0x10] sm:$0xff] %v232
    %253 = vst [vmem:[#allocation3 + $0x18] sm:$0xff] %v237
    %254 = vst [vmem:[#allocation3 + $0x20] sm:$0xff] %v242
    %255 = vst [vmem:[#allocation3 + $0x28] sm:$0xff] %v247
    %v256 = vld [vmem:[#allocation2] sm:$0xff]
    loop: start=0, step=1, limit=6
    $region58: #{tpu_custom_call.1} parent=1 // loop_pre_header
      _
    $region59: #{tpu_custom_call.1} parent=1 // loop_header
      %s258 = sphi 0, %s262
      %p259 = scmp.ge.s32.totalorder %s258, 6
      %v263 = vphi %v256, %v953
      %v264 = vphi 0.0, %v963
    $region60: #{tpu_custom_call.1} parent=1 // loop_header_branch
      %261 = sbr.rel (%p259) target = $region64
    $region61: #{tpu_custom_call.1} parent=1 // loop_body
      %s265 = smul.u32 %s258, 8
      %s266 = scalar_lea.vmem [#allocation3], %s265
      %v267 = vld [vmem:[%s266] sm:$0xff]
      %v269 = vlaneseq
      %v270 = vshrl.u32 %v269, 7
      %v271 = vsub.s32 0, %v270
      %v272 = vrot.slane %v99, %v271
      %v274 = vadd.f32 %v267, %v272
      %275 = vmatprep.subr.mxu0 0.0
      %276 = vmatpush1.msra.mxu0 %v100
      %277 = vmatprep.subr.mxu0 0.0
      %278 = vmatpush1.msra.mxu0 %v101
      %279 = vmatprep.subr.mxu0 0.0
      %280 = vmatpush1.msra.mxu0 %v102
      %281 = vmatprep.subr.mxu0 0.0
      %282 = vmatpush1.msra.mxu0 %v103
      %283 = vmatprep.subr.mxu0 0.0
      %284 = vmatpush1.msra.mxu0 %v104
      %285 = vmatprep.subr.mxu0 0.0
      %286 = vmatpush1.msra.mxu0 %v105
      %287 = vmatprep.subr.mxu0 0.0
      %288 = vmatpush1.msra.mxu0 %v106
      %289 = vmatprep.subr.mxu0 0.0
      %290 = vmatpush1.msra.mxu0 %v107
      %291 = vmatprep.subr.mxu0 0.0
      %292 = vmatpush1.msra.mxu0 %v108
      %293 = vmatprep.subr.mxu0 0.0
      %294 = vmatpush1.msra.mxu0 %v109
      %295 = vmatprep.subr.mxu0 0.0
      %296 = vmatpush1.msra.mxu0 %v110
      %297 = vmatprep.subr.mxu0 0.0
      %298 = vmatpush1.msra.mxu0 %v111
      %299 = vmatprep.subr.mxu0 0.0
      %300 = vmatpush1.msra.mxu0 %v112
      %301 = vmatprep.subr.mxu0 0.0
      %302 = vmatpush1.msra.mxu0 %v113
      %303 = vmatprep.subr.mxu0 0.0
      %304 = vmatpush1.msra.mxu0 %v114
      %305 = vmatprep.subr.mxu0 0.0
      %306 = vmatpush1.msra.mxu0 %v115
      %307 = vmatprep.subr.mxu0 0.0
      %308 = vmatpush1.msra.mxu0 0.0
      %309 = vmatprep.subr.mxu0 0.0
      %310 = vmatpush1.msra.mxu0 0.0
      %311 = vmatprep.subr.mxu0 0.0
      %312 = vmatpush1.msra.mxu0 0.0
      %313 = vmatprep.subr.mxu0 0.0
      %314 = vmatpush1.msra.mxu0 0.0
      %315 = vmatprep.subr.mxu0 0.0
      %316 = vmatpush1.msra.mxu0 0.0
      %317 = vmatprep.subr.mxu0 0.0
      %318 = vmatpush1.msra.mxu0 0.0
      %319 = vmatprep.subr.mxu0 0.0
      %320 = vmatpush1.msra.mxu0 0.0
      %321 = vmatprep.subr.mxu0 0.0
      %322 = vmatpush1.msra.mxu0 0.0
      %323 = vmatprep.subr.mxu0 0.0
      %324 = vmatpush1.msra.mxu0 0.0
      %325 = vmatprep.subr.mxu0 0.0
      %326 = vmatpush1.msra.mxu0 0.0
      %327 = vmatprep.subr.mxu0 0.0
      %328 = vmatpush1.msra.mxu0 0.0
      %329 = vmatprep.subr.mxu0 0.0
      %330 = vmatpush1.msra.mxu0 0.0
      %331 = vmatprep.subr.mxu0 0.0
      %332 = vmatpush1.msra.mxu0 0.0
      %333 = vmatprep.subr.mxu0 0.0
      %334 = vmatpush1.msra.mxu0 0.0
      %335 = vmatprep.subr.mxu0 0.0
      %336 = vmatpush1.msra.mxu0 0.0
      %337 = vmatprep.subr.mxu0 0.0
      %338 = vmatpush1.msra.mxu0 0.0
      %339 = vmatprep.mubr.f32.mxu0 0.0
      %340 = vmatmul.mubr.f32.gmra.mrb[0].mxu0 %v263
      %v341 = vpop.f32.mrb[0].mxu0
      %v342 = vadd.f32 0.0, %v341
      %v343 = vpop.f32.mrb[0].mxu0
      %344 = vdwg.mxu0
      %v345 = vadd.f32 %v274, %v342
      %v346 = vtanh.pop %v345
      %v348 = vlaneseq
      %v349 = vshrl.u32 %v348, 7
      %v350 = vsub.s32 0, %v349
      %v351 = vrot.slane %v119, %v350
      %v353 = vmul.f32 %v346, %v351
      %354 = vadd.xlane.f32.xlu0 %v353
      %v355 = vpop.xlane.xlu0 %354
      %v356 = vstv %s121
      %v357 = vadd.f32 %v355, %v356
      %v358 = vxor.u32 %v357, 2147483648
      %v359 = vmul.f32 %v358, 1.442695
      %v360 = vpow.pop %v359
      %v361 = vadd.f32 %v360, 1.0
      %v362 = vrcp.pop %v361
      %v363 = vmul.f32 1.0, %v362
      %v364 = vadd.f32 %v363, 0.0
      %v365 = vadd.f32 %v364, %v363
      %vm366 = vcmp.gt.f32.partialorder %v365, 0.99
      %v367 = vsel %vm366, 1, 0
      %v368 = vcvt.s32.f32 %v367
      %v369 = vsub.f32 1.0, %v368
      %v370 = vsub.f32 1.0, %v364
      %v371 = vmul.f32 %v368, %v370
      %v372 = vadd.f32 %v363, %v371
      %v373 = vmul.f32 %v372, %v346
      %v374 = vadd.f32 %v373, 0.0
      %375 = vmatprep.subr.mxu0 0.0
      %376 = vmatpush1.msra.mxu0 %v100
      %377 = vmatprep.subr.mxu0 0.0
      %378 = vmatpush1.msra.mxu0 %v101
      %379 = vmatprep.subr.mxu0 0.0
      %380 = vmatpush1.msra.mxu0 %v102
      %381 = vmatprep.subr.mxu0 0.0
      %382 = vmatpush1.msra.mxu0 %v103
      %383 = vmatprep.subr.mxu0 0.0
      %384 = vmatpush1.msra.mxu0 %v104
      %385 = vmatprep.subr.mxu0 0.0
      %386 = vmatpush1.msra.mxu0 %v105
      %387 = vmatprep.subr.mxu0 0.0
      %388 = vmatpush1.msra.mxu0 %v106
      %389 = vmatprep.subr.mxu0 0.0
      %390 = vmatpush1.msra.mxu0 %v107
      %391 = vmatprep.subr.mxu0 0.0
      %392 = vmatpush1.msra.mxu0 %v108
      %393 = vmatprep.subr.mxu0 0.0
      %394 = vmatpush1.msra.mxu0 %v109
      %395 = vmatprep.subr.mxu0 0.0
      %396 = vmatpush1.msra.mxu0 %v110
      %397 = vmatprep.subr.mxu0 0.0
      %398 = vmatpush1.msra.mxu0 %v111
      %399 = vmatprep.subr.mxu0 0.0
      %400 = vmatpush1.msra.mxu0 %v112
      %401 = vmatprep.subr.mxu0 0.0
      %402 = vmatpush1.msra.mxu0 %v113
      %403 = vmatprep.subr.mxu0 0.0
      %404 = vmatpush1.msra.mxu0 %v114
      %405 = vmatprep.subr.mxu0 0.0
      %406 = vmatpush1.msra.mxu0 %v115
      %407 = vmatprep.subr.mxu0 0.0
      %408 = vmatpush1.msra.mxu0 0.0
      %409 = vmatprep.subr.mxu0 0.0
      %410 = vmatpush1.msra.mxu0 0.0
      %411 = vmatprep.subr.mxu0 0.0
      %412 = vmatpush1.msra.mxu0 0.0
      %413 = vmatprep.subr.mxu0 0.0
      %414 = vmatpush1.msra.mxu0 0.0
      %415 = vmatprep.subr.mxu0 0.0
      %416 = vmatpush1.msra.mxu0 0.0
      %417 = vmatprep.subr.mxu0 0.0
      %418 = vmatpush1.msra.mxu0 0.0
      %419 = vmatprep.subr.mxu0 0.0
      %420 = vmatpush1.msra.mxu0 0.0
      %421 = vmatprep.subr.mxu0 0.0
      %422 = vmatpush1.msra.mxu0 0.0
      %423 = vmatprep.subr.mxu0 0.0
      %424 = vmatpush1.msra.mxu0 0.0
      %425 = vmatprep.subr.mxu0 0.0
      %426 = vmatpush1.msra.mxu0 0.0
      %427 = vmatprep.subr.mxu0 0.0
      %428 = vmatpush1.msra.mxu0 0.0
      %429 = vmatprep.subr.mxu0 0.0
      %430 = vmatpush1.msra.mxu0 0.0
      %431 = vmatprep.subr.mxu0 0.0
      %432 = vmatpush1.msra.mxu0 0.0
      %433 = vmatprep.subr.mxu0 0.0
      %434 = vmatpush1.msra.mxu0 0.0
      %435 = vmatprep.subr.mxu0 0.0
      %436 = vmatpush1.msra.mxu0 0.0
      %437 = vmatprep.subr.mxu0 0.0
      %438 = vmatpush1.msra.mxu0 0.0
      %439 = vmatprep.mubr.f32.mxu0 0.0
      %440 = vmatmul.mubr.f32.gmra.mrb[0].mxu0 %v346
      %v441 = vpop.f32.mrb[0].mxu0
      %v442 = vadd.f32 0.0, %v441
      %v443 = vpop.f32.mrb[0].mxu0
      %444 = vdwg.mxu0
      %v445 = vadd.f32 %v267, %v442
      %v446 = vtanh.pop %v445
      %v447 = vmul.f32 %v446, %v351
      %448 = vadd.xlane.f32.xlu0 %v447
      %v449 = vpop.xlane.xlu0 %448
      %v450 = vadd.f32 %v449, %v356
      %v451 = vxor.u32 %v450, 2147483648
      %v452 = vmul.f32 %v451, 1.442695
      %v453 = vpow.pop %v452
      %v454 = vadd.f32 %v453, 1.0
      %v455 = vrcp.pop %v454
      %v456 = vmul.f32 1.0, %v455
      %v457 = vmul.f32 %v369, %v456
      %v458 = vadd.f32 %v364, %v457
      %v459 = vadd.f32 %v458, %v456
      %vm460 = vcmp.gt.f32.partialorder %v459, 0.99
      %v461 = vsel %vm460, 1, 0
      %v462 = vcvt.s32.f32 %v461
      %v463 = vmul.f32 %v369, %v462
      %v464 = vsub.f32 1.0, %v463
      %v465 = vmul.f32 %v369, %v464
      %v466 = vsub.f32 1.0, %v458
      %v467 = vmul.f32 %v463, %v466
      %v468 = vadd.f32 %v457, %v467
      %v469 = vmul.f32 %v468, %v446
      %v470 = vadd.f32 %v374, %v469
      %471 = vmatprep.subr.mxu0 0.0
      %472 = vmatpush1.msra.mxu0 %v100
      %473 = vmatprep.subr.mxu0 0.0
      %474 = vmatpush1.msra.mxu0 %v101
      %475 = vmatprep.subr.mxu0 0.0
      %476 = vmatpush1.msra.mxu0 %v102
      %477 = vmatprep.subr.mxu0 0.0
      %478 = vmatpush1.msra.mxu0 %v103
      %479 = vmatprep.subr.mxu0 0.0
      %480 = vmatpush1.msra.mxu0 %v104
      %481 = vmatprep.subr.mxu0 0.0
      %482 = vmatpush1.msra.mxu0 %v105
      %483 = vmatprep.subr.mxu0 0.0
      %484 = vmatpush1.msra.mxu0 %v106
      %485 = vmatprep.subr.mxu0 0.0
      %486 = vmatpush1.msra.mxu0 %v107
      %487 = vmatprep.subr.mxu0 0.0
      %488 = vmatpush1.msra.mxu0 %v108
      %489 = vmatprep.subr.mxu0 0.0
      %490 = vmatpush1.msra.mxu0 %v109
      %491 = vmatprep.subr.mxu0 0.0
      %492 = vmatpush1.msra.mxu0 %v110
      %493 = vmatprep.subr.mxu0 0.0
      %494 = vmatpush1.msra.mxu0 %v111
      %495 = vmatprep.subr.mxu0 0.0
      %496 = vmatpush1.msra.mxu0 %v112
      %497 = vmatprep.subr.mxu0 0.0
      %498 = vmatpush1.msra.mxu0 %v113
      %499 = vmatprep.subr.mxu0 0.0
      %500 = vmatpush1.msra.mxu0 %v114
      %501 = vmatprep.subr.mxu0 0.0
      %502 = vmatpush1.msra.mxu0 %v115
      %503 = vmatprep.subr.mxu0 0.0
      %504 = vmatpush1.msra.mxu0 0.0
      %505 = vmatprep.subr.mxu0 0.0
      %506 = vmatpush1.msra.mxu0 0.0
      %507 = vmatprep.subr.mxu0 0.0
      %508 = vmatpush1.msra.mxu0 0.0
      %509 = vmatprep.subr.mxu0 0.0
      %510 = vmatpush1.msra.mxu0 0.0
      %511 = vmatprep.subr.mxu0 0.0
      %512 = vmatpush1.msra.mxu0 0.0
      %513 = vmatprep.subr.mxu0 0.0
      %514 = vmatpush1.msra.mxu0 0.0
      %515 = vmatprep.subr.mxu0 0.0
      %516 = vmatpush1.msra.mxu0 0.0
      %517 = vmatprep.subr.mxu0 0.0
      %518 = vmatpush1.msra.mxu0 0.0
      %519 = vmatprep.subr.mxu0 0.0
      %520 = vmatpush1.msra.mxu0 0.0
      %521 = vmatprep.subr.mxu0 0.0
      %522 = vmatpush1.msra.mxu0 0.0
      %523 = vmatprep.subr.mxu0 0.0
      %524 = vmatpush1.msra.mxu0 0.0
      %525 = vmatprep.subr.mxu0 0.0
      %526 = vmatpush1.msra.mxu0 0.0
      %527 = vmatprep.subr.mxu0 0.0
      %528 = vmatpush1.msra.mxu0 0.0
      %529 = vmatprep.subr.mxu0 0.0
      %530 = vmatpush1.msra.mxu0 0.0
      %531 = vmatprep.subr.mxu0 0.0
      %532 = vmatpush1.msra.mxu0 0.0
      %533 = vmatprep.subr.mxu0 0.0
      %534 = vmatpush1.msra.mxu0 0.0
      %535 = vmatprep.mubr.f32.mxu0 0.0
      %536 = vmatmul.mubr.f32.gmra.mrb[0].mxu0 %v446
      %v537 = vpop.f32.mrb[0].mxu0
      %v538 = vadd.f32 0.0, %v537
      %v539 = vpop.f32.mrb[0].mxu0
      %540 = vdwg.mxu0
      %v541 = vadd.f32 %v267, %v538
      %v542 = vtanh.pop %v541
      %v543 = vmul.f32 %v542, %v351
      %544 = vadd.xlane.f32.xlu0 %v543
      %v545 = vpop.xlane.xlu0 %544
      %v546 = vadd.f32 %v545, %v356
      %v547 = vxor.u32 %v546, 2147483648
      %v548 = vmul.f32 %v547, 1.442695
      %v549 = vpow.pop %v548
      %v550 = vadd.f32 %v549, 1.0
      %v551 = vrcp.pop %v550
      %v552 = vmul.f32 1.0, %v551
      %v553 = vmul.f32 %v465, %v552
      %v554 = vadd.f32 %v458, %v553
      %v555 = vadd.f32 %v554, %v552
      %vm556 = vcmp.gt.f32.partialorder %v555, 0.99
      %v557 = vsel %vm556, 1, 0
      %v558 = vcvt.s32.f32 %v557
      %v559 = vmul.f32 %v465, %v558
      %v560 = vsub.f32 1.0, %v559
      %v561 = vmul.f32 %v465, %v560
      %v562 = vsub.f32 1.0, %v554
      %v563 = vmul.f32 %v559, %v562
      %v564 = vadd.f32 %v553, %v563
      %v565 = vmul.f32 %v564, %v542
      %v566 = vadd.f32 %v470, %v565
      %567 = vmatprep.subr.mxu0 0.0
      %568 = vmatpush1.msra.mxu0 %v100
      %569 = vmatprep.subr.mxu0 0.0
      %570 = vmatpush1.msra.mxu0 %v101
      %571 = vmatprep.subr.mxu0 0.0
      %572 = vmatpush1.msra.mxu0 %v102
      %573 = vmatprep.subr.mxu0 0.0
      %574 = vmatpush1.msra.mxu0 %v103
      %575 = vmatprep.subr.mxu0 0.0
      %576 = vmatpush1.msra.mxu0 %v104
      %577 = vmatprep.subr.mxu0 0.0
      %578 = vmatpush1.msra.mxu0 %v105
      %579 = vmatprep.subr.mxu0 0.0
      %580 = vmatpush1.msra.mxu0 %v106
      %581 = vmatprep.subr.mxu0 0.0
      %582 = vmatpush1.msra.mxu0 %v107
      %583 = vmatprep.subr.mxu0 0.0
      %584 = vmatpush1.msra.mxu0 %v108
      %585 = vmatprep.subr.mxu0 0.0
      %586 = vmatpush1.msra.mxu0 %v109
      %587 = vmatprep.subr.mxu0 0.0
      %588 = vmatpush1.msra.mxu0 %v110
      %589 = vmatprep.subr.mxu0 0.0
      %590 = vmatpush1.msra.mxu0 %v111
      %591 = vmatprep.subr.mxu0 0.0
      %592 = vmatpush1.msra.mxu0 %v112
      %593 = vmatprep.subr.mxu0 0.0
      %594 = vmatpush1.msra.mxu0 %v113
      %595 = vmatprep.subr.mxu0 0.0
      %596 = vmatpush1.msra.mxu0 %v114
      %597 = vmatprep.subr.mxu0 0.0
      %598 = vmatpush1.msra.mxu0 %v115
      %599 = vmatprep.subr.mxu0 0.0
      %600 = vmatpush1.msra.mxu0 0.0
      %601 = vmatprep.subr.mxu0 0.0
      %602 = vmatpush1.msra.mxu0 0.0
      %603 = vmatprep.subr.mxu0 0.0
      %604 = vmatpush1.msra.mxu0 0.0
      %605 = vmatprep.subr.mxu0 0.0
      %606 = vmatpush1.msra.mxu0 0.0
      %607 = vmatprep.subr.mxu0 0.0
      %608 = vmatpush1.msra.mxu0 0.0
      %609 = vmatprep.subr.mxu0 0.0
      %610 = vmatpush1.msra.mxu0 0.0
      %611 = vmatprep.subr.mxu0 0.0
      %612 = vmatpush1.msra.mxu0 0.0
      %613 = vmatprep.subr.mxu0 0.0
      %614 = vmatpush1.msra.mxu0 0.0
      %615 = vmatprep.subr.mxu0 0.0
      %616 = vmatpush1.msra.mxu0 0.0
      %617 = vmatprep.subr.mxu0 0.0
      %618 = vmatpush1.msra.mxu0 0.0
      %619 = vmatprep.subr.mxu0 0.0
      %620 = vmatpush1.msra.mxu0 0.0
      %621 = vmatprep.subr.mxu0 0.0
      %622 = vmatpush1.msra.mxu0 0.0
      %623 = vmatprep.subr.mxu0 0.0
      %624 = vmatpush1.msra.mxu0 0.0
      %625 = vmatprep.subr.mxu0 0.0
      %626 = vmatpush1.msra.mxu0 0.0
      %627 = vmatprep.subr.mxu0 0.0
      %628 = vmatpush1.msra.mxu0 0.0
      %629 = vmatprep.subr.mxu0 0.0
      %630 = vmatpush1.msra.mxu0 0.0
      %631 = vmatprep.mubr.f32.mxu0 0.0
      %632 = vmatmul.mubr.f32.gmra.mrb[0].mxu0 %v542
      %v633 = vpop.f32.mrb[0].mxu0
      %v634 = vadd.f32 0.0, %v633
      %v635 = vpop.f32.mrb[0].mxu0
      %636 = vdwg.mxu0
      %v637 = vadd.f32 %v267, %v634
      %v638 = vtanh.pop %v637
      %v639 = vmul.f32 %v638, %v351
      %640 = vadd.xlane.f32.xlu0 %v639
      %v641 = vpop.xlane.xlu0 %640
      %v642 = vadd.f32 %v641, %v356
      %v643 = vxor.u32 %v642, 2147483648
      %v644 = vmul.f32 %v643, 1.442695
      %v645 = vpow.pop %v644
      %v646 = vadd.f32 %v645, 1.0
      %v647 = vrcp.pop %v646
      %v648 = vmul.f32 1.0, %v647
      %v649 = vmul.f32 %v561, %v648
      %v650 = vadd.f32 %v554, %v649
      %v651 = vadd.f32 %v650, %v648
      %vm652 = vcmp.gt.f32.partialorder %v651, 0.99
      %v653 = vsel %vm652, 1, 0
      %v654 = vcvt.s32.f32 %v653
      %v655 = vmul.f32 %v561, %v654
      %v656 = vsub.f32 1.0, %v655
      %v657 = vmul.f32 %v561, %v656
      %v658 = vsub.f32 1.0, %v650
      %v659 = vmul.f32 %v655, %v658
      %v660 = vadd.f32 %v649, %v659
      %v661 = vmul.f32 %v660, %v638
      %v662 = vadd.f32 %v566, %v661
      %663 = vmatprep.subr.mxu0 0.0
      %664 = vmatpush1.msra.mxu0 %v100
      %665 = vmatprep.subr.mxu0 0.0
      %666 = vmatpush1.msra.mxu0 %v101
      %667 = vmatprep.subr.mxu0 0.0
      %668 = vmatpush1.msra.mxu0 %v102
      %669 = vmatprep.subr.mxu0 0.0
      %670 = vmatpush1.msra.mxu0 %v103
      %671 = vmatprep.subr.mxu0 0.0
      %672 = vmatpush1.msra.mxu0 %v104
      %673 = vmatprep.subr.mxu0 0.0
      %674 = vmatpush1.msra.mxu0 %v105
      %675 = vmatprep.subr.mxu0 0.0
      %676 = vmatpush1.msra.mxu0 %v106
      %677 = vmatprep.subr.mxu0 0.0
      %678 = vmatpush1.msra.mxu0 %v107
      %679 = vmatprep.subr.mxu0 0.0
      %680 = vmatpush1.msra.mxu0 %v108
      %681 = vmatprep.subr.mxu0 0.0
      %682 = vmatpush1.msra.mxu0 %v109
      %683 = vmatprep.subr.mxu0 0.0
      %684 = vmatpush1.msra.mxu0 %v110
      %685 = vmatprep.subr.mxu0 0.0
      %686 = vmatpush1.msra.mxu0 %v111
      %687 = vmatprep.subr.mxu0 0.0
      %688 = vmatpush1.msra.mxu0 %v112
      %689 = vmatprep.subr.mxu0 0.0
      %690 = vmatpush1.msra.mxu0 %v113
      %691 = vmatprep.subr.mxu0 0.0
      %692 = vmatpush1.msra.mxu0 %v114
      %693 = vmatprep.subr.mxu0 0.0
      %694 = vmatpush1.msra.mxu0 %v115
      %695 = vmatprep.subr.mxu0 0.0
      %696 = vmatpush1.msra.mxu0 0.0
      %697 = vmatprep.subr.mxu0 0.0
      %698 = vmatpush1.msra.mxu0 0.0
      %699 = vmatprep.subr.mxu0 0.0
      %700 = vmatpush1.msra.mxu0 0.0
      %701 = vmatprep.subr.mxu0 0.0
      %702 = vmatpush1.msra.mxu0 0.0
      %703 = vmatprep.subr.mxu0 0.0
      %704 = vmatpush1.msra.mxu0 0.0
      %705 = vmatprep.subr.mxu0 0.0
      %706 = vmatpush1.msra.mxu0 0.0
      %707 = vmatprep.subr.mxu0 0.0
      %708 = vmatpush1.msra.mxu0 0.0
      %709 = vmatprep.subr.mxu0 0.0
      %710 = vmatpush1.msra.mxu0 0.0
      %711 = vmatprep.subr.mxu0 0.0
      %712 = vmatpush1.msra.mxu0 0.0
      %713 = vmatprep.subr.mxu0 0.0
      %714 = vmatpush1.msra.mxu0 0.0
      %715 = vmatprep.subr.mxu0 0.0
      %716 = vmatpush1.msra.mxu0 0.0
      %717 = vmatprep.subr.mxu0 0.0
      %718 = vmatpush1.msra.mxu0 0.0
      %719 = vmatprep.subr.mxu0 0.0
      %720 = vmatpush1.msra.mxu0 0.0
      %721 = vmatprep.subr.mxu0 0.0
      %722 = vmatpush1.msra.mxu0 0.0
      %723 = vmatprep.subr.mxu0 0.0
      %724 = vmatpush1.msra.mxu0 0.0
      %725 = vmatprep.subr.mxu0 0.0
      %726 = vmatpush1.msra.mxu0 0.0
      %727 = vmatprep.mubr.f32.mxu0 0.0
      %728 = vmatmul.mubr.f32.gmra.mrb[0].mxu0 %v638
      %v729 = vpop.f32.mrb[0].mxu0
      %v730 = vadd.f32 0.0, %v729
      %v731 = vpop.f32.mrb[0].mxu0
      %732 = vdwg.mxu0
      %v733 = vadd.f32 %v267, %v730
      %v734 = vtanh.pop %v733
      %v735 = vmul.f32 %v734, %v351
      %736 = vadd.xlane.f32.xlu0 %v735
      %v737 = vpop.xlane.xlu0 %736
      %v738 = vadd.f32 %v737, %v356
      %v739 = vxor.u32 %v738, 2147483648
      %v740 = vmul.f32 %v739, 1.442695
      %v741 = vpow.pop %v740
      %v742 = vadd.f32 %v741, 1.0
      %v743 = vrcp.pop %v742
      %v744 = vmul.f32 1.0, %v743
      %v745 = vmul.f32 %v657, %v744
      %v746 = vadd.f32 %v650, %v745
      %v747 = vadd.f32 %v746, %v744
      %vm748 = vcmp.gt.f32.partialorder %v747, 0.99
      %v749 = vsel %vm748, 1, 0
      %v750 = vcvt.s32.f32 %v749
      %v751 = vmul.f32 %v657, %v750
      %v752 = vsub.f32 1.0, %v751
      %v753 = vmul.f32 %v657, %v752
      %v754 = vsub.f32 1.0, %v746
      %v755 = vmul.f32 %v751, %v754
      %v756 = vadd.f32 %v745, %v755
      %v757 = vmul.f32 %v756, %v734
      %v758 = vadd.f32 %v662, %v757
      %759 = vmatprep.subr.mxu0 0.0
      %760 = vmatpush1.msra.mxu0 %v100
      %761 = vmatprep.subr.mxu0 0.0
      %762 = vmatpush1.msra.mxu0 %v101
      %763 = vmatprep.subr.mxu0 0.0
      %764 = vmatpush1.msra.mxu0 %v102
      %765 = vmatprep.subr.mxu0 0.0
      %766 = vmatpush1.msra.mxu0 %v103
      %767 = vmatprep.subr.mxu0 0.0
      %768 = vmatpush1.msra.mxu0 %v104
      %769 = vmatprep.subr.mxu0 0.0
      %770 = vmatpush1.msra.mxu0 %v105
      %771 = vmatprep.subr.mxu0 0.0
      %772 = vmatpush1.msra.mxu0 %v106
      %773 = vmatprep.subr.mxu0 0.0
      %774 = vmatpush1.msra.mxu0 %v107
      %775 = vmatprep.subr.mxu0 0.0
      %776 = vmatpush1.msra.mxu0 %v108
      %777 = vmatprep.subr.mxu0 0.0
      %778 = vmatpush1.msra.mxu0 %v109
      %779 = vmatprep.subr.mxu0 0.0
      %780 = vmatpush1.msra.mxu0 %v110
      %781 = vmatprep.subr.mxu0 0.0
      %782 = vmatpush1.msra.mxu0 %v111
      %783 = vmatprep.subr.mxu0 0.0
      %784 = vmatpush1.msra.mxu0 %v112
      %785 = vmatprep.subr.mxu0 0.0
      %786 = vmatpush1.msra.mxu0 %v113
      %787 = vmatprep.subr.mxu0 0.0
      %788 = vmatpush1.msra.mxu0 %v114
      %789 = vmatprep.subr.mxu0 0.0
      %790 = vmatpush1.msra.mxu0 %v115
      %791 = vmatprep.subr.mxu0 0.0
      %792 = vmatpush1.msra.mxu0 0.0
      %793 = vmatprep.subr.mxu0 0.0
      %794 = vmatpush1.msra.mxu0 0.0
      %795 = vmatprep.subr.mxu0 0.0
      %796 = vmatpush1.msra.mxu0 0.0
      %797 = vmatprep.subr.mxu0 0.0
      %798 = vmatpush1.msra.mxu0 0.0
      %799 = vmatprep.subr.mxu0 0.0
      %800 = vmatpush1.msra.mxu0 0.0
      %801 = vmatprep.subr.mxu0 0.0
      %802 = vmatpush1.msra.mxu0 0.0
      %803 = vmatprep.subr.mxu0 0.0
      %804 = vmatpush1.msra.mxu0 0.0
      %805 = vmatprep.subr.mxu0 0.0
      %806 = vmatpush1.msra.mxu0 0.0
      %807 = vmatprep.subr.mxu0 0.0
      %808 = vmatpush1.msra.mxu0 0.0
      %809 = vmatprep.subr.mxu0 0.0
      %810 = vmatpush1.msra.mxu0 0.0
      %811 = vmatprep.subr.mxu0 0.0
      %812 = vmatpush1.msra.mxu0 0.0
      %813 = vmatprep.subr.mxu0 0.0
      %814 = vmatpush1.msra.mxu0 0.0
      %815 = vmatprep.subr.mxu0 0.0
      %816 = vmatpush1.msra.mxu0 0.0
      %817 = vmatprep.subr.mxu0 0.0
      %818 = vmatpush1.msra.mxu0 0.0
      %819 = vmatprep.subr.mxu0 0.0
      %820 = vmatpush1.msra.mxu0 0.0
      %821 = vmatprep.subr.mxu0 0.0
      %822 = vmatpush1.msra.mxu0 0.0
      %823 = vmatprep.mubr.f32.mxu0 0.0
      %824 = vmatmul.mubr.f32.gmra.mrb[0].mxu0 %v734
      %v825 = vpop.f32.mrb[0].mxu0
      %v826 = vadd.f32 0.0, %v825
      %v827 = vpop.f32.mrb[0].mxu0
      %828 = vdwg.mxu0
      %v829 = vadd.f32 %v267, %v826
      %v830 = vtanh.pop %v829
      %v831 = vmul.f32 %v830, %v351
      %832 = vadd.xlane.f32.xlu0 %v831
      %v833 = vpop.xlane.xlu0 %832
      %v834 = vadd.f32 %v833, %v356
      %v835 = vxor.u32 %v834, 2147483648
      %v836 = vmul.f32 %v835, 1.442695
      %v837 = vpow.pop %v836
      %v838 = vadd.f32 %v837, 1.0
      %v839 = vrcp.pop %v838
      %v840 = vmul.f32 1.0, %v839
      %v841 = vmul.f32 %v753, %v840
      %v842 = vadd.f32 %v746, %v841
      %v843 = vadd.f32 %v842, %v840
      %vm844 = vcmp.gt.f32.partialorder %v843, 0.99
      %v845 = vsel %vm844, 1, 0
      %v846 = vcvt.s32.f32 %v845
      %v847 = vmul.f32 %v753, %v846
      %v848 = vsub.f32 1.0, %v847
      %v849 = vmul.f32 %v753, %v848
      %v850 = vsub.f32 1.0, %v842
      %v851 = vmul.f32 %v847, %v850
      %v852 = vadd.f32 %v841, %v851
      %v853 = vmul.f32 %v852, %v830
      %v854 = vadd.f32 %v758, %v853
      %855 = vmatprep.subr.mxu0 0.0
      %856 = vmatpush1.msra.mxu0 %v100
      %857 = vmatprep.subr.mxu0 0.0
      %858 = vmatpush1.msra.mxu0 %v101
      %859 = vmatprep.subr.mxu0 0.0
      %860 = vmatpush1.msra.mxu0 %v102
      %861 = vmatprep.subr.mxu0 0.0
      %862 = vmatpush1.msra.mxu0 %v103
      %863 = vmatprep.subr.mxu0 0.0
      %864 = vmatpush1.msra.mxu0 %v104
      %865 = vmatprep.subr.mxu0 0.0
      %866 = vmatpush1.msra.mxu0 %v105
      %867 = vmatprep.subr.mxu0 0.0
      %868 = vmatpush1.msra.mxu0 %v106
      %869 = vmatprep.subr.mxu0 0.0
      %870 = vmatpush1.msra.mxu0 %v107
      %871 = vmatprep.subr.mxu0 0.0
      %872 = vmatpush1.msra.mxu0 %v108
      %873 = vmatprep.subr.mxu0 0.0
      %874 = vmatpush1.msra.mxu0 %v109
      %875 = vmatprep.subr.mxu0 0.0
      %876 = vmatpush1.msra.mxu0 %v110
      %877 = vmatprep.subr.mxu0 0.0
      %878 = vmatpush1.msra.mxu0 %v111
      %879 = vmatprep.subr.mxu0 0.0
      %880 = vmatpush1.msra.mxu0 %v112
      %881 = vmatprep.subr.mxu0 0.0
      %882 = vmatpush1.msra.mxu0 %v113
      %883 = vmatprep.subr.mxu0 0.0
      %884 = vmatpush1.msra.mxu0 %v114
      %885 = vmatprep.subr.mxu0 0.0
      %886 = vmatpush1.msra.mxu0 %v115
      %887 = vmatprep.subr.mxu0 0.0
      %888 = vmatpush1.msra.mxu0 0.0
      %889 = vmatprep.subr.mxu0 0.0
      %890 = vmatpush1.msra.mxu0 0.0
      %891 = vmatprep.subr.mxu0 0.0
      %892 = vmatpush1.msra.mxu0 0.0
      %893 = vmatprep.subr.mxu0 0.0
      %894 = vmatpush1.msra.mxu0 0.0
      %895 = vmatprep.subr.mxu0 0.0
      %896 = vmatpush1.msra.mxu0 0.0
      %897 = vmatprep.subr.mxu0 0.0
      %898 = vmatpush1.msra.mxu0 0.0
      %899 = vmatprep.subr.mxu0 0.0
      %900 = vmatpush1.msra.mxu0 0.0
      %901 = vmatprep.subr.mxu0 0.0
      %902 = vmatpush1.msra.mxu0 0.0
      %903 = vmatprep.subr.mxu0 0.0
      %904 = vmatpush1.msra.mxu0 0.0
      %905 = vmatprep.subr.mxu0 0.0
      %906 = vmatpush1.msra.mxu0 0.0
      %907 = vmatprep.subr.mxu0 0.0
      %908 = vmatpush1.msra.mxu0 0.0
      %909 = vmatprep.subr.mxu0 0.0
      %910 = vmatpush1.msra.mxu0 0.0
      %911 = vmatprep.subr.mxu0 0.0
      %912 = vmatpush1.msra.mxu0 0.0
      %913 = vmatprep.subr.mxu0 0.0
      %914 = vmatpush1.msra.mxu0 0.0
      %915 = vmatprep.subr.mxu0 0.0
      %916 = vmatpush1.msra.mxu0 0.0
      %917 = vmatprep.subr.mxu0 0.0
      %918 = vmatpush1.msra.mxu0 0.0
      %919 = vmatprep.mubr.f32.mxu0 0.0
      %920 = vmatmul.mubr.f32.gmra.mrb[0].mxu0 %v830
      %v921 = vpop.f32.mrb[0].mxu0
      %v922 = vadd.f32 0.0, %v921
      %v923 = vpop.f32.mrb[0].mxu0
      %924 = vdwg.mxu0
      %v925 = vadd.f32 %v267, %v922
      %v926 = vtanh.pop %v925
      %v927 = vmul.f32 %v926, %v351
      %928 = vadd.xlane.f32.xlu0 %v927
      %v929 = vpop.xlane.xlu0 %928
      %v930 = vadd.f32 %v929, %v356
      %v931 = vxor.u32 %v930, 2147483648
      %v932 = vmul.f32 %v931, 1.442695
      %v933 = vpow.pop %v932
      %v934 = vadd.f32 %v933, 1.0
      %v935 = vrcp.pop %v934
      %v936 = vmul.f32 1.0, %v935
      %v937 = vmul.f32 %v849, %v936
      %v938 = vadd.f32 %v842, %v937
      %v939 = vadd.f32 %v938, %v936
      %vm940 = vcmp.gt.f32.partialorder %v939, 0.99
      %v941 = vsel %vm940, 1, 0
      %v942 = vcvt.s32.f32 %v941
      %v943 = vmul.f32 %v849, %v942
      %v944 = vsub.f32 1.0, %v943
      %v945 = vmul.f32 %v849, %v944
      %v946 = vsub.f32 1.0, %v938
      %v947 = vmul.f32 %v943, %v946
      %v948 = vadd.f32 %v937, %v947
      %v949 = vmul.f32 %v948, %v926
      %v950 = vadd.f32 %v854, %v949
      %v951 = vmul.f32 %v945, %v946
      %v952 = vmul.f32 %v951, %v926
      %v953 = vadd.f32 %v950, %v952
      %s954 = scalar_lea.vmem [#allocation14], %s265
      %955 = vst [vmem:[%s954] sm:$0xff] %v953
      %s956 = smul.u32 0, 6
      %s957 = sadd.s32 %s956, %s258
      %p958 = scmp.lt.s32.totalorder %s957, 6
      %s959 = scalar_select %p958, 1, 0
      %s960 = scvt.s32.f32 %s959
      %v961 = vstv %s960
      %v962 = vmul.f32 %v961, %v938
      %v963 = vadd.f32 %v264, %v962
    $region62: #{tpu_custom_call.1} parent=1 // loop_footer
      %s262 = sadd.s32 1, %s258
    $region63: #{tpu_custom_call.1} parent=1 // loop_footer_branch
      %257 = sbr.rel target = $region59
    $region64: #{tpu_custom_call.1} parent=1 // loop_exit
      _
    %964 = vst [vmem:[#allocation2] sm:$0xff] %v263
    %v965 = vld [vmem:[#allocation4] sm:$0xff]
    %v966 = vadd.f32 %v965, %v264
    %vm967 = vcmask 7168
    %968 = vst.msk [vmem:[#allocation4] sm:$0xff] %vm967, %v966
    // Predicated region
    $region65: #{tpu_custom_call.1} parent=1 // pred_check
      %p969 = pneg %p91
    $region66: #{tpu_custom_call.1} parent=1 // pred_check_branch
      %971 = sbr.rel (%p969) target = $region68
    $region67: #{tpu_custom_call.1} parent=1 // pred_region
      %v972 = vlaneseq
      %v973 = vshrl.u32 %v972, 7
      %s974 = smul.u32 0, 8
      %v975 = vstv %s974
      %v976 = vadd.s32 %v973, %v975
      %vm977 = vcmp.lt.s32.totalorder %v976, 4
      %v978 = vsel %vm977, 1, 0
      %v979 = vcvt.s32.f32 %v978
      %v980 = vld [vmem:[#allocation4] sm:$0xff]
      %v981 = vmul.f32 %v980, %v979
      %v982 = vsel %vm967, %v981, 0.0
      %983 = vadd.xlane.f32.xlu0 %v982
      %v984 = vpop.xlane.xlu0 %983
      %v985 = vrot.slane %v984, 4
      %v986 = vadd.f32 %v984, %v985
      %v987 = vrot.slane %v986, 2
      %v988 = vadd.f32 %v986, %v987
      %v989 = vrot.slane %v988, 1
      %v990 = vadd.f32 %v988, %v989
      %s991 = vtos %v990
      %s992 = smul.f32 %s991, -0.0025
      %v993 = vstv %s992
      %994 = vst [vmem:[#allocation15] sm:$0x1] %v993
    $region68: #{tpu_custom_call.1} parent=1 // pred_fallthru
      _
    // Predicated region
    $region69: #{tpu_custom_call.1} parent=1 // pred_check
      _
    $region70: #{tpu_custom_call.1} parent=1 // pred_check_branch
      %996 = sbr.rel (0) target = $region72
    $region71: #{tpu_custom_call.1} parent=1 // pred_region
      %s998 = ssub.s32 768, 768
      %999 = vsyncadd [#allocation8], %s998
      %s1000 = sshll.u32 [#allocation14], 4
      %s1001 = int_to_ptr.vmem [resolvable:$true] %s1000
      %1006 = dma.vmem_to_hbm [thread:$0]  %s1001, 768, %s9, [#allocation8], 128, 128, 8
    $region72: #{tpu_custom_call.1} parent=1 // pred_fallthru
      _
    // Predicated region
    $region73: #{tpu_custom_call.1} parent=1 // pred_check
      _
    $region74: #{tpu_custom_call.1} parent=1 // pred_check_branch
      %1008 = sbr.rel (0) target = $region76
    $region75: #{tpu_custom_call.1} parent=1 // pred_region
      %s1010 = ssub.s32 16, 16
      %1011 = vsyncadd [#allocation16], %s1010
      %s1013 = sshll.u32 [#allocation15], 4
      %s1014 = int_to_ptr.vmem [resolvable:$true] %s1013
      %1016 = dma.vmem_to_hbm [thread:$0]  %s1014, 16, %s10, [#allocation16]
    $region76: #{tpu_custom_call.1} parent=1 // pred_fallthru
      _
    // Predicated region
    $region77: #{tpu_custom_call.1} parent=1 // pred_check
      _
    $region78: #{tpu_custom_call.1} parent=1 // pred_check_branch
      %1018 = sbr.rel (0) target = $region80
    $region79: #{tpu_custom_call.1} parent=1 // pred_region
      %1019 = dma.done [#allocation8], 768
    $region80: #{tpu_custom_call.1} parent=1 // pred_fallthru
      _
    // Predicated region
    $region81: #{tpu_custom_call.1} parent=1 // pred_check
      _
    $region82: #{tpu_custom_call.1} parent=1 // pred_check_branch
      %1021 = sbr.rel (0) target = $region84
    $region83: #{tpu_custom_call.1} parent=1 // pred_region
      %1022 = dma.done [#allocation16], 16
    $region84: #{tpu_custom_call.1} parent=1 // pred_fallthru
      _
    %1023 = vsyncpa [#allocation7], 1
    %1024 = vsyncpa [#allocation10], 1
    %1025 = vsyncpa [#allocation13], 1
    %1026 = vsyncpa [#allocation8], 1
    %1027 = vsyncpa [#allocation16], 1

// kernel: tpu_custom_call.1
$region0: #{tpu_custom_call.1}
  #allocation0 [shape = 'u32[]', space=smem, size = 0x4, offset = 0x4, fixed_abs, tag = 'smem constant byte address 0x4 - core index']
  #allocation1 [shape = 'u32[144,128]{1,0:T(1,128)}', space=vmem, size = 0x12000, scoped, tag = 'internal scratch']
  #allocation2 [shape = 'f32[8,128]{1,0:T(8,128)}', space=vmem, size = 0x1000, scoped, tag = 'scratch operand']
  #allocation3 [shape = 'f32[48,128]{1,0:T(8,128)}', space=vmem, size = 0x6000, scoped, tag = 'scratch operand']
  #allocation4 [shape = 'f32[8,1]{1,0:T(8,128)}', space=vmem, size = 0x1000, scoped, tag = 'scratch operand']
  #allocation5 [shape = 'f32[1,1]{1,0:T(1,128)S(1)}', space=vmem, size = 0x200, scoped, tag = 'scoped memory for tpu_custom_call.1']
  %s0 = inlined_call_operand.hbm [shape: f32[6,8,16], index: 0, kind: input, shape index: {}]
  %s1 = inlined_call_operand.hbm [shape: f32[8,128], index: 1, kind: input, shape index: {}]
  %s2 = inlined_call_operand.hbm [shape: f32[16,128], index: 2, kind: input, shape index: {}]
  %s3 = inlined_call_operand.vmem [shape: f32[1,128], index: 3, kind: input, shape index: {}]
  %s4 = inlined_call_operand.hbm [shape: f32[128,128], index: 4, kind: input, shape index: {}]
  %s5 = inlined_call_operand.vmem [shape: f32[1,128], index: 5, kind: input, shape index: {}]
  %s6 = inlined_call_operand.vmem [shape: f32[1,128], index: 6, kind: input, shape index: {}]
  %s7 = inlined_call_operand.vmem [shape: f32[1,128], index: 7, kind: input, shape index: {}]
  %s8 = inlined_call_operand.<no memory space> [shape: f32[1,1], index: 8, kind: input, shape index: {}]
  %s9 = inlined_call_operand.hbm [shape: f32[6,8,128], index: 9, kind: output, shape index: {0}]
  %s10 = inlined_call_operand.hbm [shape: f32[1,1,128], index: 10, kind: output, shape index: {1}]
  %11 = xla_tuple %s9, %s10
  %s12 = sld [smem:[#allocation0]]
  $region85: #{tpu_custom_call.1} parent=0
    _
  %s14 = ssub.s32 1, %s12
  %s15 = scalar_select 0, %s14, %s12
  %v16 = vstv %s8
  %17 = vst [vmem:[#allocation5] sm:$0x1] %v16
  $region1: #{tpu_custom_call.1} parent=0
    #allocation6 [shape = 'u8[24576]{0}', space=vmem, size = 0x6000, scoped, tag = 'input window, operand 0, single buffered']
    #allocation7 [shape = 's32[1]{0}', space=sflag, size = 0x4, scoped, tag = 'scoped memory for tpu_custom_call.1']
    #allocation8 [shape = 's32[1]{0}', space=sflag, size = 0x4, scoped, tag = 'scoped memory for tpu_custom_call.1']
    #allocation9 [shape = 'u8[4096]{0}', space=vmem, size = 0x1000, scoped, tag = 'input window, operand 1, single buffered']
    #allocation10 [shape = 's32[1]{0}', space=sflag, size = 0x4, scoped, tag = 'scoped memory for tpu_custom_call.1']
    #allocation11 [shape = 'u8[8192]{0}', space=vmem, size = 0x2000, scoped, tag = 'input window, operand 2, single buffered']
    #allocation12 [shape = 'u8[65536]{0}', space=vmem, size = 0x10000, scoped, tag = 'input window, operand 4, single buffered']
    #allocation13 [shape = 's32[1]{0}', space=sflag, size = 0x4, scoped, tag = 'scoped memory for tpu_custom_call.1']
    #allocation14 [shape = 'u8[24576]{0}', space=vmem, size = 0x6000, scoped, tag = 'output window, operand 0, single buffered']
    #allocation15 [shape = 'u8[512]{0}', space=vmem, size = 0x400, scoped, tag = 'output window, operand 1, single buffered']
    #allocation16 [shape = 's32[1]{0}', space=sflag, size = 0x4, scoped, tag = 'scoped memory for tpu_custom_call.1']
    %18 = vsyncpa [#allocation7], 0
    %19 = vsyncpa [#allocation10], 0
    %20 = vsyncpa [#allocation13], 0
    %21 = vsyncpa [#allocation8], 0
    %22 = vsyncpa [#allocation16], 0
    // Predicated region
    $region2: #{tpu_custom_call.1} parent=1 // pred_check
      _
    $region3: #{tpu_custom_call.1} parent=1 // pred_check_branch
      %24 = sbr.rel (0) target = $region5
    $region4: #{tpu_custom_call.1} parent=1 // pred_region
      %s26 = ssub.s32 768, 768
      %27 = vsyncadd [#allocation7], %s26
      %s28 = sshll.u32 [#allocation6], 4
      %s29 = int_to_ptr.vmem [resolvable:$true] %s28
      %34 = dma.hbm_to_vmem [thread:$0]  %s0, 768, %s29, [#allocation7], 128, 128, 8
    $region5: #{tpu_custom_call.1} parent=1 // pred_fallthru
      _
    // Predicated region
    $region6: #{tpu_custom_call.1} parent=1 // pred_check
      _
    $region7: #{tpu_custom_call.1} parent=1 // pred_check_branch
      %36 = sbr.rel (0) target = $region9
    $region8: #{tpu_custom_call.1} parent=1 // pred_region
      %s38 = ssub.s32 128, 128
      %39 = vsyncadd [#allocation10], %s38
      %s41 = sshll.u32 [#allocation9], 4
      %s42 = int_to_ptr.vmem [resolvable:$true] %s41
      %44 = dma.hbm_to_vmem [thread:$0]  %s1, 128, %s42, [#allocation10]
    $region9: #{tpu_custom_call.1} parent=1 // pred_fallthru
      _
    // Predicated region
    $region10: #{tpu_custom_call.1} parent=1 // pred_check
      _
    $region11: #{tpu_custom_call.1} parent=1 // pred_check_branch
      %46 = sbr.rel (0) target = $region13
    $region12: #{tpu_custom_call.1} parent=1 // pred_region
      %s48 = ssub.s32 256, 256
      %49 = vsyncadd [#allocation10], %s48
      %s50 = sshll.u32 [#allocation11], 4
      %s51 = int_to_ptr.vmem [resolvable:$true] %s50
      %56 = dma.hbm_to_vmem [thread:$0]  %s2, 256, %s51, [#allocation10], 128, 128, 8
    $region13: #{tpu_custom_call.1} parent=1 // pred_fallthru
      _
    // Predicated region
    $region14: #{tpu_custom_call.1} parent=1 // pred_check
      _
    $region15: #{tpu_custom_call.1} parent=1 // pred_check_branch
      %58 = sbr.rel (0) target = $region17
    $region16: #{tpu_custom_call.1} parent=1 // pred_region
      _
    $region17: #{tpu_custom_call.1} parent=1 // pred_fallthru
      _
    // Predicated region
    $region18: #{tpu_custom_call.1} parent=1 // pred_check
      _
    $region19: #{tpu_custom_call.1} parent=1 // pred_check_branch
      %60 = sbr.rel (0) target = $region21
    $region20: #{tpu_custom_call.1} parent=1 // pred_region
      %s62 = ssub.s32 2048, 2048
      %63 = vsyncadd [#allocation13], %s62
      %s64 = sshll.u32 [#allocation12], 4
      %s65 = int_to_ptr.vmem [resolvable:$true] %s64
      %70 = dma.hbm_to_vmem [thread:$0]  %s4, 2048, %s65, [#allocation13], 128, 128, 8
    $region21: #{tpu_custom_call.1} parent=1 // pred_fallthru
      _
    // Predicated region
    $region22: #{tpu_custom_call.1} parent=1 // pred_check
      _
    $region23: #{tpu_custom_call.1} parent=1 // pred_check_branch
      %72 = sbr.rel (0) target = $region25
    $region24: #{tpu_custom_call.1} parent=1 // pred_region
      _
    $region25: #{tpu_custom_call.1} parent=1 // pred_fallthru
      _
    // Predicated region
    $region26: #{tpu_custom_call.1} parent=1 // pred_check
      _
    $region27: #{tpu_custom_call.1} parent=1 // pred_check_branch
      %74 = sbr.rel (0) target = $region29
    $region28: #{tpu_custom_call.1} parent=1 // pred_region
      _
    $region29: #{tpu_custom_call.1} parent=1 // pred_fallthru
      _
    // Predicated region
    $region30: #{tpu_custom_call.1} parent=1 // pred_check
      _
    $region31: #{tpu_custom_call.1} parent=1 // pred_check_branch
      %76 = sbr.rel (0) target = $region33
    $region32: #{tpu_custom_call.1} parent=1 // pred_region
      _
    $region33: #{tpu_custom_call.1} parent=1 // pred_fallthru
      _
    // Predicated region
    $region34: #{tpu_custom_call.1} parent=1 // pred_check
      _
    $region35: #{tpu_custom_call.1} parent=1 // pred_check_branch
      %78 = sbr.rel (0) target = $region37
    $region36: #{tpu_custom_call.1} parent=1 // pred_region
      _
    $region37: #{tpu_custom_call.1} parent=1 // pred_fallthru
      _
    // Predicated region
    $region38: #{tpu_custom_call.1} parent=1 // pred_check
      _
    $region39: #{tpu_custom_call.1} parent=1 // pred_check_branch
      %80 = sbr.rel (0) target = $region41
    $region40: #{tpu_custom_call.1} parent=1 // pred_region
      %81 = dma.done [#allocation7], 768
    $region41: #{tpu_custom_call.1} parent=1 // pred_fallthru
      _
    // Predicated region
    $region42: #{tpu_custom_call.1} parent=1 // pred_check
      _
    $region43: #{tpu_custom_call.1} parent=1 // pred_check_branch
      %83 = sbr.rel (0) target = $region45
    $region44: #{tpu_custom_call.1} parent=1 // pred_region
      %84 = dma.done [#allocation10], 128
    $region45: #{tpu_custom_call.1} parent=1 // pred_fallthru
      _
    // Predicated region
    $region46: #{tpu_custom_call.1} parent=1 // pred_check
      _
    $region47: #{tpu_custom_call.1} parent=1 // pred_check_branch
      %86 = sbr.rel (0) target = $region49
    $region48: #{tpu_custom_call.1} parent=1 // pred_region
      %87 = dma.done [#allocation10], 256
    $region49: #{tpu_custom_call.1} parent=1 // pred_fallthru
      _
    // Predicated region
    $region50: #{tpu_custom_call.1} parent=1 // pred_check
      _
    $region51: #{tpu_custom_call.1} parent=1 // pred_check_branch
      %89 = sbr.rel (0) target = $region53
    $region52: #{tpu_custom_call.1} parent=1 // pred_region
      %90 = dma.done [#allocation13], 2048
    $region53: #{tpu_custom_call.1} parent=1 // pred_fallthru
      _
    %p91 = scmp.eq.s32.totalorder 0, 0
    // Predicated region
    $region54: #{tpu_custom_call.1} parent=1 // pred_check
      %p92 = pneg %p91
    $region55: #{tpu_custom_call.1} parent=1 // pred_check_branch
      %94 = sbr.rel (%p92) target = $region57
    $region56: #{tpu_custom_call.1} parent=1 // pred_region
      %v95 = vld [vmem:[#allocation9] sm:$0xff]
      %96 = vst [vmem:[#allocation2] sm:$0xff] %v95
      %vm97 = vcmask 7168
      %98 = vst.msk [vmem:[#allocation4] sm:$0xff] %vm97, 0.0
    $region57: #{tpu_custom_call.1} parent=1 // pred_fallthru
      _
    %v99 = vld [vmem:[%s3] sm:$0x1]
    %v100 = vld [vmem:[#allocation12] sm:$0xff]
    %v101 = vld [vmem:[#allocation12 + $0x8] sm:$0xff]
    %v102 = vld [vmem:[#allocation12 + $0x10] sm:$0xff]
    %v103 = vld [vmem:[#allocation12 + $0x18] sm:$0xff]
    %v104 = vld [vmem:[#allocation12 + $0x20] sm:$0xff]
    %v105 = vld [vmem:[#allocation12 + $0x28] sm:$0xff]
    %v106 = vld [vmem:[#allocation12 + $0x30] sm:$0xff]
    %v107 = vld [vmem:[#allocation12 + $0x38] sm:$0xff]
    %v108 = vld [vmem:[#allocation12 + $0x40] sm:$0xff]
    %v109 = vld [vmem:[#allocation12 + $0x48] sm:$0xff]
    %v110 = vld [vmem:[#allocation12 + $0x50] sm:$0xff]
    %v111 = vld [vmem:[#allocation12 + $0x58] sm:$0xff]
    %v112 = vld [vmem:[#allocation12 + $0x60] sm:$0xff]
    %v113 = vld [vmem:[#allocation12 + $0x68] sm:$0xff]
    %v114 = vld [vmem:[#allocation12 + $0x70] sm:$0xff]
    %v115 = vld [vmem:[#allocation12 + $0x78] sm:$0xff]
    %v116 = vld [vmem:[%s5] sm:$0x1]
    %v117 = vld [vmem:[%s6] sm:$0x1]
    %v118 = vadd.f32 %v116, %v117
    %v119 = vld [vmem:[%s7] sm:$0x1]
    %v120 = vld [vmem:[#allocation5] sm:$0x1]
    %s121 = vtos %v120
    %v122 = vld [vmem:[#allocation6] sm:$0xff]
    %v123 = vld [vmem:[#allocation6 + $0x8] sm:$0xff]
    %v124 = vld [vmem:[#allocation6 + $0x10] sm:$0xff]
    %v125 = vld [vmem:[#allocation6 + $0x18] sm:$0xff]
    %v126 = vld [vmem:[#allocation6 + $0x20] sm:$0xff]
    %v127 = vld [vmem:[#allocation6 + $0x28] sm:$0xff]
    %v128 = vld [vmem:[#allocation11] sm:$0xff]
    %v129 = vld [vmem:[#allocation11 + $0x8] sm:$0xff]
    %v131 = vlaneseq
    %v132 = vshrl.u32 %v131, 7
    %v133 = vsub.s32 0, %v132
    %v134 = vrot.slane %v118, %v133
    %vm136 = vcmask 130048
    %v138 = vsel %vm136, %v122, 0
    %v141 = vsel %vm136, %v123, 0
    %v144 = vsel %vm136, %v124, 0
    %v147 = vsel %vm136, %v125, 0
    %v150 = vsel %vm136, %v126, 0
    %v153 = vsel %vm136, %v127, 0
    %155 = vmatprep.subr.mxu0 0.0
    %156 = vmatpush1.msra.mxu0 %v128
    %157 = vmatprep.subr.mxu0 0.0
    %158 = vmatpush1.msra.mxu0 %v129
    %159 = vmatprep.subr.mxu0 0.0
    %160 = vmatpush1.msra.mxu0 0.0
    %161 = vmatprep.subr.mxu0 0.0
    %162 = vmatpush1.msra.mxu0 0.0
    %163 = vmatprep.subr.mxu0 0.0
    %164 = vmatpush1.msra.mxu0 0.0
    %165 = vmatprep.subr.mxu0 0.0
    %166 = vmatpush1.msra.mxu0 0.0
    %167 = vmatprep.subr.mxu0 0.0
    %168 = vmatpush1.msra.mxu0 0.0
    %169 = vmatprep.subr.mxu0 0.0
    %170 = vmatpush1.msra.mxu0 0.0
    %171 = vmatprep.subr.mxu0 0.0
    %172 = vmatpush1.msra.mxu0 0.0
    %173 = vmatprep.subr.mxu0 0.0
    %174 = vmatpush1.msra.mxu0 0.0
    %175 = vmatprep.subr.mxu0 0.0
    %176 = vmatpush1.msra.mxu0 0.0
    %177 = vmatprep.subr.mxu0 0.0
    %178 = vmatpush1.msra.mxu0 0.0
    %179 = vmatprep.subr.mxu0 0.0
    %180 = vmatpush1.msra.mxu0 0.0
    %181 = vmatprep.subr.mxu0 0.0
    %182 = vmatpush1.msra.mxu0 0.0
    %183 = vmatprep.subr.mxu0 0.0
    %184 = vmatpush1.msra.mxu0 0.0
    %185 = vmatprep.subr.mxu0 0.0
    %186 = vmatpush1.msra.mxu0 0.0
    %187 = vmatprep.subr.mxu0 0.0
    %188 = vmatpush1.msra.mxu0 0.0
    %189 = vmatprep.subr.mxu0 0.0
    %190 = vmatpush1.msra.mxu0 0.0
    %191 = vmatprep.subr.mxu0 0.0
    %192 = vmatpush1.msra.mxu0 0.0
    %193 = vmatprep.subr.mxu0 0.0
    %194 = vmatpush1.msra.mxu0 0.0
    %195 = vmatprep.subr.mxu0 0.0
    %196 = vmatpush1.msra.mxu0 0.0
    %197 = vmatprep.subr.mxu0 0.0
    %198 = vmatpush1.msra.mxu0 0.0
    %199 = vmatprep.subr.mxu0 0.0
    %200 = vmatpush1.msra.mxu0 0.0
    %201 = vmatprep.subr.mxu0 0.0
    %202 = vmatpush1.msra.mxu0 0.0
    %203 = vmatprep.subr.mxu0 0.0
    %204 = vmatpush1.msra.mxu0 0.0
    %205 = vmatprep.subr.mxu0 0.0
    %206 = vmatpush1.msra.mxu0 0.0
    %207 = vmatprep.subr.mxu0 0.0
    %208 = vmatpush1.msra.mxu0 0.0
    %209 = vmatprep.subr.mxu0 0.0
    %210 = vmatpush1.msra.mxu0 0.0
    %211 = vmatprep.subr.mxu0 0.0
    %212 = vmatpush1.msra.mxu0 0.0
    %213 = vmatprep.subr.mxu0 0.0
    %214 = vmatpush1.msra.mxu0 0.0
    %215 = vmatprep.subr.mxu0 0.0
    %216 = vmatpush1.msra.mxu0 0.0
    %217 = vmatprep.subr.mxu0 0.0
    %218 = vmatpush1.msra.mxu0 0.0
    %219 = vmatprep.mubr.f32.mxu0 0.0
    %220 = vmatmul.mubr.f32.gmra.mrb[0].mxu0 %v138
    %v221 = vpop.f32.mrb[0].mxu0
    %v222 = vadd.f32 %v134, %v221
    %v223 = vpop.f32.mrb[0].mxu0
    %224 = vmatprep.mubr.f32.mxu0 0.0
    %225 = vmatmul.mubr.f32.gmra.mrb[0].mxu0 %v141
    %v226 = vpop.f32.mrb[0].mxu0
    %v227 = vadd.f32 %v134, %v226
    %v228 = vpop.f32.mrb[0].mxu0
    %229 = vmatprep.mubr.f32.mxu0 0.0
    %230 = vmatmul.mubr.f32.gmra.mrb[0].mxu0 %v144
    %v231 = vpop.f32.mrb[0].mxu0
    %v232 = vadd.f32 %v134, %v231
    %v233 = vpop.f32.mrb[0].mxu0
    %234 = vmatprep.mubr.f32.mxu0 0.0
    %235 = vmatmul.mubr.f32.gmra.mrb[0].mxu0 %v147
    %v236 = vpop.f32.mrb[0].mxu0
    %v237 = vadd.f32 %v134, %v236
    %v238 = vpop.f32.mrb[0].mxu0
    %239 = vmatprep.mubr.f32.mxu0 0.0
    %240 = vmatmul.mubr.f32.gmra.mrb[0].mxu0 %v150
    %v241 = vpop.f32.mrb[0].mxu0
    %v242 = vadd.f32 %v134, %v241
    %v243 = vpop.f32.mrb[0].mxu0
    %244 = vmatprep.mubr.f32.mxu0 0.0
    %245 = vmatmul.mubr.f32.gmra.mrb[0].mxu0 %v153
    %v246 = vpop.f32.mrb[0].mxu0
    %v247 = vadd.f32 %v134, %v246
    %v248 = vpop.f32.mrb[0].mxu0
    %249 = vdwg.mxu0
    %250 = vst [vmem:[#allocation3] sm:$0xff] %v222
    %251 = vst [vmem:[#allocation3 + $0x8] sm:$0xff] %v227
    %252 = vst [vmem:[#allocation3 + $0x10] sm:$0xff] %v232
    %253 = vst [vmem:[#allocation3 + $0x18] sm:$0xff] %v237
    %254 = vst [vmem:[#allocation3 + $0x20] sm:$0xff] %v242
    %255 = vst [vmem:[#allocation3 + $0x28] sm:$0xff] %v247
    %v256 = vld [vmem:[#allocation2] sm:$0xff]
    loop: start=0, step=1, limit=6
    $region58: #{tpu_custom_call.1} parent=1 // loop_pre_header
      _
    $region59: #{tpu_custom_call.1} parent=1 // loop_header
      %s258 = sphi 0, %s262
      %p259 = scmp.ge.s32.totalorder %s258, 6
      %v263 = vphi %v256, %v953
      %v264 = vphi 0.0, %v963
    $region60: #{tpu_custom_call.1} parent=1 // loop_header_branch
      %261 = sbr.rel (%p259) target = $region64
    $region61: #{tpu_custom_call.1} parent=1 // loop_body
      %s265 = smul.u32 %s258, 8
      %s266 = scalar_lea.vmem [#allocation3], %s265
      %v267 = vld [vmem:[%s266] sm:$0xff]
      %v269 = vlaneseq
      %v270 = vshrl.u32 %v269, 7
      %v271 = vsub.s32 0, %v270
      %v272 = vrot.slane %v99, %v271
      %v274 = vadd.f32 %v267, %v272
      %275 = vmatprep.subr.mxu0 0.0
      %276 = vmatpush1.msra.mxu0 %v100
      %277 = vmatprep.subr.mxu0 0.0
      %278 = vmatpush1.msra.mxu0 %v101
      %279 = vmatprep.subr.mxu0 0.0
      %280 = vmatpush1.msra.mxu0 %v102
      %281 = vmatprep.subr.mxu0 0.0
      %282 = vmatpush1.msra.mxu0 %v103
      %283 = vmatprep.subr.mxu0 0.0
      %284 = vmatpush1.msra.mxu0 %v104
      %285 = vmatprep.subr.mxu0 0.0
      %286 = vmatpush1.msra.mxu0 %v105
      %287 = vmatprep.subr.mxu0 0.0
      %288 = vmatpush1.msra.mxu0 %v106
      %289 = vmatprep.subr.mxu0 0.0
      %290 = vmatpush1.msra.mxu0 %v107
      %291 = vmatprep.subr.mxu0 0.0
      %292 = vmatpush1.msra.mxu0 %v108
      %293 = vmatprep.subr.mxu0 0.0
      %294 = vmatpush1.msra.mxu0 %v109
      %295 = vmatprep.subr.mxu0 0.0
      %296 = vmatpush1.msra.mxu0 %v110
      %297 = vmatprep.subr.mxu0 0.0
      %298 = vmatpush1.msra.mxu0 %v111
      %299 = vmatprep.subr.mxu0 0.0
      %300 = vmatpush1.msra.mxu0 %v112
      %301 = vmatprep.subr.mxu0 0.0
      %302 = vmatpush1.msra.mxu0 %v113
      %303 = vmatprep.subr.mxu0 0.0
      %304 = vmatpush1.msra.mxu0 %v114
      %305 = vmatprep.subr.mxu0 0.0
      %306 = vmatpush1.msra.mxu0 %v115
      %307 = vmatprep.subr.mxu0 0.0
      %308 = vmatpush1.msra.mxu0 0.0
      %309 = vmatprep.subr.mxu0 0.0
      %310 = vmatpush1.msra.mxu0 0.0
      %311 = vmatprep.subr.mxu0 0.0
      %312 = vmatpush1.msra.mxu0 0.0
      %313 = vmatprep.subr.mxu0 0.0
      %314 = vmatpush1.msra.mxu0 0.0
      %315 = vmatprep.subr.mxu0 0.0
      %316 = vmatpush1.msra.mxu0 0.0
      %317 = vmatprep.subr.mxu0 0.0
      %318 = vmatpush1.msra.mxu0 0.0
      %319 = vmatprep.subr.mxu0 0.0
      %320 = vmatpush1.msra.mxu0 0.0
      %321 = vmatprep.subr.mxu0 0.0
      %322 = vmatpush1.msra.mxu0 0.0
      %323 = vmatprep.subr.mxu0 0.0
      %324 = vmatpush1.msra.mxu0 0.0
      %325 = vmatprep.subr.mxu0 0.0
      %326 = vmatpush1.msra.mxu0 0.0
      %327 = vmatprep.subr.mxu0 0.0
      %328 = vmatpush1.msra.mxu0 0.0
      %329 = vmatprep.subr.mxu0 0.0
      %330 = vmatpush1.msra.mxu0 0.0
      %331 = vmatprep.subr.mxu0 0.0
      %332 = vmatpush1.msra.mxu0 0.0
      %333 = vmatprep.subr.mxu0 0.0
      %334 = vmatpush1.msra.mxu0 0.0
      %335 = vmatprep.subr.mxu0 0.0
      %336 = vmatpush1.msra.mxu0 0.0
      %337 = vmatprep.subr.mxu0 0.0
      %338 = vmatpush1.msra.mxu0 0.0
      %339 = vmatprep.mubr.f32.mxu0 0.0
      %340 = vmatmul.mubr.f32.gmra.mrb[0].mxu0 %v263
      %v341 = vpop.f32.mrb[0].mxu0
      %v342 = vadd.f32 0.0, %v341
      %v343 = vpop.f32.mrb[0].mxu0
      %344 = vdwg.mxu0
      %v345 = vadd.f32 %v274, %v342
      %v346 = vtanh.pop %v345
      %v348 = vlaneseq
      %v349 = vshrl.u32 %v348, 7
      %v350 = vsub.s32 0, %v349
      %v351 = vrot.slane %v119, %v350
      %v353 = vmul.f32 %v346, %v351
      %354 = vadd.xlane.f32.xlu0 %v353
      %v355 = vpop.xlane.xlu0 %354
      %v356 = vstv %s121
      %v357 = vadd.f32 %v355, %v356
      %v358 = vxor.u32 %v357, 2147483648
      %v359 = vmul.f32 %v358, 1.442695
      %v360 = vpow.pop %v359
      %v361 = vadd.f32 %v360, 1.0
      %v362 = vrcp.pop %v361
      %v363 = vmul.f32 1.0, %v362
      %v364 = vadd.f32 %v363, 0.0
      %v365 = vadd.f32 %v364, %v363
      %vm366 = vcmp.gt.f32.partialorder %v365, 0.99
      %v367 = vsel %vm366, 1, 0
      %v368 = vcvt.s32.f32 %v367
      %v369 = vsub.f32 1.0, %v368
      %v370 = vsub.f32 1.0, %v364
      %v371 = vmul.f32 %v368, %v370
      %v372 = vadd.f32 %v363, %v371
      %v373 = vmul.f32 %v372, %v346
      %v374 = vadd.f32 %v373, 0.0
      %375 = vmatprep.subr.mxu0 0.0
      %376 = vmatpush1.msra.mxu0 %v100
      %377 = vmatprep.subr.mxu0 0.0
      %378 = vmatpush1.msra.mxu0 %v101
      %379 = vmatprep.subr.mxu0 0.0
      %380 = vmatpush1.msra.mxu0 %v102
      %381 = vmatprep.subr.mxu0 0.0
      %382 = vmatpush1.msra.mxu0 %v103
      %383 = vmatprep.subr.mxu0 0.0
      %384 = vmatpush1.msra.mxu0 %v104
      %385 = vmatprep.subr.mxu0 0.0
      %386 = vmatpush1.msra.mxu0 %v105
      %387 = vmatprep.subr.mxu0 0.0
      %388 = vmatpush1.msra.mxu0 %v106
      %389 = vmatprep.subr.mxu0 0.0
      %390 = vmatpush1.msra.mxu0 %v107
      %391 = vmatprep.subr.mxu0 0.0
      %392 = vmatpush1.msra.mxu0 %v108
      %393 = vmatprep.subr.mxu0 0.0
      %394 = vmatpush1.msra.mxu0 %v109
      %395 = vmatprep.subr.mxu0 0.0
      %396 = vmatpush1.msra.mxu0 %v110
      %397 = vmatprep.subr.mxu0 0.0
      %398 = vmatpush1.msra.mxu0 %v111
      %399 = vmatprep.subr.mxu0 0.0
      %400 = vmatpush1.msra.mxu0 %v112
      %401 = vmatprep.subr.mxu0 0.0
      %402 = vmatpush1.msra.mxu0 %v113
      %403 = vmatprep.subr.mxu0 0.0
      %404 = vmatpush1.msra.mxu0 %v114
      %405 = vmatprep.subr.mxu0 0.0
      %406 = vmatpush1.msra.mxu0 %v115
      %407 = vmatprep.subr.mxu0 0.0
      %408 = vmatpush1.msra.mxu0 0.0
      %409 = vmatprep.subr.mxu0 0.0
      %410 = vmatpush1.msra.mxu0 0.0
      %411 = vmatprep.subr.mxu0 0.0
      %412 = vmatpush1.msra.mxu0 0.0
      %413 = vmatprep.subr.mxu0 0.0
      %414 = vmatpush1.msra.mxu0 0.0
      %415 = vmatprep.subr.mxu0 0.0
      %416 = vmatpush1.msra.mxu0 0.0
      %417 = vmatprep.subr.mxu0 0.0
      %418 = vmatpush1.msra.mxu0 0.0
      %419 = vmatprep.subr.mxu0 0.0
      %420 = vmatpush1.msra.mxu0 0.0
      %421 = vmatprep.subr.mxu0 0.0
      %422 = vmatpush1.msra.mxu0 0.0
      %423 = vmatprep.subr.mxu0 0.0
      %424 = vmatpush1.msra.mxu0 0.0
      %425 = vmatprep.subr.mxu0 0.0
      %426 = vmatpush1.msra.mxu0 0.0
      %427 = vmatprep.subr.mxu0 0.0
      %428 = vmatpush1.msra.mxu0 0.0
      %429 = vmatprep.subr.mxu0 0.0
      %430 = vmatpush1.msra.mxu0 0.0
      %431 = vmatprep.subr.mxu0 0.0
      %432 = vmatpush1.msra.mxu0 0.0
      %433 = vmatprep.subr.mxu0 0.0
      %434 = vmatpush1.msra.mxu0 0.0
      %435 = vmatprep.subr.mxu0 0.0
      %436 = vmatpush1.msra.mxu0 0.0
      %437 = vmatprep.subr.mxu0 0.0
      %438 = vmatpush1.msra.mxu0 0.0
      %439 = vmatprep.mubr.f32.mxu0 0.0
      %440 = vmatmul.mubr.f32.gmra.mrb[0].mxu0 %v346
      %v441 = vpop.f32.mrb[0].mxu0
      %v442 = vadd.f32 0.0, %v441
      %v443 = vpop.f32.mrb[0].mxu0
      %444 = vdwg.mxu0
      %v445 = vadd.f32 %v267, %v442
      %v446 = vtanh.pop %v445
      %v447 = vmul.f32 %v446, %v351
      %448 = vadd.xlane.f32.xlu0 %v447
      %v449 = vpop.xlane.xlu0 %448
      %v450 = vadd.f32 %v449, %v356
      %v451 = vxor.u32 %v450, 2147483648
      %v452 = vmul.f32 %v451, 1.442695
      %v453 = vpow.pop %v452
      %v454 = vadd.f32 %v453, 1.0
      %v455 = vrcp.pop %v454
      %v456 = vmul.f32 1.0, %v455
      %v457 = vmul.f32 %v369, %v456
      %v458 = vadd.f32 %v364, %v457
      %v459 = vadd.f32 %v458, %v456
      %vm460 = vcmp.gt.f32.partialorder %v459, 0.99
      %v461 = vsel %vm460, 1, 0
      %v462 = vcvt.s32.f32 %v461
      %v463 = vmul.f32 %v369, %v462
      %v464 = vsub.f32 1.0, %v463
      %v465 = vmul.f32 %v369, %v464
      %v466 = vsub.f32 1.0, %v458
      %v467 = vmul.f32 %v463, %v466
      %v468 = vadd.f32 %v457, %v467
      %v469 = vmul.f32 %v468, %v446
      %v470 = vadd.f32 %v374, %v469
      %471 = vmatprep.subr.mxu0 0.0
      %472 = vmatpush1.msra.mxu0 %v100
      %473 = vmatprep.subr.mxu0 0.0
      %474 = vmatpush1.msra.mxu0 %v101
      %475 = vmatprep.subr.mxu0 0.0
      %476 = vmatpush1.msra.mxu0 %v102
      %477 = vmatprep.subr.mxu0 0.0
      %478 = vmatpush1.msra.mxu0 %v103
      %479 = vmatprep.subr.mxu0 0.0
      %480 = vmatpush1.msra.mxu0 %v104
      %481 = vmatprep.subr.mxu0 0.0
      %482 = vmatpush1.msra.mxu0 %v105
      %483 = vmatprep.subr.mxu0 0.0
      %484 = vmatpush1.msra.mxu0 %v106
      %485 = vmatprep.subr.mxu0 0.0
      %486 = vmatpush1.msra.mxu0 %v107
      %487 = vmatprep.subr.mxu0 0.0
      %488 = vmatpush1.msra.mxu0 %v108
      %489 = vmatprep.subr.mxu0 0.0
      %490 = vmatpush1.msra.mxu0 %v109
      %491 = vmatprep.subr.mxu0 0.0
      %492 = vmatpush1.msra.mxu0 %v110
      %493 = vmatprep.subr.mxu0 0.0
      %494 = vmatpush1.msra.mxu0 %v111
      %495 = vmatprep.subr.mxu0 0.0
      %496 = vmatpush1.msra.mxu0 %v112
      %497 = vmatprep.subr.mxu0 0.0
      %498 = vmatpush1.msra.mxu0 %v113
      %499 = vmatprep.subr.mxu0 0.0
      %500 = vmatpush1.msra.mxu0 %v114
      %501 = vmatprep.subr.mxu0 0.0
      %502 = vmatpush1.msra.mxu0 %v115
      %503 = vmatprep.subr.mxu0 0.0
      %504 = vmatpush1.msra.mxu0 0.0
      %505 = vmatprep.subr.mxu0 0.0
      %506 = vmatpush1.msra.mxu0 0.0
      %507 = vmatprep.subr.mxu0 0.0
      %508 = vmatpush1.msra.mxu0 0.0
      %509 = vmatprep.subr.mxu0 0.0
      %510 = vmatpush1.msra.mxu0 0.0
      %511 = vmatprep.subr.mxu0 0.0
      %512 = vmatpush1.msra.mxu0 0.0
      %513 = vmatprep.subr.mxu0 0.0
      %514 = vmatpush1.msra.mxu0 0.0
      %515 = vmatprep.subr.mxu0 0.0
      %516 = vmatpush1.msra.mxu0 0.0
      %517 = vmatprep.subr.mxu0 0.0
      %518 = vmatpush1.msra.mxu0 0.0
      %519 = vmatprep.subr.mxu0 0.0
      %520 = vmatpush1.msra.mxu0 0.0
      %521 = vmatprep.subr.mxu0 0.0
      %522 = vmatpush1.msra.mxu0 0.0
      %523 = vmatprep.subr.mxu0 0.0
      %524 = vmatpush1.msra.mxu0 0.0
      %525 = vmatprep.subr.mxu0 0.0
      %526 = vmatpush1.msra.mxu0 0.0
      %527 = vmatprep.subr.mxu0 0.0
      %528 = vmatpush1.msra.mxu0 0.0
      %529 = vmatprep.subr.mxu0 0.0
      %530 = vmatpush1.msra.mxu0 0.0
      %531 = vmatprep.subr.mxu0 0.0
      %532 = vmatpush1.msra.mxu0 0.0
      %533 = vmatprep.subr.mxu0 0.0
      %534 = vmatpush1.msra.mxu0 0.0
      %535 = vmatprep.mubr.f32.mxu0 0.0
      %536 = vmatmul.mubr.f32.gmra.mrb[0].mxu0 %v446
      %v537 = vpop.f32.mrb[0].mxu0
      %v538 = vadd.f32 0.0, %v537
      %v539 = vpop.f32.mrb[0].mxu0
      %540 = vdwg.mxu0
      %v541 = vadd.f32 %v267, %v538
      %v542 = vtanh.pop %v541
      %v543 = vmul.f32 %v542, %v351
      %544 = vadd.xlane.f32.xlu0 %v543
      %v545 = vpop.xlane.xlu0 %544
      %v546 = vadd.f32 %v545, %v356
      %v547 = vxor.u32 %v546, 2147483648
      %v548 = vmul.f32 %v547, 1.442695
      %v549 = vpow.pop %v548
      %v550 = vadd.f32 %v549, 1.0
      %v551 = vrcp.pop %v550
      %v552 = vmul.f32 1.0, %v551
      %v553 = vmul.f32 %v465, %v552
      %v554 = vadd.f32 %v458, %v553
      %v555 = vadd.f32 %v554, %v552
      %vm556 = vcmp.gt.f32.partialorder %v555, 0.99
      %v557 = vsel %vm556, 1, 0
      %v558 = vcvt.s32.f32 %v557
      %v559 = vmul.f32 %v465, %v558
      %v560 = vsub.f32 1.0, %v559
      %v561 = vmul.f32 %v465, %v560
      %v562 = vsub.f32 1.0, %v554
      %v563 = vmul.f32 %v559, %v562
      %v564 = vadd.f32 %v553, %v563
      %v565 = vmul.f32 %v564, %v542
      %v566 = vadd.f32 %v470, %v565
      %567 = vmatprep.subr.mxu0 0.0
      %568 = vmatpush1.msra.mxu0 %v100
      %569 = vmatprep.subr.mxu0 0.0
      %570 = vmatpush1.msra.mxu0 %v101
      %571 = vmatprep.subr.mxu0 0.0
      %572 = vmatpush1.msra.mxu0 %v102
      %573 = vmatprep.subr.mxu0 0.0
      %574 = vmatpush1.msra.mxu0 %v103
      %575 = vmatprep.subr.mxu0 0.0
      %576 = vmatpush1.msra.mxu0 %v104
      %577 = vmatprep.subr.mxu0 0.0
      %578 = vmatpush1.msra.mxu0 %v105
      %579 = vmatprep.subr.mxu0 0.0
      %580 = vmatpush1.msra.mxu0 %v106
      %581 = vmatprep.subr.mxu0 0.0
      %582 = vmatpush1.msra.mxu0 %v107
      %583 = vmatprep.subr.mxu0 0.0
      %584 = vmatpush1.msra.mxu0 %v108
      %585 = vmatprep.subr.mxu0 0.0
      %586 = vmatpush1.msra.mxu0 %v109
      %587 = vmatprep.subr.mxu0 0.0
      %588 = vmatpush1.msra.mxu0 %v110
      %589 = vmatprep.subr.mxu0 0.0
      %590 = vmatpush1.msra.mxu0 %v111
      %591 = vmatprep.subr.mxu0 0.0
      %592 = vmatpush1.msra.mxu0 %v112
      %593 = vmatprep.subr.mxu0 0.0
      %594 = vmatpush1.msra.mxu0 %v113
      %595 = vmatprep.subr.mxu0 0.0
      %596 = vmatpush1.msra.mxu0 %v114
      %597 = vmatprep.subr.mxu0 0.0
      %598 = vmatpush1.msra.mxu0 %v115
      %599 = vmatprep.subr.mxu0 0.0
      %600 = vmatpush1.msra.mxu0 0.0
      %601 = vmatprep.subr.mxu0 0.0
      %602 = vmatpush1.msra.mxu0 0.0
      %603 = vmatprep.subr.mxu0 0.0
      %604 = vmatpush1.msra.mxu0 0.0
      %605 = vmatprep.subr.mxu0 0.0
      %606 = vmatpush1.msra.mxu0 0.0
      %607 = vmatprep.subr.mxu0 0.0
      %608 = vmatpush1.msra.mxu0 0.0
      %609 = vmatprep.subr.mxu0 0.0
      %610 = vmatpush1.msra.mxu0 0.0
      %611 = vmatprep.subr.mxu0 0.0
      %612 = vmatpush1.msra.mxu0 0.0
      %613 = vmatprep.subr.mxu0 0.0
      %614 = vmatpush1.msra.mxu0 0.0
      %615 = vmatprep.subr.mxu0 0.0
      %616 = vmatpush1.msra.mxu0 0.0
      %617 = vmatprep.subr.mxu0 0.0
      %618 = vmatpush1.msra.mxu0 0.0
      %619 = vmatprep.subr.mxu0 0.0
      %620 = vmatpush1.msra.mxu0 0.0
      %621 = vmatprep.subr.mxu0 0.0
      %622 = vmatpush1.msra.mxu0 0.0
      %623 = vmatprep.subr.mxu0 0.0
      %624 = vmatpush1.msra.mxu0 0.0
      %625 = vmatprep.subr.mxu0 0.0
      %626 = vmatpush1.msra.mxu0 0.0
      %627 = vmatprep.subr.mxu0 0.0
      %628 = vmatpush1.msra.mxu0 0.0
      %629 = vmatprep.subr.mxu0 0.0
      %630 = vmatpush1.msra.mxu0 0.0
      %631 = vmatprep.mubr.f32.mxu0 0.0
      %632 = vmatmul.mubr.f32.gmra.mrb[0].mxu0 %v542
      %v633 = vpop.f32.mrb[0].mxu0
      %v634 = vadd.f32 0.0, %v633
      %v635 = vpop.f32.mrb[0].mxu0
      %636 = vdwg.mxu0
      %v637 = vadd.f32 %v267, %v634
      %v638 = vtanh.pop %v637
      %v639 = vmul.f32 %v638, %v351
      %640 = vadd.xlane.f32.xlu0 %v639
      %v641 = vpop.xlane.xlu0 %640
      %v642 = vadd.f32 %v641, %v356
      %v643 = vxor.u32 %v642, 2147483648
      %v644 = vmul.f32 %v643, 1.442695
      %v645 = vpow.pop %v644
      %v646 = vadd.f32 %v645, 1.0
      %v647 = vrcp.pop %v646
      %v648 = vmul.f32 1.0, %v647
      %v649 = vmul.f32 %v561, %v648
      %v650 = vadd.f32 %v554, %v649
      %v651 = vadd.f32 %v650, %v648
      %vm652 = vcmp.gt.f32.partialorder %v651, 0.99
      %v653 = vsel %vm652, 1, 0
      %v654 = vcvt.s32.f32 %v653
      %v655 = vmul.f32 %v561, %v654
      %v656 = vsub.f32 1.0, %v655
      %v657 = vmul.f32 %v561, %v656
      %v658 = vsub.f32 1.0, %v650
      %v659 = vmul.f32 %v655, %v658
      %v660 = vadd.f32 %v649, %v659
      %v661 = vmul.f32 %v660, %v638
      %v662 = vadd.f32 %v566, %v661
      %663 = vmatprep.subr.mxu0 0.0
      %664 = vmatpush1.msra.mxu0 %v100
      %665 = vmatprep.subr.mxu0 0.0
      %666 = vmatpush1.msra.mxu0 %v101
      %667 = vmatprep.subr.mxu0 0.0
      %668 = vmatpush1.msra.mxu0 %v102
      %669 = vmatprep.subr.mxu0 0.0
      %670 = vmatpush1.msra.mxu0 %v103
      %671 = vmatprep.subr.mxu0 0.0
      %672 = vmatpush1.msra.mxu0 %v104
      %673 = vmatprep.subr.mxu0 0.0
      %674 = vmatpush1.msra.mxu0 %v105
      %675 = vmatprep.subr.mxu0 0.0
      %676 = vmatpush1.msra.mxu0 %v106
      %677 = vmatprep.subr.mxu0 0.0
      %678 = vmatpush1.msra.mxu0 %v107
      %679 = vmatprep.subr.mxu0 0.0
      %680 = vmatpush1.msra.mxu0 %v108
      %681 = vmatprep.subr.mxu0 0.0
      %682 = vmatpush1.msra.mxu0 %v109
      %683 = vmatprep.subr.mxu0 0.0
      %684 = vmatpush1.msra.mxu0 %v110
      %685 = vmatprep.subr.mxu0 0.0
      %686 = vmatpush1.msra.mxu0 %v111
      %687 = vmatprep.subr.mxu0 0.0
      %688 = vmatpush1.msra.mxu0 %v112
      %689 = vmatprep.subr.mxu0 0.0
      %690 = vmatpush1.msra.mxu0 %v113
      %691 = vmatprep.subr.mxu0 0.0
      %692 = vmatpush1.msra.mxu0 %v114
      %693 = vmatprep.subr.mxu0 0.0
      %694 = vmatpush1.msra.mxu0 %v115
      %695 = vmatprep.subr.mxu0 0.0
      %696 = vmatpush1.msra.mxu0 0.0
      %697 = vmatprep.subr.mxu0 0.0
      %698 = vmatpush1.msra.mxu0 0.0
      %699 = vmatprep.subr.mxu0 0.0
      %700 = vmatpush1.msra.mxu0 0.0
      %701 = vmatprep.subr.mxu0 0.0
      %702 = vmatpush1.msra.mxu0 0.0
      %703 = vmatprep.subr.mxu0 0.0
      %704 = vmatpush1.msra.mxu0 0.0
      %705 = vmatprep.subr.mxu0 0.0
      %706 = vmatpush1.msra.mxu0 0.0
      %707 = vmatprep.subr.mxu0 0.0
      %708 = vmatpush1.msra.mxu0 0.0
      %709 = vmatprep.subr.mxu0 0.0
      %710 = vmatpush1.msra.mxu0 0.0
      %711 = vmatprep.subr.mxu0 0.0
      %712 = vmatpush1.msra.mxu0 0.0
      %713 = vmatprep.subr.mxu0 0.0
      %714 = vmatpush1.msra.mxu0 0.0
      %715 = vmatprep.subr.mxu0 0.0
      %716 = vmatpush1.msra.mxu0 0.0
      %717 = vmatprep.subr.mxu0 0.0
      %718 = vmatpush1.msra.mxu0 0.0
      %719 = vmatprep.subr.mxu0 0.0
      %720 = vmatpush1.msra.mxu0 0.0
      %721 = vmatprep.subr.mxu0 0.0
      %722 = vmatpush1.msra.mxu0 0.0
      %723 = vmatprep.subr.mxu0 0.0
      %724 = vmatpush1.msra.mxu0 0.0
      %725 = vmatprep.subr.mxu0 0.0
      %726 = vmatpush1.msra.mxu0 0.0
      %727 = vmatprep.mubr.f32.mxu0 0.0
      %728 = vmatmul.mubr.f32.gmra.mrb[0].mxu0 %v638
      %v729 = vpop.f32.mrb[0].mxu0
      %v730 = vadd.f32 0.0, %v729
      %v731 = vpop.f32.mrb[0].mxu0
      %732 = vdwg.mxu0
      %v733 = vadd.f32 %v267, %v730
      %v734 = vtanh.pop %v733
      %v735 = vmul.f32 %v734, %v351
      %736 = vadd.xlane.f32.xlu0 %v735
      %v737 = vpop.xlane.xlu0 %736
      %v738 = vadd.f32 %v737, %v356
      %v739 = vxor.u32 %v738, 2147483648
      %v740 = vmul.f32 %v739, 1.442695
      %v741 = vpow.pop %v740
      %v742 = vadd.f32 %v741, 1.0
      %v743 = vrcp.pop %v742
      %v744 = vmul.f32 1.0, %v743
      %v745 = vmul.f32 %v657, %v744
      %v746 = vadd.f32 %v650, %v745
      %v747 = vadd.f32 %v746, %v744
      %vm748 = vcmp.gt.f32.partialorder %v747, 0.99
      %v749 = vsel %vm748, 1, 0
      %v750 = vcvt.s32.f32 %v749
      %v751 = vmul.f32 %v657, %v750
      %v752 = vsub.f32 1.0, %v751
      %v753 = vmul.f32 %v657, %v752
      %v754 = vsub.f32 1.0, %v746
      %v755 = vmul.f32 %v751, %v754
      %v756 = vadd.f32 %v745, %v755
      %v757 = vmul.f32 %v756, %v734
      %v758 = vadd.f32 %v662, %v757
      %759 = vmatprep.subr.mxu0 0.0
      %760 = vmatpush1.msra.mxu0 %v100
      %761 = vmatprep.subr.mxu0 0.0
      %762 = vmatpush1.msra.mxu0 %v101
      %763 = vmatprep.subr.mxu0 0.0
      %764 = vmatpush1.msra.mxu0 %v102
      %765 = vmatprep.subr.mxu0 0.0
      %766 = vmatpush1.msra.mxu0 %v103
      %767 = vmatprep.subr.mxu0 0.0
      %768 = vmatpush1.msra.mxu0 %v104
      %769 = vmatprep.subr.mxu0 0.0
      %770 = vmatpush1.msra.mxu0 %v105
      %771 = vmatprep.subr.mxu0 0.0
      %772 = vmatpush1.msra.mxu0 %v106
      %773 = vmatprep.subr.mxu0 0.0
      %774 = vmatpush1.msra.mxu0 %v107
      %775 = vmatprep.subr.mxu0 0.0
      %776 = vmatpush1.msra.mxu0 %v108
      %777 = vmatprep.subr.mxu0 0.0
      %778 = vmatpush1.msra.mxu0 %v109
      %779 = vmatprep.subr.mxu0 0.0
      %780 = vmatpush1.msra.mxu0 %v110
      %781 = vmatprep.subr.mxu0 0.0
      %782 = vmatpush1.msra.mxu0 %v111
      %783 = vmatprep.subr.mxu0 0.0
      %784 = vmatpush1.msra.mxu0 %v112
      %785 = vmatprep.subr.mxu0 0.0
      %786 = vmatpush1.msra.mxu0 %v113
      %787 = vmatprep.subr.mxu0 0.0
      %788 = vmatpush1.msra.mxu0 %v114
      %789 = vmatprep.subr.mxu0 0.0
      %790 = vmatpush1.msra.mxu0 %v115
      %791 = vmatprep.subr.mxu0 0.0
      %792 = vmatpush1.msra.mxu0 0.0
      %793 = vmatprep.subr.mxu0 0.0
      %794 = vmatpush1.msra.mxu0 0.0
      %795 = vmatprep.subr.mxu0 0.0
      %796 = vmatpush1.msra.mxu0 0.0
      %797 = vmatprep.subr.mxu0 0.0
      %798 = vmatpush1.msra.mxu0 0.0
      %799 = vmatprep.subr.mxu0 0.0
      %800 = vmatpush1.msra.mxu0 0.0
      %801 = vmatprep.subr.mxu0 0.0
      %802 = vmatpush1.msra.mxu0 0.0
      %803 = vmatprep.subr.mxu0 0.0
      %804 = vmatpush1.msra.mxu0 0.0
      %805 = vmatprep.subr.mxu0 0.0
      %806 = vmatpush1.msra.mxu0 0.0
      %807 = vmatprep.subr.mxu0 0.0
      %808 = vmatpush1.msra.mxu0 0.0
      %809 = vmatprep.subr.mxu0 0.0
      %810 = vmatpush1.msra.mxu0 0.0
      %811 = vmatprep.subr.mxu0 0.0
      %812 = vmatpush1.msra.mxu0 0.0
      %813 = vmatprep.subr.mxu0 0.0
      %814 = vmatpush1.msra.mxu0 0.0
      %815 = vmatprep.subr.mxu0 0.0
      %816 = vmatpush1.msra.mxu0 0.0
      %817 = vmatprep.subr.mxu0 0.0
      %818 = vmatpush1.msra.mxu0 0.0
      %819 = vmatprep.subr.mxu0 0.0
      %820 = vmatpush1.msra.mxu0 0.0
      %821 = vmatprep.subr.mxu0 0.0
      %822 = vmatpush1.msra.mxu0 0.0
      %823 = vmatprep.mubr.f32.mxu0 0.0
      %824 = vmatmul.mubr.f32.gmra.mrb[0].mxu0 %v734
      %v825 = vpop.f32.mrb[0].mxu0
      %v826 = vadd.f32 0.0, %v825
      %v827 = vpop.f32.mrb[0].mxu0
      %828 = vdwg.mxu0
      %v829 = vadd.f32 %v267, %v826
      %v830 = vtanh.pop %v829
      %v831 = vmul.f32 %v830, %v351
      %832 = vadd.xlane.f32.xlu0 %v831
      %v833 = vpop.xlane.xlu0 %832
      %v834 = vadd.f32 %v833, %v356
      %v835 = vxor.u32 %v834, 2147483648
      %v836 = vmul.f32 %v835, 1.442695
      %v837 = vpow.pop %v836
      %v838 = vadd.f32 %v837, 1.0
      %v839 = vrcp.pop %v838
      %v840 = vmul.f32 1.0, %v839
      %v841 = vmul.f32 %v753, %v840
      %v842 = vadd.f32 %v746, %v841
      %v843 = vadd.f32 %v842, %v840
      %vm844 = vcmp.gt.f32.partialorder %v843, 0.99
      %v845 = vsel %vm844, 1, 0
      %v846 = vcvt.s32.f32 %v845
      %v847 = vmul.f32 %v753, %v846
      %v848 = vsub.f32 1.0, %v847
      %v849 = vmul.f32 %v753, %v848
      %v850 = vsub.f32 1.0, %v842
      %v851 = vmul.f32 %v847, %v850
      %v852 = vadd.f32 %v841, %v851
      %v853 = vmul.f32 %v852, %v830
      %v854 = vadd.f32 %v758, %v853
      %855 = vmatprep.subr.mxu0 0.0
      %856 = vmatpush1.msra.mxu0 %v100
      %857 = vmatprep.subr.mxu0 0.0
      %858 = vmatpush1.msra.mxu0 %v101
      %859 = vmatprep.subr.mxu0 0.0
      %860 = vmatpush1.msra.mxu0 %v102
      %861 = vmatprep.subr.mxu0 0.0
      %862 = vmatpush1.msra.mxu0 %v103
      %863 = vmatprep.subr.mxu0 0.0
      %864 = vmatpush1.msra.mxu0 %v104
      %865 = vmatprep.subr.mxu0 0.0
      %866 = vmatpush1.msra.mxu0 %v105
      %867 = vmatprep.subr.mxu0 0.0
      %868 = vmatpush1.msra.mxu0 %v106
      %869 = vmatprep.subr.mxu0 0.0
      %870 = vmatpush1.msra.mxu0 %v107
      %871 = vmatprep.subr.mxu0 0.0
      %872 = vmatpush1.msra.mxu0 %v108
      %873 = vmatprep.subr.mxu0 0.0
      %874 = vmatpush1.msra.mxu0 %v109
      %875 = vmatprep.subr.mxu0 0.0
      %876 = vmatpush1.msra.mxu0 %v110
      %877 = vmatprep.subr.mxu0 0.0
      %878 = vmatpush1.msra.mxu0 %v111
      %879 = vmatprep.subr.mxu0 0.0
      %880 = vmatpush1.msra.mxu0 %v112
      %881 = vmatprep.subr.mxu0 0.0
      %882 = vmatpush1.msra.mxu0 %v113
      %883 = vmatprep.subr.mxu0 0.0
      %884 = vmatpush1.msra.mxu0 %v114
      %885 = vmatprep.subr.mxu0 0.0
      %886 = vmatpush1.msra.mxu0 %v115
      %887 = vmatprep.subr.mxu0 0.0
      %888 = vmatpush1.msra.mxu0 0.0
      %889 = vmatprep.subr.mxu0 0.0
      %890 = vmatpush1.msra.mxu0 0.0
      %891 = vmatprep.subr.mxu0 0.0
      %892 = vmatpush1.msra.mxu0 0.0
      %893 = vmatprep.subr.mxu0 0.0
      %894 = vmatpush1.msra.mxu0 0.0
      %895 = vmatprep.subr.mxu0 0.0
      %896 = vmatpush1.msra.mxu0 0.0
      %897 = vmatprep.subr.mxu0 0.0
      %898 = vmatpush1.msra.mxu0 0.0
      %899 = vmatprep.subr.mxu0 0.0
      %900 = vmatpush1.msra.mxu0 0.0
      %901 = vmatprep.subr.mxu0 0.0
      %902 = vmatpush1.msra.mxu0 0.0
      %903 = vmatprep.subr.mxu0 0.0
      %904 = vmatpush1.msra.mxu0 0.0
      %905 = vmatprep.subr.mxu0 0.0
      %906 = vmatpush1.msra.mxu0 0.0
      %907 = vmatprep.subr.mxu0 0.0
      %908 = vmatpush1.msra.mxu0 0.0
      %909 = vmatprep.subr.mxu0 0.0
      %910 = vmatpush1.msra.mxu0 0.0
      %911 = vmatprep.subr.mxu0 0.0
      %912 = vmatpush1.msra.mxu0 0.0
      %913 = vmatprep.subr.mxu0 0.0
      %914 = vmatpush1.msra.mxu0 0.0
      %915 = vmatprep.subr.mxu0 0.0
      %916 = vmatpush1.msra.mxu0 0.0
      %917 = vmatprep.subr.mxu0 0.0
      %918 = vmatpush1.msra.mxu0 0.0
      %919 = vmatprep.mubr.f32.mxu0 0.0
      %920 = vmatmul.mubr.f32.gmra.mrb[0].mxu0 %v830
      %v921 = vpop.f32.mrb[0].mxu0
      %v922 = vadd.f32 0.0, %v921
      %v923 = vpop.f32.mrb[0].mxu0
      %924 = vdwg.mxu0
      %v925 = vadd.f32 %v267, %v922
      %v926 = vtanh.pop %v925
      %v927 = vmul.f32 %v926, %v351
      %928 = vadd.xlane.f32.xlu0 %v927
      %v929 = vpop.xlane.xlu0 %928
      %v930 = vadd.f32 %v929, %v356
      %v931 = vxor.u32 %v930, 2147483648
      %v932 = vmul.f32 %v931, 1.442695
      %v933 = vpow.pop %v932
      %v934 = vadd.f32 %v933, 1.0
      %v935 = vrcp.pop %v934
      %v936 = vmul.f32 1.0, %v935
      %v937 = vmul.f32 %v849, %v936
      %v938 = vadd.f32 %v842, %v937
      %v939 = vadd.f32 %v938, %v936
      %vm940 = vcmp.gt.f32.partialorder %v939, 0.99
      %v941 = vsel %vm940, 1, 0
      %v942 = vcvt.s32.f32 %v941
      %v943 = vmul.f32 %v849, %v942
      %v944 = vsub.f32 1.0, %v943
      %v945 = vmul.f32 %v849, %v944
      %v946 = vsub.f32 1.0, %v938
      %v947 = vmul.f32 %v943, %v946
      %v948 = vadd.f32 %v937, %v947
      %v949 = vmul.f32 %v948, %v926
      %v950 = vadd.f32 %v854, %v949
      %v951 = vmul.f32 %v945, %v946
      %v952 = vmul.f32 %v951, %v926
      %v953 = vadd.f32 %v950, %v952
      %s954 = scalar_lea.vmem [#allocation14], %s265
      %955 = vst [vmem:[%s954] sm:$0xff] %v953
      %s956 = smul.u32 0, 6
      %s957 = sadd.s32 %s956, %s258
      %p958 = scmp.lt.s32.totalorder %s957, 6
      %s959 = scalar_select %p958, 1, 0
      %s960 = scvt.s32.f32 %s959
      %v961 = vstv %s960
      %v962 = vmul.f32 %v961, %v938
      %v963 = vadd.f32 %v264, %v962
    $region62: #{tpu_custom_call.1} parent=1 // loop_footer
      %s262 = sadd.s32 1, %s258
    $region63: #{tpu_custom_call.1} parent=1 // loop_footer_branch
      %257 = sbr.rel target = $region59
    $region64: #{tpu_custom_call.1} parent=1 // loop_exit
      _
    %964 = vst [vmem:[#allocation2] sm:$0xff] %v263
    %v965 = vld [vmem:[#allocation4] sm:$0xff]
    %v966 = vadd.f32 %v965, %v264
    %vm967 = vcmask 7168
    %968 = vst.msk [vmem:[#allocation4] sm:$0xff] %vm967, %v966
    // Predicated region
    $region65: #{tpu_custom_call.1} parent=1 // pred_check
      %p969 = pneg %p91
    $region66: #{tpu_custom_call.1} parent=1 // pred_check_branch
      %971 = sbr.rel (%p969) target = $region68
    $region67: #{tpu_custom_call.1} parent=1 // pred_region
      %v972 = vlaneseq
      %v973 = vshrl.u32 %v972, 7
      %s974 = smul.u32 0, 8
      %v975 = vstv %s974
      %v976 = vadd.s32 %v973, %v975
      %vm977 = vcmp.lt.s32.totalorder %v976, 4
      %v978 = vsel %vm977, 1, 0
      %v979 = vcvt.s32.f32 %v978
      %v980 = vld [vmem:[#allocation4] sm:$0xff]
      %v981 = vmul.f32 %v980, %v979
      %v982 = vsel %vm967, %v981, 0.0
      %983 = vadd.xlane.f32.xlu0 %v982
      %v984 = vpop.xlane.xlu0 %983
      %v985 = vrot.slane %v984, 4
      %v986 = vadd.f32 %v984, %v985
      %v987 = vrot.slane %v986, 2
      %v988 = vadd.f32 %v986, %v987
      %v989 = vrot.slane %v988, 1
      %v990 = vadd.f32 %v988, %v989
      %s991 = vtos %v990
      %s992 = smul.f32 %s991, -0.0025
      %v993 = vstv %s992
      %994 = vst [vmem:[#allocation15] sm:$0x1] %v993
    $region68: #{tpu_custom_call.1} parent=1 // pred_fallthru
      _
    // Predicated region
    $region69: #{tpu_custom_call.1} parent=1 // pred_check
      _
    $region70: #{tpu_custom_call.1} parent=1 // pred_check_branch
      %996 = sbr.rel (0) target = $region72
    $region71: #{tpu_custom_call.1} parent=1 // pred_region
      %s998 = ssub.s32 768, 768
      %999 = vsyncadd [#allocation8], %s998
      %s1000 = sshll.u32 [#allocation14], 4
      %s1001 = int_to_ptr.vmem [resolvable:$true] %s1000
      %1006 = dma.vmem_to_hbm [thread:$0]  %s1001, 768, %s9, [#allocation8], 128, 128, 8
    $region72: #{tpu_custom_call.1} parent=1 // pred_fallthru
      _
    // Predicated region
    $region73: #{tpu_custom_call.1} parent=1 // pred_check
      _
    $region74: #{tpu_custom_call.1} parent=1 // pred_check_branch
      %1008 = sbr.rel (0) target = $region76
    $region75: #{tpu_custom_call.1} parent=1 // pred_region
      %s1010 = ssub.s32 16, 16
      %1011 = vsyncadd [#allocation16], %s1010
      %s1013 = sshll.u32 [#allocation15], 4
      %s1014 = int_to_ptr.vmem [resolvable:$true] %s1013
      %1016 = dma.vmem_to_hbm [thread:$0]  %s1014, 16, %s10, [#allocation16]
    $region76: #{tpu_custom_call.1} parent=1 // pred_fallthru
      _
    // Predicated region
    $region77: #{tpu_custom_call.1} parent=1 // pred_check
      _
    $region78: #{tpu_custom_call.1} parent=1 // pred_check_branch
      %1018 = sbr.rel (0) target = $region80
    $region79: #{tpu_custom_call.1} parent=1 // pred_region
      %1019 = dma.done [#allocation8], 768
    $region80: #{tpu_custom_call.1} parent=1 // pred_fallthru
      _
    // Predicated region
    $region81: #{tpu_custom_call.1} parent=1 // pred_check
      _
    $region82: #{tpu_custom_call.1} parent=1 // pred_check_branch
      %1021 = sbr.rel (0) target = $region84
    $region83: #{tpu_custom_call.1} parent=1 // pred_region
      %1022 = dma.done [#allocation16], 16
    $region84: #{tpu_custom_call.1} parent=1 // pred_fallthru
      _
    %1023 = vsyncpa [#allocation7], 1
    %1024 = vsyncpa [#allocation10], 1
    %1025 = vsyncpa [#allocation13], 1
    %1026 = vsyncpa [#allocation8], 1
    %1027 = vsyncpa [#allocation16], 1

</llo_original>
